<compile_context>
chip_gen: v5e
topology: v5e:2x2
jax: 0.10.0
libtpu: 0.0.40
codegen_flags: <defaults>
</compile_context>

<pallas_src>
import math
import functools

import jax
import jax.numpy as jnp
from jax.experimental import pallas as pl
from jax.experimental.pallas import tpu as pltpu


# --------------------------------------------------------------------------- kernel

def _cfc_kernel(gates_ref, whh_ref, gamma_ref, beta_ref, h0_ref,
                out_ref, hn_ref, h_scr, *, hidden_size, time_chunk, unroll):
    """One grid step == one (batch_block, time_chunk) tile of the recurrence.

    Time-major blocks (each timestep is a contiguous, unmasked (Bb, ·) tile):
      gates_ref : (Tc, Bb, 3H) stream_dtype   l2norm(x) @ W_ih*s + (b_ih+b_hh)*s
      whh_ref   : (H, 3H)      stream_dtype   W_hh^T * s   (grid-invariant)
      gamma_ref : (1, H)  f32   outer LayerNorm scale
      beta_ref  : (1, H)  f32   outer LayerNorm shift
      h0_ref    : (Bb, H) f32   initial hidden state for this batch block
      out_ref   : (Tc, Bb, H)   per-timestep layer output (post outer LN)
      hn_ref    : (Bb, H) f32   final hidden state (written on last chunk only)
      h_scr     : (Bb, H) f32   hidden state carried across time chunks
    """
    c = pl.program_id(1)                      # time-chunk index ("arbitrary" axis)
    H = hidden_size
    Bb = h_scr.shape[0]

    @pl.when(c == 0)
    def _():
        h_scr[...] = h0_ref[...]

    # Hoist the (1,H)->(Bb,H) broadcasts out of the time loop (JAX does not CSE
    # broadcast_in_dim; inside the loop they would be re-emitted every step).
    gamma_b = jnp.broadcast_to(gamma_ref[...], (Bb, H))
    beta_b = jnp.broadcast_to(beta_ref[...], (Bb, H))
    w_dtype = whh_ref.dtype

    def step(tt, h):
        # Contiguous (Bb, 3H) tile; 1/sqrt(2) and both biases already folded in.
        gx = gates_ref[tt].astype(jnp.float32)

        # L2-normalize the hidden state:  h / (||h|| + 1e-8)  (PyTorch semantics).
        ss = jnp.sum(h * h, axis=-1, keepdims=True)
        h_n = h / (jnp.sqrt(ss) + 1e-8)

        # Recurrent projection — the only matmul on the sequential path.  W_hh is
        # re-read from VMEM each step (flat register pressure, Tc-independent).
        # TODO(synk): for H >= 128, keep W_hh staged in the MXU across the chunk via
        #             pltpu.matmul_push_rhs / matmul_acc_lhs / matmul_pop.
        gh = jnp.dot(h_n.astype(w_dtype), whh_ref[...],
                     preferred_element_type=jnp.float32)           # (Bb, 3H)

        g = gx + gh                                   # already scaled by 1/sqrt(2)
        i_t = jax.nn.sigmoid(g[:, 0 * H:1 * H])
        f_t = jax.nn.sigmoid(g[:, 1 * H:2 * H])
        g_t = jnp.tanh(g[:, 2 * H:3 * H])
        nh = f_t * h_n + i_t * g_t

        # Fused cell LN (no affine, eps=1e-5, biased variance) + outer affine LN:
        # after the cell LN the row mean is 0 and its variance is var/(var+eps),
        # so the outer LN is a pure rescale (saves two cross-lane reductions).
        mu = jnp.mean(nh, axis=-1, keepdims=True)
        d = nh - mu
        var = jnp.mean(d * d, axis=-1, keepdims=True)
        inv1 = jax.lax.rsqrt(var + 1e-5)
        z = d * inv1                                  # cell LN output == next hidden
        var_z = var * (inv1 * inv1)                   # biased variance of z
        y = z * jax.lax.rsqrt(var_z + 1e-5) * gamma_b + beta_b

        # Dropout == identity (eval-mode semantics).
        out_ref[tt] = y.astype(out_ref.dtype)
        return z

    # Bounded unroll: amortizes per-grid-step overhead without the vreg-spill cliff
    # of a fully static Python unroll.
    h = jax.lax.fori_loop(0, time_chunk, step, h_scr[...], unroll=unroll)
    h_scr[...] = h                                    # carry to the next time chunk

    @pl.when(c == pl.num_programs(1) - 1)
    def _():
        hn_ref[...] = h.astype(hn_ref.dtype)


# ------------------------------------------------------------------ tiling helpers

def _pick_time_chunk(T, cap=64):
    """Largest divisor of T <= cap (time is the untiled leading block dim)."""
    best = 1
    for tc in range(1, min(T, cap) + 1):
        if T % tc == 0:
            best = tc
    return best


def _pick_batch_block(B, cap=256):
    """Sublane/MXU-dense batch block: the largest multiple of 8 dividing B that is
    <= cap and leaves >= 2 blocks on the 'parallel' grid axis (v7x megacore); falls
    back to the largest multiple-of-8 divisor, then to the whole batch."""
    mult8 = [bb for bb in range(8, min(B, cap) + 1, 8) if B % bb == 0]
    two_blocks = [bb for bb in mult8 if B // bb >= 2]
    if two_blocks:
        return two_blocks[-1]
    if mult8:
        return mult8[-1]
    return B


def _vmem_budget_bytes():
    """Per-TensorCore VMEM capacity minus headroom (v5e/v6e: 128 MiB, v7x: 64 MiB)."""
    try:
        cap = int(pltpu.get_tpu_info().vmem_capacity_bytes)
    except Exception:  # query unavailable: assume the smallest (v7x per-TC)
        cap = 64 << 20
    return max(cap - (16 << 20), 32 << 20)


def _resident_vmem_bytes(Bb, Tc, H, stream_bytes):
    G = 3 * H
    return (2 * Tc * Bb * G * stream_bytes       # pre-gates blocks (double-buffered)
            + 2 * Tc * Bb * H * stream_bytes     # output blocks    (double-buffered)
            + 2 * H * G * stream_bytes           # W_hh (conservatively x2)
            + 4 * 2 * H * 4                      # gamma / beta
            + 2 * 2 * Bb * H * 4                 # h0 / hn blocks
            + Bb * H * 4)                        # hidden-state scratch


def _fit_to_vmem(B, T, H, Bb, Tc, stream_bytes, budget):
    """Shrink Tc (first) then Bb until the resident working set fits the budget."""
    while _resident_vmem_bytes(Bb, Tc, H, stream_bytes) > budget:
        tc_next = max((d for d in range(1, Tc) if T % d == 0), default=Tc)
        if tc_next < Tc:
            Tc = tc_next
            continue
        bb_next = max((d for d in range(8, Bb, 8) if B % d == 0), default=Bb)
        if bb_next < Bb:
            Bb = bb_next
            continue
        break                                    # already at the smallest legal tile
    return Bb, Tc


# -------------------------------------------------------------------------- wrapper

def cfc_layer_forward(x, params, h0=None, *, time_chunk=None, batch_block=None,
                      stream_dtype=jnp.bfloat16):
    """x: (B, T, I).  Returns (outputs (B, T, H) in `stream_dtype`, h_n (B, H) f32).

    The h-independent input projection is hoisted to one dense XLA matmul; the Pallas
    kernel runs only the sequential recurrence over time-major blocks.  `stream_dtype`
    controls the big HBM streams (pre-gates, W_hh, outputs); all gating / LayerNorm
    arithmetic stays in f32 inside the kernel.
    """
    B, T, I = x.shape
    H = params["w_hh_t"].shape[0]
    s = 1.0 / math.sqrt(2.0)

    if h0 is None:
        h0 = jnp.zeros((B, H), jnp.float32)
    h0 = h0.astype(jnp.float32)

    Bb = _pick_batch_block(B) if batch_block is None else int(batch_block)
    Tc = _pick_time_chunk(T) if time_chunk is None else int(time_chunk)
    assert B % Bb == 0 and T % Tc == 0
    # (8,128) rule: the batch axis sits in the sublane slot of every block.
    assert Bb == B or Bb % 8 == 0

    stream_bytes = jnp.dtype(stream_dtype).itemsize
    budget = _vmem_budget_bytes()
    Bb, Tc = _fit_to_vmem(B, T, H, Bb, Tc, stream_bytes, budget)
    resident = _resident_vmem_bytes(Bb, Tc, H, stream_bytes)
    vmem_limit = int(min(budget, resident + (16 << 20)))

    # ---- Hoisted, h-independent input projection (one dense matmul, time-major).
    # 1/sqrt(2) is folded into W_ih / biases / W_hh so the per-step VPU mul vanishes.
    x_f = x.astype(jnp.float32)
    x_n = x_f / (jnp.linalg.norm(x_f, axis=-1, keepdims=True) + 1e-8)
    pre_gates = (jnp.einsum("bti,ig->tbg", x_n, params["w_ih_t"] * s)
                 + (params["b_ih"] + params["b_hh"]) * s).astype(stream_dtype)  # (T,B,3H)
    whh = (params["w_hh_t"] * s).astype(stream_dtype)                           # (H, 3H)
    # TODO(synk): pad H to a multiple of 128 (256 on v6e/v7x) with masked LN stats for
    #             fully lane-dense loads/stores when hidden_size is irregular.
    # TODO(synk): on v5e with stream_dtype=float32, bump the pre-gates BlockSpec to
    #             pipeline_mode=pl.Buffered(3) to hide the larger DMA behind compute.

    grid = (B // Bb, T // Tc)
    kernel = functools.partial(_cfc_kernel, hidden_size=H, time_chunk=Tc,
                               unroll=min(8, Tc))

    def _run(single_buffer_invariants):
        # Grid-invariant operands don't need double-buffering (saves H*3H*bytes of
        # VMEM — matters most inside v7x's 64 MiB per-TC VMEM at large H).
        inv = ({"pipeline_mode": pl.Buffered(1)} if single_buffer_invariants else {})
        grid_spec = pltpu.PrefetchScalarGridSpec(
            num_scalar_prefetch=0,
            grid=grid,
            in_specs=[
                pl.BlockSpec((Tc, Bb, 3 * H), lambda b, c: (c, b, 0)),       # pre-gates
                pl.BlockSpec((H, 3 * H), lambda b, c: (0, 0), **inv),        # W_hh^T
                pl.BlockSpec((1, H), lambda b, c: (0, 0), **inv),            # gamma
                pl.BlockSpec((1, H), lambda b, c: (0, 0), **inv),            # beta
                pl.BlockSpec((Bb, H), lambda b, c: (b, 0)),                  # h0
            ],
            out_specs=[
                pl.BlockSpec((Tc, Bb, H), lambda b, c: (c, b, 0)),           # outputs
                pl.BlockSpec((Bb, H), lambda b, c: (b, 0)),                  # final h
            ],
            scratch_shapes=[pltpu.VMEM((Bb, H), jnp.float32)],
        )
        return pl.pallas_call(
            kernel,
            out_shape=(
                jax.ShapeDtypeStruct((T, B, H), stream_dtype),
                jax.ShapeDtypeStruct((B, H), jnp.float32),
            ),
            grid_spec=grid_spec,
            compiler_params=pltpu.CompilerParams(
                dimension_semantics=("parallel", "arbitrary"),
                vmem_limit_bytes=vmem_limit,
            ),
        )(pre_gates, whh, params["gamma"], params["beta"], h0)

    try:
        out_tb, h_n = _run(True)
    except Exception:
        # pl.Buffered(1) unsupported on this jax/libtpu: fall back to the default
        # double-buffered pipeline (numerically identical).
        out_tb, h_n = _run(False)

    return jnp.swapaxes(out_tb, 0, 1), h_n            # (B, T, H), (B, H)


# ------------------------------------------------------------------- params & check

def init_params(key, input_size, hidden_size):
    """Init mirroring CfCCell._reset_parameters shapes/semantics: Linear weights
    ~ U(-1/sqrt(fan_in), 1/sqrt(fan_in)), biases zero, outer LN gamma=1, beta=0."""
    k1, k2 = jax.random.split(key, 2)
    bound_ih = 1.0 / math.sqrt(input_size)
    bound_hh = 1.0 / math.sqrt(hidden_size)
    w_ih = jax.random.uniform(k1, (3 * hidden_size, input_size),
                              minval=-bound_ih, maxval=bound_ih, dtype=jnp.float32)
    w_hh = jax.random.uniform(k2, (3 * hidden_size, hidden_size),
                              minval=-bound_hh, maxval=bound_hh, dtype=jnp.float32)
    return {
        "w_ih_t": jnp.transpose(w_ih),                          # (I, 3H)
        "b_ih": jnp.zeros((1, 3 * hidden_size), jnp.float32),
        "w_hh_t": jnp.transpose(w_hh),                          # (H, 3H)
        "b_hh": jnp.zeros((1, 3 * hidden_size), jnp.float32),
        "gamma": jnp.ones((1, hidden_size), jnp.float32),
        "beta": jnp.zeros((1, hidden_size), jnp.float32),
    }


def _reference_forward(x, params, h0=None):
    """Pure-JAX reference (same math as the PyTorch module)."""
    B, T, I = x.shape
    H = params["w_hh_t"].shape[0]
    h = jnp.zeros((B, H), jnp.float32) if h0 is None else h0.astype(jnp.float32)
    s = 1.0 / math.sqrt(2.0)
    outs = []
    for t in range(T):
        xt = x[:, t]
        xt = xt / (jnp.linalg.norm(xt, axis=-1, keepdims=True) + 1e-8)
        hn = h / (jnp.linalg.norm(h, axis=-1, keepdims=True) + 1e-8)
        gx = xt @ params["w_ih_t"] + params["b_ih"]
        gh = hn @ params["w_hh_t"] + params["b_hh"]
        i_t = jax.nn.sigmoid((gx[:, :H] + gh[:, :H]) * s)
        f_t = jax.nn.sigmoid((gx[:, H:2 * H] + gh[:, H:2 * H]) * s)
        g_t = jnp.tanh((gx[:, 2 * H:] + gh[:, 2 * H:]) * s)
        new_h = f_t * hn + i_t * g_t
        mu = jnp.mean(new_h, -1, keepdims=True)
        var = jnp.mean((new_h - mu) ** 2, -1, keepdims=True)
        new_h = (new_h - mu) * jax.lax.rsqrt(var + 1e-5)
        h = new_h
        outs.append(new_h)
    o = jnp.stack(outs, axis=1)
    mu = jnp.mean(o, -1, keepdims=True)
    var = jnp.mean((o - mu) ** 2, -1, keepdims=True)
    o = (o - mu) * jax.lax.rsqrt(var + 1e-5) * params["gamma"] + params["beta"]
    return o, h


if __name__ == "__main__":
    B, T, I, H = 16, 16, 16, 32
    key = jax.random.PRNGKey(0)
    k_x, k_p = jax.random.split(key)
    x = jax.random.normal(k_x, (B, T, I), dtype=jnp.float32)
    params = init_params(k_p, I, H)

    ref_out, ref_h = _reference_forward(x, params)

    # f32 streams, two time chunks (exercises the cross-chunk hidden carry) and two
    # batch blocks (the "parallel" axis) — tight check vs. the pure-JAX reference.
    out32, h32 = cfc_layer_forward(x, params, time_chunk=8, stream_dtype=jnp.float32)
    out32, h32 = jax.block_until_ready((out32, h32))
    assert out32.shape == (B, T, H) and h32.shape == (B, H)
    assert jnp.allclose(out32, ref_out, atol=3e-5, rtol=3e-5), \
        float(jnp.max(jnp.abs(out32 - ref_out)))
    assert jnp.allclose(h32, ref_h, atol=3e-5, rtol=3e-5), \
        float(jnp.max(jnp.abs(h32 - ref_h)))

    # Default perf configuration (bf16 streams): looser tolerance — bf16 carries ~3
    # significant digits and the error compounds across the 16-step recurrence.
    out_bf, h_bf = cfc_layer_forward(x, params)
    out_bf, h_bf = jax.block_until_ready((out_bf, h_bf))
    assert out_bf.shape == (B, T, H) and out_bf.dtype == jnp.bfloat16
    assert jnp.allclose(out_bf.astype(jnp.float32), ref_out, atol=1e-1, rtol=1e-1)
    assert jnp.allclose(h_bf, ref_h, atol=1e-1, rtol=1e-1)

    print("KERNEL_OK")
</pallas_src>

<mosaic_0001>
module attributes {stable_mosaic.version = 11 : i64} {
  func.func @_cfc_kernel(%arg0: i32, %arg1: i32, %arg2: memref<8x8x96xf32, #tpu.memory_space<vmem>>, %arg3: memref<32x96xf32, #tpu.memory_space<vmem>>, %arg4: memref<1x32xf32, #tpu.memory_space<vmem>>, %arg5: memref<1x32xf32, #tpu.memory_space<vmem>>, %arg6: memref<8x32xf32, #tpu.memory_space<vmem>>, %arg7: memref<8x8x32xf32, #tpu.memory_space<vmem>>, %arg8: memref<8x32xf32, #tpu.memory_space<vmem>>, %arg9: memref<8x32xf32, #tpu.memory_space<vmem>>) attributes {dimension_semantics = [#tpu.dimension_semantics<parallel>, #tpu.dimension_semantics<arbitrary>], iteration_bounds = array<i64: 2, 2>, scalar_prefetch = 0 : i64, scratch_operands = 1 : i64, tpu.core_type = #tpu.core_type<tc>, window_params = [{transform_indices = @transform_0, window_bounds = array<i64: 8, 8, 96>}, {pipeline_mode = #tpu.pipeline_mode<synchronous>, transform_indices = @transform_1, window_bounds = array<i64: 32, 96>}, {pipeline_mode = #tpu.pipeline_mode<synchronous>, transform_indices = @transform_2, window_bounds = array<i64: 1, 32>}, {pipeline_mode = #tpu.pipeline_mode<synchronous>, transform_indices = @transform_3, window_bounds = array<i64: 1, 32>}, {transform_indices = @transform_4, window_bounds = array<i64: 8, 32>}, {transform_indices = @transform_5, window_bounds = array<i64: 8, 8, 32>}, {transform_indices = @transform_6, window_bounds = array<i64: 8, 32>}]} {
    %c0_i32 = arith.constant 0 : i32
    %0 = arith.cmpi eq, %arg1, %c0_i32 : i32
    %1 = arith.extui %0 : i1 to i32
    %c0_i32_0 = arith.constant 0 : i32
    %2 = arith.cmpi ne, %1, %c0_i32_0 : i32
    scf.if %2 {
      %c0_146 = arith.constant 0 : index
      %c0_147 = arith.constant 0 : index
      %494 = vector.load %arg6[%c0_146, %c0_147] : memref<8x32xf32, #tpu.memory_space<vmem>>, vector<8x32xf32>
      %c0_148 = arith.constant 0 : index
      %c0_149 = arith.constant 0 : index
      %495 = vector.load %arg9[%c0_148, %c0_149] : memref<8x32xf32, #tpu.memory_space<vmem>>, vector<8x32xf32>
      tpu.vector_store %arg9[%c0_148, %c0_149], %494 {strides = array<i32>} : memref<8x32xf32, #tpu.memory_space<vmem>>, vector<8x32xf32>,
    } else {
    }
    %c0 = arith.constant 0 : index
    %c0_1 = arith.constant 0 : index
    %3 = vector.load %arg4[%c0, %c0_1] : memref<1x32xf32, #tpu.memory_space<vmem>>, vector<1x32xf32>
    %4 = vector.shape_cast %3 : vector<1x32xf32> to vector<1x32xf32>
    %5 = vector.broadcast %4 : vector<1x32xf32> to vector<8x32xf32>
    %c0_2 = arith.constant 0 : index
    %c0_3 = arith.constant 0 : index
    %6 = vector.load %arg5[%c0_2, %c0_3] : memref<1x32xf32, #tpu.memory_space<vmem>>, vector<1x32xf32>
    %7 = vector.shape_cast %6 : vector<1x32xf32> to vector<1x32xf32>
    %8 = vector.broadcast %7 : vector<1x32xf32> to vector<8x32xf32>
    %c0_4 = arith.constant 0 : index
    %c0_5 = arith.constant 0 : index
    %9 = vector.load %arg9[%c0_4, %c0_5] : memref<8x32xf32, #tpu.memory_space<vmem>>, vector<8x32xf32>
    %c0_i32_6 = arith.constant 0 : i32
    %10 = arith.index_cast %c0_i32_6 : i32 to index
    %c0_7 = arith.constant 0 : index
    %c0_8 = arith.constant 0 : index
    %11 = vector.load %arg2[%10, %c0_7, %c0_8] : memref<8x8x96xf32, #tpu.memory_space<vmem>>, vector<1x8x96xf32>
    %12 = vector.shape_cast %11 : vector<1x8x96xf32> to vector<8x96xf32>
    %13 = arith.mulf %9, %9 : vector<8x32xf32>
    %cst = arith.constant dense<0.000000e+00> : vector<8xf32>
    %14 = vector.multi_reduction <add>, %13, %cst [1] : vector<8x32xf32> to vector<8xf32>
    %15 = vector.shape_cast %14 : vector<8xf32> to vector<8x1xf32>
    %16 = math.sqrt %15 : vector<8x1xf32>
    %cst_9 = arith.constant 9.99999993E-9 : f32
    %17 = vector.broadcast %cst_9 : f32 to vector<8x1xf32>
    %18 = arith.addf %16, %17 : vector<8x1xf32>
    %19 = vector.broadcast %18 : vector<8x1xf32> to vector<8x32xf32>
    %20 = arith.divf %9, %19 : vector<8x32xf32>
    %c0_10 = arith.constant 0 : index
    %c0_11 = arith.constant 0 : index
    %21 = vector.load %arg3[%c0_10, %c0_11] : memref<32x96xf32, #tpu.memory_space<vmem>>, vector<32x96xf32>
    %cst_12 = arith.constant dense<0.000000e+00> : vector<8x96xf32>
    %22 = tpu.matmul %20, %21, %cst_12 {dimension_numbers = #tpu.dot_dimension_numbers<[1], [0], [0], [1], [0, 0, 1, 1], [], []>} : vector<8x32xf32>, vector<32x96xf32>, vector<8x96xf32> -> vector<8x96xf32>
    %23 = arith.addf %12, %22 : vector<8x96xf32>
    %24 = vector.extract_strided_slice %23 {offsets = [0, 0], sizes = [8, 32], strides = [1, 1]} : vector<8x96xf32> to vector<8x32xf32>
    %25 = arith.negf %24 : vector<8x32xf32>
    %26 = math.exp %25 : vector<8x32xf32>
    %cst_13 = arith.constant 1.000000e+00 : f32
    %27 = vector.broadcast %cst_13 : f32 to vector<8x32xf32>
    %28 = arith.addf %27, %26 : vector<8x32xf32>
    %29 = arith.divf %27, %28 : vector<8x32xf32>
    %30 = vector.extract_strided_slice %23 {offsets = [0, 32], sizes = [8, 32], strides = [1, 1]} : vector<8x96xf32> to vector<8x32xf32>
    %31 = arith.negf %30 : vector<8x32xf32>
    %32 = math.exp %31 : vector<8x32xf32>
    %cst_14 = arith.constant 1.000000e+00 : f32
    %33 = vector.broadcast %cst_14 : f32 to vector<8x32xf32>
    %34 = arith.addf %33, %32 : vector<8x32xf32>
    %35 = arith.divf %33, %34 : vector<8x32xf32>
    %36 = vector.extract_strided_slice %23 {offsets = [0, 64], sizes = [8, 32], strides = [1, 1]} : vector<8x96xf32> to vector<8x32xf32>
    %37 = math.tanh %36 : vector<8x32xf32>
    %38 = arith.mulf %35, %20 : vector<8x32xf32>
    %39 = arith.mulf %29, %37 : vector<8x32xf32>
    %40 = arith.addf %38, %39 : vector<8x32xf32>
    %cst_15 = arith.constant dense<0.000000e+00> : vector<8xf32>
    %41 = vector.multi_reduction <add>, %40, %cst_15 [1] : vector<8x32xf32> to vector<8xf32>
    %42 = vector.shape_cast %41 : vector<8xf32> to vector<8x1xf32>
    %cst_16 = arith.constant 3.200000e+01 : f32
    %43 = vector.broadcast %cst_16 : f32 to vector<8x1xf32>
    %44 = arith.divf %42, %43 : vector<8x1xf32>
    %45 = vector.broadcast %44 : vector<8x1xf32> to vector<8x32xf32>
    %46 = arith.subf %40, %45 : vector<8x32xf32>
    %47 = arith.mulf %46, %46 : vector<8x32xf32>
    %cst_17 = arith.constant dense<0.000000e+00> : vector<8xf32>
    %48 = vector.multi_reduction <add>, %47, %cst_17 [1] : vector<8x32xf32> to vector<8xf32>
    %49 = vector.shape_cast %48 : vector<8xf32> to vector<8x1xf32>
    %cst_18 = arith.constant 3.200000e+01 : f32
    %50 = vector.broadcast %cst_18 : f32 to vector<8x1xf32>
    %51 = arith.divf %49, %50 : vector<8x1xf32>
    %cst_19 = arith.constant 9.99999974E-6 : f32
    %52 = vector.broadcast %cst_19 : f32 to vector<8x1xf32>
    %53 = arith.addf %51, %52 : vector<8x1xf32>
    %54 = math.rsqrt %53 : vector<8x1xf32>
    %55 = vector.broadcast %54 : vector<8x1xf32> to vector<8x32xf32>
    %56 = arith.mulf %46, %55 : vector<8x32xf32>
    %57 = arith.mulf %54, %54 : vector<8x1xf32>
    %58 = arith.mulf %51, %57 : vector<8x1xf32>
    %cst_20 = arith.constant 9.99999974E-6 : f32
    %59 = vector.broadcast %cst_20 : f32 to vector<8x1xf32>
    %60 = arith.addf %58, %59 : vector<8x1xf32>
    %61 = math.rsqrt %60 : vector<8x1xf32>
    %62 = vector.broadcast %61 : vector<8x1xf32> to vector<8x32xf32>
    %63 = arith.mulf %56, %62 : vector<8x32xf32>
    %64 = arith.mulf %63, %5 : vector<8x32xf32>
    %65 = arith.addf %64, %8 : vector<8x32xf32>
    %66 = arith.index_cast %c0_i32_6 : i32 to index
    %c0_21 = arith.constant 0 : index
    %c0_22 = arith.constant 0 : index
    %67 = vector.load %arg7[%66, %c0_21, %c0_22] : memref<8x8x32xf32, #tpu.memory_space<vmem>>, vector<1x8x32xf32>
    %68 = vector.shape_cast %67 : vector<1x8x32xf32> to vector<8x32xf32>
    %69 = vector.shape_cast %65 : vector<8x32xf32> to vector<1x8x32xf32>
    tpu.vector_store %arg7[%66, %c0_21, %c0_22], %69 {strides = array<i32>} : memref<8x8x32xf32, #tpu.memory_space<vmem>>, vector<1x8x32xf32>,
    %c1_i32 = arith.constant 1 : i32
    %70 = arith.index_cast %c1_i32 : i32 to index
    %c0_23 = arith.constant 0 : index
    %c0_24 = arith.constant 0 : index
    %71 = vector.load %arg2[%70, %c0_23, %c0_24] : memref<8x8x96xf32, #tpu.memory_space<vmem>>, vector<1x8x96xf32>
    %72 = vector.shape_cast %71 : vector<1x8x96xf32> to vector<8x96xf32>
    %73 = arith.mulf %56, %56 : vector<8x32xf32>
    %cst_25 = arith.constant dense<0.000000e+00> : vector<8xf32>
    %74 = vector.multi_reduction <add>, %73, %cst_25 [1] : vector<8x32xf32> to vector<8xf32>
    %75 = vector.shape_cast %74 : vector<8xf32> to vector<8x1xf32>
    %76 = math.sqrt %75 : vector<8x1xf32>
    %cst_26 = arith.constant 9.99999993E-9 : f32
    %77 = vector.broadcast %cst_26 : f32 to vector<8x1xf32>
    %78 = arith.addf %76, %77 : vector<8x1xf32>
    %79 = vector.broadcast %78 : vector<8x1xf32> to vector<8x32xf32>
    %80 = arith.divf %56, %79 : vector<8x32xf32>
    %c0_27 = arith.constant 0 : index
    %c0_28 = arith.constant 0 : index
    %81 = vector.load %arg3[%c0_27, %c0_28] : memref<32x96xf32, #tpu.memory_space<vmem>>, vector<32x96xf32>
    %cst_29 = arith.constant dense<0.000000e+00> : vector<8x96xf32>
    %82 = tpu.matmul %80, %81, %cst_29 {dimension_numbers = #tpu.dot_dimension_numbers<[1], [0], [0], [1], [0, 0, 1, 1], [], []>} : vector<8x32xf32>, vector<32x96xf32>, vector<8x96xf32> -> vector<8x96xf32>
    %83 = arith.addf %72, %82 : vector<8x96xf32>
    %84 = vector.extract_strided_slice %83 {offsets = [0, 0], sizes = [8, 32], strides = [1, 1]} : vector<8x96xf32> to vector<8x32xf32>
    %85 = arith.negf %84 : vector<8x32xf32>
    %86 = math.exp %85 : vector<8x32xf32>
    %cst_30 = arith.constant 1.000000e+00 : f32
    %87 = vector.broadcast %cst_30 : f32 to vector<8x32xf32>
    %88 = arith.addf %87, %86 : vector<8x32xf32>
    %89 = arith.divf %87, %88 : vector<8x32xf32>
    %90 = vector.extract_strided_slice %83 {offsets = [0, 32], sizes = [8, 32], strides = [1, 1]} : vector<8x96xf32> to vector<8x32xf32>
    %91 = arith.negf %90 : vector<8x32xf32>
    %92 = math.exp %91 : vector<8x32xf32>
    %cst_31 = arith.constant 1.000000e+00 : f32
    %93 = vector.broadcast %cst_31 : f32 to vector<8x32xf32>
    %94 = arith.addf %93, %92 : vector<8x32xf32>
    %95 = arith.divf %93, %94 : vector<8x32xf32>
    %96 = vector.extract_strided_slice %83 {offsets = [0, 64], sizes = [8, 32], strides = [1, 1]} : vector<8x96xf32> to vector<8x32xf32>
    %97 = math.tanh %96 : vector<8x32xf32>
    %98 = arith.mulf %95, %80 : vector<8x32xf32>
    %99 = arith.mulf %89, %97 : vector<8x32xf32>
    %100 = arith.addf %98, %99 : vector<8x32xf32>
    %cst_32 = arith.constant dense<0.000000e+00> : vector<8xf32>
    %101 = vector.multi_reduction <add>, %100, %cst_32 [1] : vector<8x32xf32> to vector<8xf32>
    %102 = vector.shape_cast %101 : vector<8xf32> to vector<8x1xf32>
    %cst_33 = arith.constant 3.200000e+01 : f32
    %103 = vector.broadcast %cst_33 : f32 to vector<8x1xf32>
    %104 = arith.divf %102, %103 : vector<8x1xf32>
    %105 = vector.broadcast %104 : vector<8x1xf32> to vector<8x32xf32>
    %106 = arith.subf %100, %105 : vector<8x32xf32>
    %107 = arith.mulf %106, %106 : vector<8x32xf32>
    %cst_34 = arith.constant dense<0.000000e+00> : vector<8xf32>
    %108 = vector.multi_reduction <add>, %107, %cst_34 [1] : vector<8x32xf32> to vector<8xf32>
    %109 = vector.shape_cast %108 : vector<8xf32> to vector<8x1xf32>
    %cst_35 = arith.constant 3.200000e+01 : f32
    %110 = vector.broadcast %cst_35 : f32 to vector<8x1xf32>
    %111 = arith.divf %109, %110 : vector<8x1xf32>
    %cst_36 = arith.constant 9.99999974E-6 : f32
    %112 = vector.broadcast %cst_36 : f32 to vector<8x1xf32>
    %113 = arith.addf %111, %112 : vector<8x1xf32>
    %114 = math.rsqrt %113 : vector<8x1xf32>
    %115 = vector.broadcast %114 : vector<8x1xf32> to vector<8x32xf32>
    %116 = arith.mulf %106, %115 : vector<8x32xf32>
    %117 = arith.mulf %114, %114 : vector<8x1xf32>
    %118 = arith.mulf %111, %117 : vector<8x1xf32>
    %cst_37 = arith.constant 9.99999974E-6 : f32
    %119 = vector.broadcast %cst_37 : f32 to vector<8x1xf32>
    %120 = arith.addf %118, %119 : vector<8x1xf32>
    %121 = math.rsqrt %120 : vector<8x1xf32>
    %122 = vector.broadcast %121 : vector<8x1xf32> to vector<8x32xf32>
    %123 = arith.mulf %116, %122 : vector<8x32xf32>
    %124 = arith.mulf %123, %5 : vector<8x32xf32>
    %125 = arith.addf %124, %8 : vector<8x32xf32>
    %126 = arith.index_cast %c1_i32 : i32 to index
    %c0_38 = arith.constant 0 : index
    %c0_39 = arith.constant 0 : index
    %127 = vector.load %arg7[%126, %c0_38, %c0_39] : memref<8x8x32xf32, #tpu.memory_space<vmem>>, vector<1x8x32xf32>
    %128 = vector.shape_cast %127 : vector<1x8x32xf32> to vector<8x32xf32>
    %129 = vector.shape_cast %125 : vector<8x32xf32> to vector<1x8x32xf32>
    tpu.vector_store %arg7[%126, %c0_38, %c0_39], %129 {strides = array<i32>} : memref<8x8x32xf32, #tpu.memory_space<vmem>>, vector<1x8x32xf32>,
    %c2_i32 = arith.constant 2 : i32
    %130 = arith.index_cast %c2_i32 : i32 to index
    %c0_40 = arith.constant 0 : index
    %c0_41 = arith.constant 0 : index
    %131 = vector.load %arg2[%130, %c0_40, %c0_41] : memref<8x8x96xf32, #tpu.memory_space<vmem>>, vector<1x8x96xf32>
    %132 = vector.shape_cast %131 : vector<1x8x96xf32> to vector<8x96xf32>
    %133 = arith.mulf %116, %116 : vector<8x32xf32>
    %cst_42 = arith.constant dense<0.000000e+00> : vector<8xf32>
    %134 = vector.multi_reduction <add>, %133, %cst_42 [1] : vector<8x32xf32> to vector<8xf32>
    %135 = vector.shape_cast %134 : vector<8xf32> to vector<8x1xf32>
    %136 = math.sqrt %135 : vector<8x1xf32>
    %cst_43 = arith.constant 9.99999993E-9 : f32
    %137 = vector.broadcast %cst_43 : f32 to vector<8x1xf32>
    %138 = arith.addf %136, %137 : vector<8x1xf32>
    %139 = vector.broadcast %138 : vector<8x1xf32> to vector<8x32xf32>
    %140 = arith.divf %116, %139 : vector<8x32xf32>
    %c0_44 = arith.constant 0 : index
    %c0_45 = arith.constant 0 : index
    %141 = vector.load %arg3[%c0_44, %c0_45] : memref<32x96xf32, #tpu.memory_space<vmem>>, vector<32x96xf32>
    %cst_46 = arith.constant dense<0.000000e+00> : vector<8x96xf32>
    %142 = tpu.matmul %140, %141, %cst_46 {dimension_numbers = #tpu.dot_dimension_numbers<[1], [0], [0], [1], [0, 0, 1, 1], [], []>} : vector<8x32xf32>, vector<32x96xf32>, vector<8x96xf32> -> vector<8x96xf32>
    %143 = arith.addf %132, %142 : vector<8x96xf32>
    %144 = vector.extract_strided_slice %143 {offsets = [0, 0], sizes = [8, 32], strides = [1, 1]} : vector<8x96xf32> to vector<8x32xf32>
    %145 = arith.negf %144 : vector<8x32xf32>
    %146 = math.exp %145 : vector<8x32xf32>
    %cst_47 = arith.constant 1.000000e+00 : f32
    %147 = vector.broadcast %cst_47 : f32 to vector<8x32xf32>
    %148 = arith.addf %147, %146 : vector<8x32xf32>
    %149 = arith.divf %147, %148 : vector<8x32xf32>
    %150 = vector.extract_strided_slice %143 {offsets = [0, 32], sizes = [8, 32], strides = [1, 1]} : vector<8x96xf32> to vector<8x32xf32>
    %151 = arith.negf %150 : vector<8x32xf32>
    %152 = math.exp %151 : vector<8x32xf32>
    %cst_48 = arith.constant 1.000000e+00 : f32
    %153 = vector.broadcast %cst_48 : f32 to vector<8x32xf32>
    %154 = arith.addf %153, %152 : vector<8x32xf32>
    %155 = arith.divf %153, %154 : vector<8x32xf32>
    %156 = vector.extract_strided_slice %143 {offsets = [0, 64], sizes = [8, 32], strides = [1, 1]} : vector<8x96xf32> to vector<8x32xf32>
    %157 = math.tanh %156 : vector<8x32xf32>
    %158 = arith.mulf %155, %140 : vector<8x32xf32>
    %159 = arith.mulf %149, %157 : vector<8x32xf32>
    %160 = arith.addf %158, %159 : vector<8x32xf32>
    %cst_49 = arith.constant dense<0.000000e+00> : vector<8xf32>
    %161 = vector.multi_reduction <add>, %160, %cst_49 [1] : vector<8x32xf32> to vector<8xf32>
    %162 = vector.shape_cast %161 : vector<8xf32> to vector<8x1xf32>
    %cst_50 = arith.constant 3.200000e+01 : f32
    %163 = vector.broadcast %cst_50 : f32 to vector<8x1xf32>
    %164 = arith.divf %162, %163 : vector<8x1xf32>
    %165 = vector.broadcast %164 : vector<8x1xf32> to vector<8x32xf32>
    %166 = arith.subf %160, %165 : vector<8x32xf32>
    %167 = arith.mulf %166, %166 : vector<8x32xf32>
    %cst_51 = arith.constant dense<0.000000e+00> : vector<8xf32>
    %168 = vector.multi_reduction <add>, %167, %cst_51 [1] : vector<8x32xf32> to vector<8xf32>
    %169 = vector.shape_cast %168 : vector<8xf32> to vector<8x1xf32>
    %cst_52 = arith.constant 3.200000e+01 : f32
    %170 = vector.broadcast %cst_52 : f32 to vector<8x1xf32>
    %171 = arith.divf %169, %170 : vector<8x1xf32>
    %cst_53 = arith.constant 9.99999974E-6 : f32
    %172 = vector.broadcast %cst_53 : f32 to vector<8x1xf32>
    %173 = arith.addf %171, %172 : vector<8x1xf32>
    %174 = math.rsqrt %173 : vector<8x1xf32>
    %175 = vector.broadcast %174 : vector<8x1xf32> to vector<8x32xf32>
    %176 = arith.mulf %166, %175 : vector<8x32xf32>
    %177 = arith.mulf %174, %174 : vector<8x1xf32>
    %178 = arith.mulf %171, %177 : vector<8x1xf32>
    %cst_54 = arith.constant 9.99999974E-6 : f32
    %179 = vector.broadcast %cst_54 : f32 to vector<8x1xf32>
    %180 = arith.addf %178, %179 : vector<8x1xf32>
    %181 = math.rsqrt %180 : vector<8x1xf32>
    %182 = vector.broadcast %181 : vector<8x1xf32> to vector<8x32xf32>
    %183 = arith.mulf %176, %182 : vector<8x32xf32>
    %184 = arith.mulf %183, %5 : vector<8x32xf32>
    %185 = arith.addf %184, %8 : vector<8x32xf32>
    %186 = arith.index_cast %c2_i32 : i32 to index
    %c0_55 = arith.constant 0 : index
    %c0_56 = arith.constant 0 : index
    %187 = vector.load %arg7[%186, %c0_55, %c0_56] : memref<8x8x32xf32, #tpu.memory_space<vmem>>, vector<1x8x32xf32>
    %188 = vector.shape_cast %187 : vector<1x8x32xf32> to vector<8x32xf32>
    %189 = vector.shape_cast %185 : vector<8x32xf32> to vector<1x8x32xf32>
    tpu.vector_store %arg7[%186, %c0_55, %c0_56], %189 {strides = array<i32>} : memref<8x8x32xf32, #tpu.memory_space<vmem>>, vector<1x8x32xf32>,
    %c3_i32 = arith.constant 3 : i32
    %190 = arith.index_cast %c3_i32 : i32 to index
    %c0_57 = arith.constant 0 : index
    %c0_58 = arith.constant 0 : index
    %191 = vector.load %arg2[%190, %c0_57, %c0_58] : memref<8x8x96xf32, #tpu.memory_space<vmem>>, vector<1x8x96xf32>
    %192 = vector.shape_cast %191 : vector<1x8x96xf32> to vector<8x96xf32>
    %193 = arith.mulf %176, %176 : vector<8x32xf32>
    %cst_59 = arith.constant dense<0.000000e+00> : vector<8xf32>
    %194 = vector.multi_reduction <add>, %193, %cst_59 [1] : vector<8x32xf32> to vector<8xf32>
    %195 = vector.shape_cast %194 : vector<8xf32> to vector<8x1xf32>
    %196 = math.sqrt %195 : vector<8x1xf32>
    %cst_60 = arith.constant 9.99999993E-9 : f32
    %197 = vector.broadcast %cst_60 : f32 to vector<8x1xf32>
    %198 = arith.addf %196, %197 : vector<8x1xf32>
    %199 = vector.broadcast %198 : vector<8x1xf32> to vector<8x32xf32>
    %200 = arith.divf %176, %199 : vector<8x32xf32>
    %c0_61 = arith.constant 0 : index
    %c0_62 = arith.constant 0 : index
    %201 = vector.load %arg3[%c0_61, %c0_62] : memref<32x96xf32, #tpu.memory_space<vmem>>, vector<32x96xf32>
    %cst_63 = arith.constant dense<0.000000e+00> : vector<8x96xf32>
    %202 = tpu.matmul %200, %201, %cst_63 {dimension_numbers = #tpu.dot_dimension_numbers<[1], [0], [0], [1], [0, 0, 1, 1], [], []>} : vector<8x32xf32>, vector<32x96xf32>, vector<8x96xf32> -> vector<8x96xf32>
    %203 = arith.addf %192, %202 : vector<8x96xf32>
    %204 = vector.extract_strided_slice %203 {offsets = [0, 0], sizes = [8, 32], strides = [1, 1]} : vector<8x96xf32> to vector<8x32xf32>
    %205 = arith.negf %204 : vector<8x32xf32>
    %206 = math.exp %205 : vector<8x32xf32>
    %cst_64 = arith.constant 1.000000e+00 : f32
    %207 = vector.broadcast %cst_64 : f32 to vector<8x32xf32>
    %208 = arith.addf %207, %206 : vector<8x32xf32>
    %209 = arith.divf %207, %208 : vector<8x32xf32>
    %210 = vector.extract_strided_slice %203 {offsets = [0, 32], sizes = [8, 32], strides = [1, 1]} : vector<8x96xf32> to vector<8x32xf32>
    %211 = arith.negf %210 : vector<8x32xf32>
    %212 = math.exp %211 : vector<8x32xf32>
    %cst_65 = arith.constant 1.000000e+00 : f32
    %213 = vector.broadcast %cst_65 : f32 to vector<8x32xf32>
    %214 = arith.addf %213, %212 : vector<8x32xf32>
    %215 = arith.divf %213, %214 : vector<8x32xf32>
    %216 = vector.extract_strided_slice %203 {offsets = [0, 64], sizes = [8, 32], strides = [1, 1]} : vector<8x96xf32> to vector<8x32xf32>
    %217 = math.tanh %216 : vector<8x32xf32>
    %218 = arith.mulf %215, %200 : vector<8x32xf32>
    %219 = arith.mulf %209, %217 : vector<8x32xf32>
    %220 = arith.addf %218, %219 : vector<8x32xf32>
    %cst_66 = arith.constant dense<0.000000e+00> : vector<8xf32>
    %221 = vector.multi_reduction <add>, %220, %cst_66 [1] : vector<8x32xf32> to vector<8xf32>
    %222 = vector.shape_cast %221 : vector<8xf32> to vector<8x1xf32>
    %cst_67 = arith.constant 3.200000e+01 : f32
    %223 = vector.broadcast %cst_67 : f32 to vector<8x1xf32>
    %224 = arith.divf %222, %223 : vector<8x1xf32>
    %225 = vector.broadcast %224 : vector<8x1xf32> to vector<8x32xf32>
    %226 = arith.subf %220, %225 : vector<8x32xf32>
    %227 = arith.mulf %226, %226 : vector<8x32xf32>
    %cst_68 = arith.constant dense<0.000000e+00> : vector<8xf32>
    %228 = vector.multi_reduction <add>, %227, %cst_68 [1] : vector<8x32xf32> to vector<8xf32>
    %229 = vector.shape_cast %228 : vector<8xf32> to vector<8x1xf32>
    %cst_69 = arith.constant 3.200000e+01 : f32
    %230 = vector.broadcast %cst_69 : f32 to vector<8x1xf32>
    %231 = arith.divf %229, %230 : vector<8x1xf32>
    %cst_70 = arith.constant 9.99999974E-6 : f32
    %232 = vector.broadcast %cst_70 : f32 to vector<8x1xf32>
    %233 = arith.addf %231, %232 : vector<8x1xf32>
    %234 = math.rsqrt %233 : vector<8x1xf32>
    %235 = vector.broadcast %234 : vector<8x1xf32> to vector<8x32xf32>
    %236 = arith.mulf %226, %235 : vector<8x32xf32>
    %237 = arith.mulf %234, %234 : vector<8x1xf32>
    %238 = arith.mulf %231, %237 : vector<8x1xf32>
    %cst_71 = arith.constant 9.99999974E-6 : f32
    %239 = vector.broadcast %cst_71 : f32 to vector<8x1xf32>
    %240 = arith.addf %238, %239 : vector<8x1xf32>
    %241 = math.rsqrt %240 : vector<8x1xf32>
    %242 = vector.broadcast %241 : vector<8x1xf32> to vector<8x32xf32>
    %243 = arith.mulf %236, %242 : vector<8x32xf32>
    %244 = arith.mulf %243, %5 : vector<8x32xf32>
    %245 = arith.addf %244, %8 : vector<8x32xf32>
    %246 = arith.index_cast %c3_i32 : i32 to index
    %c0_72 = arith.constant 0 : index
    %c0_73 = arith.constant 0 : index
    %247 = vector.load %arg7[%246, %c0_72, %c0_73] : memref<8x8x32xf32, #tpu.memory_space<vmem>>, vector<1x8x32xf32>
    %248 = vector.shape_cast %247 : vector<1x8x32xf32> to vector<8x32xf32>
    %249 = vector.shape_cast %245 : vector<8x32xf32> to vector<1x8x32xf32>
    tpu.vector_store %arg7[%246, %c0_72, %c0_73], %249 {strides = array<i32>} : memref<8x8x32xf32, #tpu.memory_space<vmem>>, vector<1x8x32xf32>,
    %c4_i32 = arith.constant 4 : i32
    %250 = arith.index_cast %c4_i32 : i32 to index
    %c0_74 = arith.constant 0 : index
    %c0_75 = arith.constant 0 : index
    %251 = vector.load %arg2[%250, %c0_74, %c0_75] : memref<8x8x96xf32, #tpu.memory_space<vmem>>, vector<1x8x96xf32>
    %252 = vector.shape_cast %251 : vector<1x8x96xf32> to vector<8x96xf32>
    %253 = arith.mulf %236, %236 : vector<8x32xf32>
    %cst_76 = arith.constant dense<0.000000e+00> : vector<8xf32>
    %254 = vector.multi_reduction <add>, %253, %cst_76 [1] : vector<8x32xf32> to vector<8xf32>
    %255 = vector.shape_cast %254 : vector<8xf32> to vector<8x1xf32>
    %256 = math.sqrt %255 : vector<8x1xf32>
    %cst_77 = arith.constant 9.99999993E-9 : f32
    %257 = vector.broadcast %cst_77 : f32 to vector<8x1xf32>
    %258 = arith.addf %256, %257 : vector<8x1xf32>
    %259 = vector.broadcast %258 : vector<8x1xf32> to vector<8x32xf32>
    %260 = arith.divf %236, %259 : vector<8x32xf32>
    %c0_78 = arith.constant 0 : index
    %c0_79 = arith.constant 0 : index
    %261 = vector.load %arg3[%c0_78, %c0_79] : memref<32x96xf32, #tpu.memory_space<vmem>>, vector<32x96xf32>
    %cst_80 = arith.constant dense<0.000000e+00> : vector<8x96xf32>
    %262 = tpu.matmul %260, %261, %cst_80 {dimension_numbers = #tpu.dot_dimension_numbers<[1], [0], [0], [1], [0, 0, 1, 1], [], []>} : vector<8x32xf32>, vector<32x96xf32>, vector<8x96xf32> -> vector<8x96xf32>
    %263 = arith.addf %252, %262 : vector<8x96xf32>
    %264 = vector.extract_strided_slice %263 {offsets = [0, 0], sizes = [8, 32], strides = [1, 1]} : vector<8x96xf32> to vector<8x32xf32>
    %265 = arith.negf %264 : vector<8x32xf32>
    %266 = math.exp %265 : vector<8x32xf32>
    %cst_81 = arith.constant 1.000000e+00 : f32
    %267 = vector.broadcast %cst_81 : f32 to vector<8x32xf32>
    %268 = arith.addf %267, %266 : vector<8x32xf32>
    %269 = arith.divf %267, %268 : vector<8x32xf32>
    %270 = vector.extract_strided_slice %263 {offsets = [0, 32], sizes = [8, 32], strides = [1, 1]} : vector<8x96xf32> to vector<8x32xf32>
    %271 = arith.negf %270 : vector<8x32xf32>
    %272 = math.exp %271 : vector<8x32xf32>
    %cst_82 = arith.constant 1.000000e+00 : f32
    %273 = vector.broadcast %cst_82 : f32 to vector<8x32xf32>
    %274 = arith.addf %273, %272 : vector<8x32xf32>
    %275 = arith.divf %273, %274 : vector<8x32xf32>
    %276 = vector.extract_strided_slice %263 {offsets = [0, 64], sizes = [8, 32], strides = [1, 1]} : vector<8x96xf32> to vector<8x32xf32>
    %277 = math.tanh %276 : vector<8x32xf32>
    %278 = arith.mulf %275, %260 : vector<8x32xf32>
    %279 = arith.mulf %269, %277 : vector<8x32xf32>
    %280 = arith.addf %278, %279 : vector<8x32xf32>
    %cst_83 = arith.constant dense<0.000000e+00> : vector<8xf32>
    %281 = vector.multi_reduction <add>, %280, %cst_83 [1] : vector<8x32xf32> to vector<8xf32>
    %282 = vector.shape_cast %281 : vector<8xf32> to vector<8x1xf32>
    %cst_84 = arith.constant 3.200000e+01 : f32
    %283 = vector.broadcast %cst_84 : f32 to vector<8x1xf32>
    %284 = arith.divf %282, %283 : vector<8x1xf32>
    %285 = vector.broadcast %284 : vector<8x1xf32> to vector<8x32xf32>
    %286 = arith.subf %280, %285 : vector<8x32xf32>
    %287 = arith.mulf %286, %286 : vector<8x32xf32>
    %cst_85 = arith.constant dense<0.000000e+00> : vector<8xf32>
    %288 = vector.multi_reduction <add>, %287, %cst_85 [1] : vector<8x32xf32> to vector<8xf32>
    %289 = vector.shape_cast %288 : vector<8xf32> to vector<8x1xf32>
    %cst_86 = arith.constant 3.200000e+01 : f32
    %290 = vector.broadcast %cst_86 : f32 to vector<8x1xf32>
    %291 = arith.divf %289, %290 : vector<8x1xf32>
    %cst_87 = arith.constant 9.99999974E-6 : f32
    %292 = vector.broadcast %cst_87 : f32 to vector<8x1xf32>
    %293 = arith.addf %291, %292 : vector<8x1xf32>
    %294 = math.rsqrt %293 : vector<8x1xf32>
    %295 = vector.broadcast %294 : vector<8x1xf32> to vector<8x32xf32>
    %296 = arith.mulf %286, %295 : vector<8x32xf32>
    %297 = arith.mulf %294, %294 : vector<8x1xf32>
    %298 = arith.mulf %291, %297 : vector<8x1xf32>
    %cst_88 = arith.constant 9.99999974E-6 : f32
    %299 = vector.broadcast %cst_88 : f32 to vector<8x1xf32>
    %300 = arith.addf %298, %299 : vector<8x1xf32>
    %301 = math.rsqrt %300 : vector<8x1xf32>
    %302 = vector.broadcast %301 : vector<8x1xf32> to vector<8x32xf32>
    %303 = arith.mulf %296, %302 : vector<8x32xf32>
    %304 = arith.mulf %303, %5 : vector<8x32xf32>
    %305 = arith.addf %304, %8 : vector<8x32xf32>
    %306 = arith.index_cast %c4_i32 : i32 to index
    %c0_89 = arith.constant 0 : index
    %c0_90 = arith.constant 0 : index
    %307 = vector.load %arg7[%306, %c0_89, %c0_90] : memref<8x8x32xf32, #tpu.memory_space<vmem>>, vector<1x8x32xf32>
    %308 = vector.shape_cast %307 : vector<1x8x32xf32> to vector<8x32xf32>
    %309 = vector.shape_cast %305 : vector<8x32xf32> to vector<1x8x32xf32>
    tpu.vector_store %arg7[%306, %c0_89, %c0_90], %309 {strides = array<i32>} : memref<8x8x32xf32, #tpu.memory_space<vmem>>, vector<1x8x32xf32>,
    %c5_i32 = arith.constant 5 : i32
    %310 = arith.index_cast %c5_i32 : i32 to index
    %c0_91 = arith.constant 0 : index
    %c0_92 = arith.constant 0 : index
    %311 = vector.load %arg2[%310, %c0_91, %c0_92] : memref<8x8x96xf32, #tpu.memory_space<vmem>>, vector<1x8x96xf32>
    %312 = vector.shape_cast %311 : vector<1x8x96xf32> to vector<8x96xf32>
    %313 = arith.mulf %296, %296 : vector<8x32xf32>
    %cst_93 = arith.constant dense<0.000000e+00> : vector<8xf32>
    %314 = vector.multi_reduction <add>, %313, %cst_93 [1] : vector<8x32xf32> to vector<8xf32>
    %315 = vector.shape_cast %314 : vector<8xf32> to vector<8x1xf32>
    %316 = math.sqrt %315 : vector<8x1xf32>
    %cst_94 = arith.constant 9.99999993E-9 : f32
    %317 = vector.broadcast %cst_94 : f32 to vector<8x1xf32>
    %318 = arith.addf %316, %317 : vector<8x1xf32>
    %319 = vector.broadcast %318 : vector<8x1xf32> to vector<8x32xf32>
    %320 = arith.divf %296, %319 : vector<8x32xf32>
    %c0_95 = arith.constant 0 : index
    %c0_96 = arith.constant 0 : index
    %321 = vector.load %arg3[%c0_95, %c0_96] : memref<32x96xf32, #tpu.memory_space<vmem>>, vector<32x96xf32>
    %cst_97 = arith.constant dense<0.000000e+00> : vector<8x96xf32>
    %322 = tpu.matmul %320, %321, %cst_97 {dimension_numbers = #tpu.dot_dimension_numbers<[1], [0], [0], [1], [0, 0, 1, 1], [], []>} : vector<8x32xf32>, vector<32x96xf32>, vector<8x96xf32> -> vector<8x96xf32>
    %323 = arith.addf %312, %322 : vector<8x96xf32>
    %324 = vector.extract_strided_slice %323 {offsets = [0, 0], sizes = [8, 32], strides = [1, 1]} : vector<8x96xf32> to vector<8x32xf32>
    %325 = arith.negf %324 : vector<8x32xf32>
    %326 = math.exp %325 : vector<8x32xf32>
    %cst_98 = arith.constant 1.000000e+00 : f32
    %327 = vector.broadcast %cst_98 : f32 to vector<8x32xf32>
    %328 = arith.addf %327, %326 : vector<8x32xf32>
    %329 = arith.divf %327, %328 : vector<8x32xf32>
    %330 = vector.extract_strided_slice %323 {offsets = [0, 32], sizes = [8, 32], strides = [1, 1]} : vector<8x96xf32> to vector<8x32xf32>
    %331 = arith.negf %330 : vector<8x32xf32>
    %332 = math.exp %331 : vector<8x32xf32>
    %cst_99 = arith.constant 1.000000e+00 : f32
    %333 = vector.broadcast %cst_99 : f32 to vector<8x32xf32>
    %334 = arith.addf %333, %332 : vector<8x32xf32>
    %335 = arith.divf %333, %334 : vector<8x32xf32>
    %336 = vector.extract_strided_slice %323 {offsets = [0, 64], sizes = [8, 32], strides = [1, 1]} : vector<8x96xf32> to vector<8x32xf32>
    %337 = math.tanh %336 : vector<8x32xf32>
    %338 = arith.mulf %335, %320 : vector<8x32xf32>
    %339 = arith.mulf %329, %337 : vector<8x32xf32>
    %340 = arith.addf %338, %339 : vector<8x32xf32>
    %cst_100 = arith.constant dense<0.000000e+00> : vector<8xf32>
    %341 = vector.multi_reduction <add>, %340, %cst_100 [1] : vector<8x32xf32> to vector<8xf32>
    %342 = vector.shape_cast %341 : vector<8xf32> to vector<8x1xf32>
    %cst_101 = arith.constant 3.200000e+01 : f32
    %343 = vector.broadcast %cst_101 : f32 to vector<8x1xf32>
    %344 = arith.divf %342, %343 : vector<8x1xf32>
    %345 = vector.broadcast %344 : vector<8x1xf32> to vector<8x32xf32>
    %346 = arith.subf %340, %345 : vector<8x32xf32>
    %347 = arith.mulf %346, %346 : vector<8x32xf32>
    %cst_102 = arith.constant dense<0.000000e+00> : vector<8xf32>
    %348 = vector.multi_reduction <add>, %347, %cst_102 [1] : vector<8x32xf32> to vector<8xf32>
    %349 = vector.shape_cast %348 : vector<8xf32> to vector<8x1xf32>
    %cst_103 = arith.constant 3.200000e+01 : f32
    %350 = vector.broadcast %cst_103 : f32 to vector<8x1xf32>
    %351 = arith.divf %349, %350 : vector<8x1xf32>
    %cst_104 = arith.constant 9.99999974E-6 : f32
    %352 = vector.broadcast %cst_104 : f32 to vector<8x1xf32>
    %353 = arith.addf %351, %352 : vector<8x1xf32>
    %354 = math.rsqrt %353 : vector<8x1xf32>
    %355 = vector.broadcast %354 : vector<8x1xf32> to vector<8x32xf32>
    %356 = arith.mulf %346, %355 : vector<8x32xf32>
    %357 = arith.mulf %354, %354 : vector<8x1xf32>
    %358 = arith.mulf %351, %357 : vector<8x1xf32>
    %cst_105 = arith.constant 9.99999974E-6 : f32
    %359 = vector.broadcast %cst_105 : f32 to vector<8x1xf32>
    %360 = arith.addf %358, %359 : vector<8x1xf32>
    %361 = math.rsqrt %360 : vector<8x1xf32>
    %362 = vector.broadcast %361 : vector<8x1xf32> to vector<8x32xf32>
    %363 = arith.mulf %356, %362 : vector<8x32xf32>
    %364 = arith.mulf %363, %5 : vector<8x32xf32>
    %365 = arith.addf %364, %8 : vector<8x32xf32>
    %366 = arith.index_cast %c5_i32 : i32 to index
    %c0_106 = arith.constant 0 : index
    %c0_107 = arith.constant 0 : index
    %367 = vector.load %arg7[%366, %c0_106, %c0_107] : memref<8x8x32xf32, #tpu.memory_space<vmem>>, vector<1x8x32xf32>
    %368 = vector.shape_cast %367 : vector<1x8x32xf32> to vector<8x32xf32>
    %369 = vector.shape_cast %365 : vector<8x32xf32> to vector<1x8x32xf32>
    tpu.vector_store %arg7[%366, %c0_106, %c0_107], %369 {strides = array<i32>} : memref<8x8x32xf32, #tpu.memory_space<vmem>>, vector<1x8x32xf32>,
    %c6_i32 = arith.constant 6 : i32
    %370 = arith.index_cast %c6_i32 : i32 to index
    %c0_108 = arith.constant 0 : index
    %c0_109 = arith.constant 0 : index
    %371 = vector.load %arg2[%370, %c0_108, %c0_109] : memref<8x8x96xf32, #tpu.memory_space<vmem>>, vector<1x8x96xf32>
    %372 = vector.shape_cast %371 : vector<1x8x96xf32> to vector<8x96xf32>
    %373 = arith.mulf %356, %356 : vector<8x32xf32>
    %cst_110 = arith.constant dense<0.000000e+00> : vector<8xf32>
    %374 = vector.multi_reduction <add>, %373, %cst_110 [1] : vector<8x32xf32> to vector<8xf32>
    %375 = vector.shape_cast %374 : vector<8xf32> to vector<8x1xf32>
    %376 = math.sqrt %375 : vector<8x1xf32>
    %cst_111 = arith.constant 9.99999993E-9 : f32
    %377 = vector.broadcast %cst_111 : f32 to vector<8x1xf32>
    %378 = arith.addf %376, %377 : vector<8x1xf32>
    %379 = vector.broadcast %378 : vector<8x1xf32> to vector<8x32xf32>
    %380 = arith.divf %356, %379 : vector<8x32xf32>
    %c0_112 = arith.constant 0 : index
    %c0_113 = arith.constant 0 : index
    %381 = vector.load %arg3[%c0_112, %c0_113] : memref<32x96xf32, #tpu.memory_space<vmem>>, vector<32x96xf32>
    %cst_114 = arith.constant dense<0.000000e+00> : vector<8x96xf32>
    %382 = tpu.matmul %380, %381, %cst_114 {dimension_numbers = #tpu.dot_dimension_numbers<[1], [0], [0], [1], [0, 0, 1, 1], [], []>} : vector<8x32xf32>, vector<32x96xf32>, vector<8x96xf32> -> vector<8x96xf32>
    %383 = arith.addf %372, %382 : vector<8x96xf32>
    %384 = vector.extract_strided_slice %383 {offsets = [0, 0], sizes = [8, 32], strides = [1, 1]} : vector<8x96xf32> to vector<8x32xf32>
    %385 = arith.negf %384 : vector<8x32xf32>
    %386 = math.exp %385 : vector<8x32xf32>
    %cst_115 = arith.constant 1.000000e+00 : f32
    %387 = vector.broadcast %cst_115 : f32 to vector<8x32xf32>
    %388 = arith.addf %387, %386 : vector<8x32xf32>
    %389 = arith.divf %387, %388 : vector<8x32xf32>
    %390 = vector.extract_strided_slice %383 {offsets = [0, 32], sizes = [8, 32], strides = [1, 1]} : vector<8x96xf32> to vector<8x32xf32>
    %391 = arith.negf %390 : vector<8x32xf32>
    %392 = math.exp %391 : vector<8x32xf32>
    %cst_116 = arith.constant 1.000000e+00 : f32
    %393 = vector.broadcast %cst_116 : f32 to vector<8x32xf32>
    %394 = arith.addf %393, %392 : vector<8x32xf32>
    %395 = arith.divf %393, %394 : vector<8x32xf32>
    %396 = vector.extract_strided_slice %383 {offsets = [0, 64], sizes = [8, 32], strides = [1, 1]} : vector<8x96xf32> to vector<8x32xf32>
    %397 = math.tanh %396 : vector<8x32xf32>
    %398 = arith.mulf %395, %380 : vector<8x32xf32>
    %399 = arith.mulf %389, %397 : vector<8x32xf32>
    %400 = arith.addf %398, %399 : vector<8x32xf32>
    %cst_117 = arith.constant dense<0.000000e+00> : vector<8xf32>
    %401 = vector.multi_reduction <add>, %400, %cst_117 [1] : vector<8x32xf32> to vector<8xf32>
    %402 = vector.shape_cast %401 : vector<8xf32> to vector<8x1xf32>
    %cst_118 = arith.constant 3.200000e+01 : f32
    %403 = vector.broadcast %cst_118 : f32 to vector<8x1xf32>
    %404 = arith.divf %402, %403 : vector<8x1xf32>
    %405 = vector.broadcast %404 : vector<8x1xf32> to vector<8x32xf32>
    %406 = arith.subf %400, %405 : vector<8x32xf32>
    %407 = arith.mulf %406, %406 : vector<8x32xf32>
    %cst_119 = arith.constant dense<0.000000e+00> : vector<8xf32>
    %408 = vector.multi_reduction <add>, %407, %cst_119 [1] : vector<8x32xf32> to vector<8xf32>
    %409 = vector.shape_cast %408 : vector<8xf32> to vector<8x1xf32>
    %cst_120 = arith.constant 3.200000e+01 : f32
    %410 = vector.broadcast %cst_120 : f32 to vector<8x1xf32>
    %411 = arith.divf %409, %410 : vector<8x1xf32>
    %cst_121 = arith.constant 9.99999974E-6 : f32
    %412 = vector.broadcast %cst_121 : f32 to vector<8x1xf32>
    %413 = arith.addf %411, %412 : vector<8x1xf32>
    %414 = math.rsqrt %413 : vector<8x1xf32>
    %415 = vector.broadcast %414 : vector<8x1xf32> to vector<8x32xf32>
    %416 = arith.mulf %406, %415 : vector<8x32xf32>
    %417 = arith.mulf %414, %414 : vector<8x1xf32>
    %418 = arith.mulf %411, %417 : vector<8x1xf32>
    %cst_122 = arith.constant 9.99999974E-6 : f32
    %419 = vector.broadcast %cst_122 : f32 to vector<8x1xf32>
    %420 = arith.addf %418, %419 : vector<8x1xf32>
    %421 = math.rsqrt %420 : vector<8x1xf32>
    %422 = vector.broadcast %421 : vector<8x1xf32> to vector<8x32xf32>
    %423 = arith.mulf %416, %422 : vector<8x32xf32>
    %424 = arith.mulf %423, %5 : vector<8x32xf32>
    %425 = arith.addf %424, %8 : vector<8x32xf32>
    %426 = arith.index_cast %c6_i32 : i32 to index
    %c0_123 = arith.constant 0 : index
    %c0_124 = arith.constant 0 : index
    %427 = vector.load %arg7[%426, %c0_123, %c0_124] : memref<8x8x32xf32, #tpu.memory_space<vmem>>, vector<1x8x32xf32>
    %428 = vector.shape_cast %427 : vector<1x8x32xf32> to vector<8x32xf32>
    %429 = vector.shape_cast %425 : vector<8x32xf32> to vector<1x8x32xf32>
    tpu.vector_store %arg7[%426, %c0_123, %c0_124], %429 {strides = array<i32>} : memref<8x8x32xf32, #tpu.memory_space<vmem>>, vector<1x8x32xf32>,
    %c7_i32 = arith.constant 7 : i32
    %430 = arith.index_cast %c7_i32 : i32 to index
    %c0_125 = arith.constant 0 : index
    %c0_126 = arith.constant 0 : index
    %431 = vector.load %arg2[%430, %c0_125, %c0_126] : memref<8x8x96xf32, #tpu.memory_space<vmem>>, vector<1x8x96xf32>
    %432 = vector.shape_cast %431 : vector<1x8x96xf32> to vector<8x96xf32>
    %433 = arith.mulf %416, %416 : vector<8x32xf32>
    %cst_127 = arith.constant dense<0.000000e+00> : vector<8xf32>
    %434 = vector.multi_reduction <add>, %433, %cst_127 [1] : vector<8x32xf32> to vector<8xf32>
    %435 = vector.shape_cast %434 : vector<8xf32> to vector<8x1xf32>
    %436 = math.sqrt %435 : vector<8x1xf32>
    %cst_128 = arith.constant 9.99999993E-9 : f32
    %437 = vector.broadcast %cst_128 : f32 to vector<8x1xf32>
    %438 = arith.addf %436, %437 : vector<8x1xf32>
    %439 = vector.broadcast %438 : vector<8x1xf32> to vector<8x32xf32>
    %440 = arith.divf %416, %439 : vector<8x32xf32>
    %c0_129 = arith.constant 0 : index
    %c0_130 = arith.constant 0 : index
    %441 = vector.load %arg3[%c0_129, %c0_130] : memref<32x96xf32, #tpu.memory_space<vmem>>, vector<32x96xf32>
    %cst_131 = arith.constant dense<0.000000e+00> : vector<8x96xf32>
    %442 = tpu.matmul %440, %441, %cst_131 {dimension_numbers = #tpu.dot_dimension_numbers<[1], [0], [0], [1], [0, 0, 1, 1], [], []>} : vector<8x32xf32>, vector<32x96xf32>, vector<8x96xf32> -> vector<8x96xf32>
    %443 = arith.addf %432, %442 : vector<8x96xf32>
    %444 = vector.extract_strided_slice %443 {offsets = [0, 0], sizes = [8, 32], strides = [1, 1]} : vector<8x96xf32> to vector<8x32xf32>
    %445 = arith.negf %444 : vector<8x32xf32>
    %446 = math.exp %445 : vector<8x32xf32>
    %cst_132 = arith.constant 1.000000e+00 : f32
    %447 = vector.broadcast %cst_132 : f32 to vector<8x32xf32>
    %448 = arith.addf %447, %446 : vector<8x32xf32>
    %449 = arith.divf %447, %448 : vector<8x32xf32>
    %450 = vector.extract_strided_slice %443 {offsets = [0, 32], sizes = [8, 32], strides = [1, 1]} : vector<8x96xf32> to vector<8x32xf32>
    %451 = arith.negf %450 : vector<8x32xf32>
    %452 = math.exp %451 : vector<8x32xf32>
    %cst_133 = arith.constant 1.000000e+00 : f32
    %453 = vector.broadcast %cst_133 : f32 to vector<8x32xf32>
    %454 = arith.addf %453, %452 : vector<8x32xf32>
    %455 = arith.divf %453, %454 : vector<8x32xf32>
    %456 = vector.extract_strided_slice %443 {offsets = [0, 64], sizes = [8, 32], strides = [1, 1]} : vector<8x96xf32> to vector<8x32xf32>
    %457 = math.tanh %456 : vector<8x32xf32>
    %458 = arith.mulf %455, %440 : vector<8x32xf32>
    %459 = arith.mulf %449, %457 : vector<8x32xf32>
    %460 = arith.addf %458, %459 : vector<8x32xf32>
    %cst_134 = arith.constant dense<0.000000e+00> : vector<8xf32>
    %461 = vector.multi_reduction <add>, %460, %cst_134 [1] : vector<8x32xf32> to vector<8xf32>
    %462 = vector.shape_cast %461 : vector<8xf32> to vector<8x1xf32>
    %cst_135 = arith.constant 3.200000e+01 : f32
    %463 = vector.broadcast %cst_135 : f32 to vector<8x1xf32>
    %464 = arith.divf %462, %463 : vector<8x1xf32>
    %465 = vector.broadcast %464 : vector<8x1xf32> to vector<8x32xf32>
    %466 = arith.subf %460, %465 : vector<8x32xf32>
    %467 = arith.mulf %466, %466 : vector<8x32xf32>
    %cst_136 = arith.constant dense<0.000000e+00> : vector<8xf32>
    %468 = vector.multi_reduction <add>, %467, %cst_136 [1] : vector<8x32xf32> to vector<8xf32>
    %469 = vector.shape_cast %468 : vector<8xf32> to vector<8x1xf32>
    %cst_137 = arith.constant 3.200000e+01 : f32
    %470 = vector.broadcast %cst_137 : f32 to vector<8x1xf32>
    %471 = arith.divf %469, %470 : vector<8x1xf32>
    %cst_138 = arith.constant 9.99999974E-6 : f32
    %472 = vector.broadcast %cst_138 : f32 to vector<8x1xf32>
    %473 = arith.addf %471, %472 : vector<8x1xf32>
    %474 = math.rsqrt %473 : vector<8x1xf32>
    %475 = vector.broadcast %474 : vector<8x1xf32> to vector<8x32xf32>
    %476 = arith.mulf %466, %475 : vector<8x32xf32>
    %477 = arith.mulf %474, %474 : vector<8x1xf32>
    %478 = arith.mulf %471, %477 : vector<8x1xf32>
    %cst_139 = arith.constant 9.99999974E-6 : f32
    %479 = vector.broadcast %cst_139 : f32 to vector<8x1xf32>
    %480 = arith.addf %478, %479 : vector<8x1xf32>
    %481 = math.rsqrt %480 : vector<8x1xf32>
    %482 = vector.broadcast %481 : vector<8x1xf32> to vector<8x32xf32>
    %483 = arith.mulf %476, %482 : vector<8x32xf32>
    %484 = arith.mulf %483, %5 : vector<8x32xf32>
    %485 = arith.addf %484, %8 : vector<8x32xf32>
    %486 = arith.index_cast %c7_i32 : i32 to index
    %c0_140 = arith.constant 0 : index
    %c0_141 = arith.constant 0 : index
    %487 = vector.load %arg7[%486, %c0_140, %c0_141] : memref<8x8x32xf32, #tpu.memory_space<vmem>>, vector<1x8x32xf32>
    %488 = vector.shape_cast %487 : vector<1x8x32xf32> to vector<8x32xf32>
    %489 = vector.shape_cast %485 : vector<8x32xf32> to vector<1x8x32xf32>
    tpu.vector_store %arg7[%486, %c0_140, %c0_141], %489 {strides = array<i32>} : memref<8x8x32xf32, #tpu.memory_space<vmem>>, vector<1x8x32xf32>,
    %c8_i32 = arith.constant 8 : i32
    %c0_142 = arith.constant 0 : index
    %c0_143 = arith.constant 0 : index
    %490 = vector.load %arg9[%c0_142, %c0_143] : memref<8x32xf32, #tpu.memory_space<vmem>>, vector<8x32xf32>
    tpu.vector_store %arg9[%c0_142, %c0_143], %476 {strides = array<i32>} : memref<8x32xf32, #tpu.memory_space<vmem>>, vector<8x32xf32>,
    %c1_i32_144 = arith.constant 1 : i32
    %491 = arith.cmpi eq, %arg1, %c1_i32_144 : i32
    %492 = arith.extui %491 : i1 to i32
    %c0_i32_145 = arith.constant 0 : i32
    %493 = arith.cmpi ne, %492, %c0_i32_145 : i32
    scf.if %493 {
      %c0_146 = arith.constant 0 : index
      %c0_147 = arith.constant 0 : index
      %494 = vector.load %arg8[%c0_146, %c0_147] : memref<8x32xf32, #tpu.memory_space<vmem>>, vector<8x32xf32>
      tpu.vector_store %arg8[%c0_146, %c0_147], %476 {strides = array<i32>} : memref<8x32xf32, #tpu.memory_space<vmem>>, vector<8x32xf32>,
    } else {
    }
    return
  }
  func.func @transform_0(%arg0: i32, %arg1: i32) -> (i32, i32, i32) {
    %c0_i32 = arith.constant 0 : i32
    %c0_i32_0 = arith.constant 0 : i32
    return %arg1, %arg0, %c0_i32 : i32, i32, i32
  }
  func.func @transform_1(%arg0: i32, %arg1: i32) -> (i32, i32) {
    %c0_i32 = arith.constant 0 : i32
    %c0_i32_0 = arith.constant 0 : i32
    %c0_i32_1 = arith.constant 0 : i32
    return %c0_i32, %c0_i32_0 : i32, i32
  }
  func.func @transform_2(%arg0: i32, %arg1: i32) -> (i32, i32) {
    %c0_i32 = arith.constant 0 : i32
    %c0_i32_0 = arith.constant 0 : i32
    %c0_i32_1 = arith.constant 0 : i32
    return %c0_i32, %c0_i32_0 : i32, i32
  }
  func.func @transform_3(%arg0: i32, %arg1: i32) -> (i32, i32) {
    %c0_i32 = arith.constant 0 : i32
    %c0_i32_0 = arith.constant 0 : i32
    %c0_i32_1 = arith.constant 0 : i32
    return %c0_i32, %c0_i32_0 : i32, i32
  }
  func.func @transform_4(%arg0: i32, %arg1: i32) -> (i32, i32) {
    %c0_i32 = arith.constant 0 : i32
    %c0_i32_0 = arith.constant 0 : i32
    return %arg0, %c0_i32 : i32, i32
  }
  func.func @transform_5(%arg0: i32, %arg1: i32) -> (i32, i32, i32) {
    %c0_i32 = arith.constant 0 : i32
    %c0_i32_0 = arith.constant 0 : i32
    return %arg1, %arg0, %c0_i32 : i32, i32, i32
  }
  func.func @transform_6(%arg0: i32, %arg1: i32) -> (i32, i32) {
    %c0_i32 = arith.constant 0 : i32
    %c0_i32_0 = arith.constant 0 : i32
    return %arg0, %c0_i32 : i32, i32
  }
}

module attributes {stable_mosaic.version = 11 : i64} {
  func.func @_cfc_kernel(%arg0: i32, %arg1: i32, %arg2: memref<8x8x96xf32, #tpu.memory_space<vmem>>, %arg3: memref<32x96xf32, #tpu.memory_space<vmem>>, %arg4: memref<1x32xf32, #tpu.memory_space<vmem>>, %arg5: memref<1x32xf32, #tpu.memory_space<vmem>>, %arg6: memref<8x32xf32, #tpu.memory_space<vmem>>, %arg7: memref<8x8x32xf32, #tpu.memory_space<vmem>>, %arg8: memref<8x32xf32, #tpu.memory_space<vmem>>, %arg9: memref<8x32xf32, #tpu.memory_space<vmem>>) attributes {dimension_semantics = [#tpu.dimension_semantics<parallel>, #tpu.dimension_semantics<arbitrary>], iteration_bounds = array<i64: 2, 2>, scalar_prefetch = 0 : i64, scratch_operands = 1 : i64, tpu.core_type = #tpu.core_type<tc>, window_params = [{transform_indices = @transform_0, window_bounds = array<i64: 8, 8, 96>}, {pipeline_mode = #tpu.pipeline_mode<synchronous>, transform_indices = @transform_1, window_bounds = array<i64: 32, 96>}, {pipeline_mode = #tpu.pipeline_mode<synchronous>, transform_indices = @transform_2, window_bounds = array<i64: 1, 32>}, {pipeline_mode = #tpu.pipeline_mode<synchronous>, transform_indices = @transform_3, window_bounds = array<i64: 1, 32>}, {transform_indices = @transform_4, window_bounds = array<i64: 8, 32>}, {transform_indices = @transform_5, window_bounds = array<i64: 8, 8, 32>}, {transform_indices = @transform_6, window_bounds = array<i64: 8, 32>}]} {
    %c0_i32 = arith.constant 0 : i32
    %0 = arith.cmpi eq, %arg1, %c0_i32 : i32
    %1 = arith.extui %0 : i1 to i32
    %c0_i32_0 = arith.constant 0 : i32
    %2 = arith.cmpi ne, %1, %c0_i32_0 : i32
    scf.if %2 {
      %c0_146 = arith.constant 0 : index
      %c0_147 = arith.constant 0 : index
      %494 = vector.load %arg6[%c0_146, %c0_147] : memref<8x32xf32, #tpu.memory_space<vmem>>, vector<8x32xf32>
      %c0_148 = arith.constant 0 : index
      %c0_149 = arith.constant 0 : index
      %495 = vector.load %arg9[%c0_148, %c0_149] : memref<8x32xf32, #tpu.memory_space<vmem>>, vector<8x32xf32>
      tpu.vector_store %arg9[%c0_148, %c0_149], %494 {strides = array<i32>} : memref<8x32xf32, #tpu.memory_space<vmem>>, vector<8x32xf32>,
    } else {
    }
    %c0 = arith.constant 0 : index
    %c0_1 = arith.constant 0 : index
    %3 = vector.load %arg4[%c0, %c0_1] : memref<1x32xf32, #tpu.memory_space<vmem>>, vector<1x32xf32>
    %4 = vector.shape_cast %3 : vector<1x32xf32> to vector<1x32xf32>
    %5 = vector.broadcast %4 : vector<1x32xf32> to vector<8x32xf32>
    %c0_2 = arith.constant 0 : index
    %c0_3 = arith.constant 0 : index
    %6 = vector.load %arg5[%c0_2, %c0_3] : memref<1x32xf32, #tpu.memory_space<vmem>>, vector<1x32xf32>
    %7 = vector.shape_cast %6 : vector<1x32xf32> to vector<1x32xf32>
    %8 = vector.broadcast %7 : vector<1x32xf32> to vector<8x32xf32>
    %c0_4 = arith.constant 0 : index
    %c0_5 = arith.constant 0 : index
    %9 = vector.load %arg9[%c0_4, %c0_5] : memref<8x32xf32, #tpu.memory_space<vmem>>, vector<8x32xf32>
    %c0_i32_6 = arith.constant 0 : i32
    %10 = arith.index_cast %c0_i32_6 : i32 to index
    %c0_7 = arith.constant 0 : index
    %c0_8 = arith.constant 0 : index
    %11 = vector.load %arg2[%10, %c0_7, %c0_8] : memref<8x8x96xf32, #tpu.memory_space<vmem>>, vector<1x8x96xf32>
    %12 = vector.shape_cast %11 : vector<1x8x96xf32> to vector<8x96xf32>
    %13 = arith.mulf %9, %9 : vector<8x32xf32>
    %cst = arith.constant dense<0.000000e+00> : vector<8xf32>
    %14 = vector.multi_reduction <add>, %13, %cst [1] : vector<8x32xf32> to vector<8xf32>
    %15 = vector.shape_cast %14 : vector<8xf32> to vector<8x1xf32>
    %16 = math.sqrt %15 : vector<8x1xf32>
    %cst_9 = arith.constant 9.99999993E-9 : f32
    %17 = vector.broadcast %cst_9 : f32 to vector<8x1xf32>
    %18 = arith.addf %16, %17 : vector<8x1xf32>
    %19 = vector.broadcast %18 : vector<8x1xf32> to vector<8x32xf32>
    %20 = arith.divf %9, %19 : vector<8x32xf32>
    %c0_10 = arith.constant 0 : index
    %c0_11 = arith.constant 0 : index
    %21 = vector.load %arg3[%c0_10, %c0_11] : memref<32x96xf32, #tpu.memory_space<vmem>>, vector<32x96xf32>
    %cst_12 = arith.constant dense<0.000000e+00> : vector<8x96xf32>
    %22 = tpu.matmul %20, %21, %cst_12 {dimension_numbers = #tpu.dot_dimension_numbers<[1], [0], [0], [1], [0, 0, 1, 1], [], []>} : vector<8x32xf32>, vector<32x96xf32>, vector<8x96xf32> -> vector<8x96xf32>
    %23 = arith.addf %12, %22 : vector<8x96xf32>
    %24 = vector.extract_strided_slice %23 {offsets = [0, 0], sizes = [8, 32], strides = [1, 1]} : vector<8x96xf32> to vector<8x32xf32>
    %25 = arith.negf %24 : vector<8x32xf32>
    %26 = math.exp %25 : vector<8x32xf32>
    %cst_13 = arith.constant 1.000000e+00 : f32
    %27 = vector.broadcast %cst_13 : f32 to vector<8x32xf32>
    %28 = arith.addf %27, %26 : vector<8x32xf32>
    %29 = arith.divf %27, %28 : vector<8x32xf32>
    %30 = vector.extract_strided_slice %23 {offsets = [0, 32], sizes = [8, 32], strides = [1, 1]} : vector<8x96xf32> to vector<8x32xf32>
    %31 = arith.negf %30 : vector<8x32xf32>
    %32 = math.exp %31 : vector<8x32xf32>
    %cst_14 = arith.constant 1.000000e+00 : f32
    %33 = vector.broadcast %cst_14 : f32 to vector<8x32xf32>
    %34 = arith.addf %33, %32 : vector<8x32xf32>
    %35 = arith.divf %33, %34 : vector<8x32xf32>
    %36 = vector.extract_strided_slice %23 {offsets = [0, 64], sizes = [8, 32], strides = [1, 1]} : vector<8x96xf32> to vector<8x32xf32>
    %37 = math.tanh %36 : vector<8x32xf32>
    %38 = arith.mulf %35, %20 : vector<8x32xf32>
    %39 = arith.mulf %29, %37 : vector<8x32xf32>
    %40 = arith.addf %38, %39 : vector<8x32xf32>
    %cst_15 = arith.constant dense<0.000000e+00> : vector<8xf32>
    %41 = vector.multi_reduction <add>, %40, %cst_15 [1] : vector<8x32xf32> to vector<8xf32>
    %42 = vector.shape_cast %41 : vector<8xf32> to vector<8x1xf32>
    %cst_16 = arith.constant 3.200000e+01 : f32
    %43 = vector.broadcast %cst_16 : f32 to vector<8x1xf32>
    %44 = arith.divf %42, %43 : vector<8x1xf32>
    %45 = vector.broadcast %44 : vector<8x1xf32> to vector<8x32xf32>
    %46 = arith.subf %40, %45 : vector<8x32xf32>
    %47 = arith.mulf %46, %46 : vector<8x32xf32>
    %cst_17 = arith.constant dense<0.000000e+00> : vector<8xf32>
    %48 = vector.multi_reduction <add>, %47, %cst_17 [1] : vector<8x32xf32> to vector<8xf32>
    %49 = vector.shape_cast %48 : vector<8xf32> to vector<8x1xf32>
    %cst_18 = arith.constant 3.200000e+01 : f32
    %50 = vector.broadcast %cst_18 : f32 to vector<8x1xf32>
    %51 = arith.divf %49, %50 : vector<8x1xf32>
    %cst_19 = arith.constant 9.99999974E-6 : f32
    %52 = vector.broadcast %cst_19 : f32 to vector<8x1xf32>
    %53 = arith.addf %51, %52 : vector<8x1xf32>
    %54 = math.rsqrt %53 : vector<8x1xf32>
    %55 = vector.broadcast %54 : vector<8x1xf32> to vector<8x32xf32>
    %56 = arith.mulf %46, %55 : vector<8x32xf32>
    %57 = arith.mulf %54, %54 : vector<8x1xf32>
    %58 = arith.mulf %51, %57 : vector<8x1xf32>
    %cst_20 = arith.constant 9.99999974E-6 : f32
    %59 = vector.broadcast %cst_20 : f32 to vector<8x1xf32>
    %60 = arith.addf %58, %59 : vector<8x1xf32>
    %61 = math.rsqrt %60 : vector<8x1xf32>
    %62 = vector.broadcast %61 : vector<8x1xf32> to vector<8x32xf32>
    %63 = arith.mulf %56, %62 : vector<8x32xf32>
    %64 = arith.mulf %63, %5 : vector<8x32xf32>
    %65 = arith.addf %64, %8 : vector<8x32xf32>
    %66 = arith.index_cast %c0_i32_6 : i32 to index
    %c0_21 = arith.constant 0 : index
    %c0_22 = arith.constant 0 : index
    %67 = vector.load %arg7[%66, %c0_21, %c0_22] : memref<8x8x32xf32, #tpu.memory_space<vmem>>, vector<1x8x32xf32>
    %68 = vector.shape_cast %67 : vector<1x8x32xf32> to vector<8x32xf32>
    %69 = vector.shape_cast %65 : vector<8x32xf32> to vector<1x8x32xf32>
    tpu.vector_store %arg7[%66, %c0_21, %c0_22], %69 {strides = array<i32>} : memref<8x8x32xf32, #tpu.memory_space<vmem>>, vector<1x8x32xf32>,
    %c1_i32 = arith.constant 1 : i32
    %70 = arith.index_cast %c1_i32 : i32 to index
    %c0_23 = arith.constant 0 : index
    %c0_24 = arith.constant 0 : index
    %71 = vector.load %arg2[%70, %c0_23, %c0_24] : memref<8x8x96xf32, #tpu.memory_space<vmem>>, vector<1x8x96xf32>
    %72 = vector.shape_cast %71 : vector<1x8x96xf32> to vector<8x96xf32>
    %73 = arith.mulf %56, %56 : vector<8x32xf32>
    %cst_25 = arith.constant dense<0.000000e+00> : vector<8xf32>
    %74 = vector.multi_reduction <add>, %73, %cst_25 [1] : vector<8x32xf32> to vector<8xf32>
    %75 = vector.shape_cast %74 : vector<8xf32> to vector<8x1xf32>
    %76 = math.sqrt %75 : vector<8x1xf32>
    %cst_26 = arith.constant 9.99999993E-9 : f32
    %77 = vector.broadcast %cst_26 : f32 to vector<8x1xf32>
    %78 = arith.addf %76, %77 : vector<8x1xf32>
    %79 = vector.broadcast %78 : vector<8x1xf32> to vector<8x32xf32>
    %80 = arith.divf %56, %79 : vector<8x32xf32>
    %c0_27 = arith.constant 0 : index
    %c0_28 = arith.constant 0 : index
    %81 = vector.load %arg3[%c0_27, %c0_28] : memref<32x96xf32, #tpu.memory_space<vmem>>, vector<32x96xf32>
    %cst_29 = arith.constant dense<0.000000e+00> : vector<8x96xf32>
    %82 = tpu.matmul %80, %81, %cst_29 {dimension_numbers = #tpu.dot_dimension_numbers<[1], [0], [0], [1], [0, 0, 1, 1], [], []>} : vector<8x32xf32>, vector<32x96xf32>, vector<8x96xf32> -> vector<8x96xf32>
    %83 = arith.addf %72, %82 : vector<8x96xf32>
    %84 = vector.extract_strided_slice %83 {offsets = [0, 0], sizes = [8, 32], strides = [1, 1]} : vector<8x96xf32> to vector<8x32xf32>
    %85 = arith.negf %84 : vector<8x32xf32>
    %86 = math.exp %85 : vector<8x32xf32>
    %cst_30 = arith.constant 1.000000e+00 : f32
    %87 = vector.broadcast %cst_30 : f32 to vector<8x32xf32>
    %88 = arith.addf %87, %86 : vector<8x32xf32>
    %89 = arith.divf %87, %88 : vector<8x32xf32>
    %90 = vector.extract_strided_slice %83 {offsets = [0, 32], sizes = [8, 32], strides = [1, 1]} : vector<8x96xf32> to vector<8x32xf32>
    %91 = arith.negf %90 : vector<8x32xf32>
    %92 = math.exp %91 : vector<8x32xf32>
    %cst_31 = arith.constant 1.000000e+00 : f32
    %93 = vector.broadcast %cst_31 : f32 to vector<8x32xf32>
    %94 = arith.addf %93, %92 : vector<8x32xf32>
    %95 = arith.divf %93, %94 : vector<8x32xf32>
    %96 = vector.extract_strided_slice %83 {offsets = [0, 64], sizes = [8, 32], strides = [1, 1]} : vector<8x96xf32> to vector<8x32xf32>
    %97 = math.tanh %96 : vector<8x32xf32>
    %98 = arith.mulf %95, %80 : vector<8x32xf32>
    %99 = arith.mulf %89, %97 : vector<8x32xf32>
    %100 = arith.addf %98, %99 : vector<8x32xf32>
    %cst_32 = arith.constant dense<0.000000e+00> : vector<8xf32>
    %101 = vector.multi_reduction <add>, %100, %cst_32 [1] : vector<8x32xf32> to vector<8xf32>
    %102 = vector.shape_cast %101 : vector<8xf32> to vector<8x1xf32>
    %cst_33 = arith.constant 3.200000e+01 : f32
    %103 = vector.broadcast %cst_33 : f32 to vector<8x1xf32>
    %104 = arith.divf %102, %103 : vector<8x1xf32>
    %105 = vector.broadcast %104 : vector<8x1xf32> to vector<8x32xf32>
    %106 = arith.subf %100, %105 : vector<8x32xf32>
    %107 = arith.mulf %106, %106 : vector<8x32xf32>
    %cst_34 = arith.constant dense<0.000000e+00> : vector<8xf32>
    %108 = vector.multi_reduction <add>, %107, %cst_34 [1] : vector<8x32xf32> to vector<8xf32>
    %109 = vector.shape_cast %108 : vector<8xf32> to vector<8x1xf32>
    %cst_35 = arith.constant 3.200000e+01 : f32
    %110 = vector.broadcast %cst_35 : f32 to vector<8x1xf32>
    %111 = arith.divf %109, %110 : vector<8x1xf32>
    %cst_36 = arith.constant 9.99999974E-6 : f32
    %112 = vector.broadcast %cst_36 : f32 to vector<8x1xf32>
    %113 = arith.addf %111, %112 : vector<8x1xf32>
    %114 = math.rsqrt %113 : vector<8x1xf32>
    %115 = vector.broadcast %114 : vector<8x1xf32> to vector<8x32xf32>
    %116 = arith.mulf %106, %115 : vector<8x32xf32>
    %117 = arith.mulf %114, %114 : vector<8x1xf32>
    %118 = arith.mulf %111, %117 : vector<8x1xf32>
    %cst_37 = arith.constant 9.99999974E-6 : f32
    %119 = vector.broadcast %cst_37 : f32 to vector<8x1xf32>
    %120 = arith.addf %118, %119 : vector<8x1xf32>
    %121 = math.rsqrt %120 : vector<8x1xf32>
    %122 = vector.broadcast %121 : vector<8x1xf32> to vector<8x32xf32>
    %123 = arith.mulf %116, %122 : vector<8x32xf32>
    %124 = arith.mulf %123, %5 : vector<8x32xf32>
    %125 = arith.addf %124, %8 : vector<8x32xf32>
    %126 = arith.index_cast %c1_i32 : i32 to index
    %c0_38 = arith.constant 0 : index
    %c0_39 = arith.constant 0 : index
    %127 = vector.load %arg7[%126, %c0_38, %c0_39] : memref<8x8x32xf32, #tpu.memory_space<vmem>>, vector<1x8x32xf32>
    %128 = vector.shape_cast %127 : vector<1x8x32xf32> to vector<8x32xf32>
    %129 = vector.shape_cast %125 : vector<8x32xf32> to vector<1x8x32xf32>
    tpu.vector_store %arg7[%126, %c0_38, %c0_39], %129 {strides = array<i32>} : memref<8x8x32xf32, #tpu.memory_space<vmem>>, vector<1x8x32xf32>,
    %c2_i32 = arith.constant 2 : i32
    %130 = arith.index_cast %c2_i32 : i32 to index
    %c0_40 = arith.constant 0 : index
    %c0_41 = arith.constant 0 : index
    %131 = vector.load %arg2[%130, %c0_40, %c0_41] : memref<8x8x96xf32, #tpu.memory_space<vmem>>, vector<1x8x96xf32>
    %132 = vector.shape_cast %131 : vector<1x8x96xf32> to vector<8x96xf32>
    %133 = arith.mulf %116, %116 : vector<8x32xf32>
    %cst_42 = arith.constant dense<0.000000e+00> : vector<8xf32>
    %134 = vector.multi_reduction <add>, %133, %cst_42 [1] : vector<8x32xf32> to vector<8xf32>
    %135 = vector.shape_cast %134 : vector<8xf32> to vector<8x1xf32>
    %136 = math.sqrt %135 : vector<8x1xf32>
    %cst_43 = arith.constant 9.99999993E-9 : f32
    %137 = vector.broadcast %cst_43 : f32 to vector<8x1xf32>
    %138 = arith.addf %136, %137 : vector<8x1xf32>
    %139 = vector.broadcast %138 : vector<8x1xf32> to vector<8x32xf32>
    %140 = arith.divf %116, %139 : vector<8x32xf32>
    %c0_44 = arith.constant 0 : index
    %c0_45 = arith.constant 0 : index
    %141 = vector.load %arg3[%c0_44, %c0_45] : memref<32x96xf32, #tpu.memory_space<vmem>>, vector<32x96xf32>
    %cst_46 = arith.constant dense<0.000000e+00> : vector<8x96xf32>
    %142 = tpu.matmul %140, %141, %cst_46 {dimension_numbers = #tpu.dot_dimension_numbers<[1], [0], [0], [1], [0, 0, 1, 1], [], []>} : vector<8x32xf32>, vector<32x96xf32>, vector<8x96xf32> -> vector<8x96xf32>
    %143 = arith.addf %132, %142 : vector<8x96xf32>
    %144 = vector.extract_strided_slice %143 {offsets = [0, 0], sizes = [8, 32], strides = [1, 1]} : vector<8x96xf32> to vector<8x32xf32>
    %145 = arith.negf %144 : vector<8x32xf32>
    %146 = math.exp %145 : vector<8x32xf32>
    %cst_47 = arith.constant 1.000000e+00 : f32
    %147 = vector.broadcast %cst_47 : f32 to vector<8x32xf32>
    %148 = arith.addf %147, %146 : vector<8x32xf32>
    %149 = arith.divf %147, %148 : vector<8x32xf32>
    %150 = vector.extract_strided_slice %143 {offsets = [0, 32], sizes = [8, 32], strides = [1, 1]} : vector<8x96xf32> to vector<8x32xf32>
    %151 = arith.negf %150 : vector<8x32xf32>
    %152 = math.exp %151 : vector<8x32xf32>
    %cst_48 = arith.constant 1.000000e+00 : f32
    %153 = vector.broadcast %cst_48 : f32 to vector<8x32xf32>
    %154 = arith.addf %153, %152 : vector<8x32xf32>
    %155 = arith.divf %153, %154 : vector<8x32xf32>
    %156 = vector.extract_strided_slice %143 {offsets = [0, 64], sizes = [8, 32], strides = [1, 1]} : vector<8x96xf32> to vector<8x32xf32>
    %157 = math.tanh %156 : vector<8x32xf32>
    %158 = arith.mulf %155, %140 : vector<8x32xf32>
    %159 = arith.mulf %149, %157 : vector<8x32xf32>
    %160 = arith.addf %158, %159 : vector<8x32xf32>
    %cst_49 = arith.constant dense<0.000000e+00> : vector<8xf32>
    %161 = vector.multi_reduction <add>, %160, %cst_49 [1] : vector<8x32xf32> to vector<8xf32>
    %162 = vector.shape_cast %161 : vector<8xf32> to vector<8x1xf32>
    %cst_50 = arith.constant 3.200000e+01 : f32
    %163 = vector.broadcast %cst_50 : f32 to vector<8x1xf32>
    %164 = arith.divf %162, %163 : vector<8x1xf32>
    %165 = vector.broadcast %164 : vector<8x1xf32> to vector<8x32xf32>
    %166 = arith.subf %160, %165 : vector<8x32xf32>
    %167 = arith.mulf %166, %166 : vector<8x32xf32>
    %cst_51 = arith.constant dense<0.000000e+00> : vector<8xf32>
    %168 = vector.multi_reduction <add>, %167, %cst_51 [1] : vector<8x32xf32> to vector<8xf32>
    %169 = vector.shape_cast %168 : vector<8xf32> to vector<8x1xf32>
    %cst_52 = arith.constant 3.200000e+01 : f32
    %170 = vector.broadcast %cst_52 : f32 to vector<8x1xf32>
    %171 = arith.divf %169, %170 : vector<8x1xf32>
    %cst_53 = arith.constant 9.99999974E-6 : f32
    %172 = vector.broadcast %cst_53 : f32 to vector<8x1xf32>
    %173 = arith.addf %171, %172 : vector<8x1xf32>
    %174 = math.rsqrt %173 : vector<8x1xf32>
    %175 = vector.broadcast %174 : vector<8x1xf32> to vector<8x32xf32>
    %176 = arith.mulf %166, %175 : vector<8x32xf32>
    %177 = arith.mulf %174, %174 : vector<8x1xf32>
    %178 = arith.mulf %171, %177 : vector<8x1xf32>
    %cst_54 = arith.constant 9.99999974E-6 : f32
    %179 = vector.broadcast %cst_54 : f32 to vector<8x1xf32>
    %180 = arith.addf %178, %179 : vector<8x1xf32>
    %181 = math.rsqrt %180 : vector<8x1xf32>
    %182 = vector.broadcast %181 : vector<8x1xf32> to vector<8x32xf32>
    %183 = arith.mulf %176, %182 : vector<8x32xf32>
    %184 = arith.mulf %183, %5 : vector<8x32xf32>
    %185 = arith.addf %184, %8 : vector<8x32xf32>
    %186 = arith.index_cast %c2_i32 : i32 to index
    %c0_55 = arith.constant 0 : index
    %c0_56 = arith.constant 0 : index
    %187 = vector.load %arg7[%186, %c0_55, %c0_56] : memref<8x8x32xf32, #tpu.memory_space<vmem>>, vector<1x8x32xf32>
    %188 = vector.shape_cast %187 : vector<1x8x32xf32> to vector<8x32xf32>
    %189 = vector.shape_cast %185 : vector<8x32xf32> to vector<1x8x32xf32>
    tpu.vector_store %arg7[%186, %c0_55, %c0_56], %189 {strides = array<i32>} : memref<8x8x32xf32, #tpu.memory_space<vmem>>, vector<1x8x32xf32>,
    %c3_i32 = arith.constant 3 : i32
    %190 = arith.index_cast %c3_i32 : i32 to index
    %c0_57 = arith.constant 0 : index
    %c0_58 = arith.constant 0 : index
    %191 = vector.load %arg2[%190, %c0_57, %c0_58] : memref<8x8x96xf32, #tpu.memory_space<vmem>>, vector<1x8x96xf32>
    %192 = vector.shape_cast %191 : vector<1x8x96xf32> to vector<8x96xf32>
    %193 = arith.mulf %176, %176 : vector<8x32xf32>
    %cst_59 = arith.constant dense<0.000000e+00> : vector<8xf32>
    %194 = vector.multi_reduction <add>, %193, %cst_59 [1] : vector<8x32xf32> to vector<8xf32>
    %195 = vector.shape_cast %194 : vector<8xf32> to vector<8x1xf32>
    %196 = math.sqrt %195 : vector<8x1xf32>
    %cst_60 = arith.constant 9.99999993E-9 : f32
    %197 = vector.broadcast %cst_60 : f32 to vector<8x1xf32>
    %198 = arith.addf %196, %197 : vector<8x1xf32>
    %199 = vector.broadcast %198 : vector<8x1xf32> to vector<8x32xf32>
    %200 = arith.divf %176, %199 : vector<8x32xf32>
    %c0_61 = arith.constant 0 : index
    %c0_62 = arith.constant 0 : index
    %201 = vector.load %arg3[%c0_61, %c0_62] : memref<32x96xf32, #tpu.memory_space<vmem>>, vector<32x96xf32>
    %cst_63 = arith.constant dense<0.000000e+00> : vector<8x96xf32>
    %202 = tpu.matmul %200, %201, %cst_63 {dimension_numbers = #tpu.dot_dimension_numbers<[1], [0], [0], [1], [0, 0, 1, 1], [], []>} : vector<8x32xf32>, vector<32x96xf32>, vector<8x96xf32> -> vector<8x96xf32>
    %203 = arith.addf %192, %202 : vector<8x96xf32>
    %204 = vector.extract_strided_slice %203 {offsets = [0, 0], sizes = [8, 32], strides = [1, 1]} : vector<8x96xf32> to vector<8x32xf32>
    %205 = arith.negf %204 : vector<8x32xf32>
    %206 = math.exp %205 : vector<8x32xf32>
    %cst_64 = arith.constant 1.000000e+00 : f32
    %207 = vector.broadcast %cst_64 : f32 to vector<8x32xf32>
    %208 = arith.addf %207, %206 : vector<8x32xf32>
    %209 = arith.divf %207, %208 : vector<8x32xf32>
    %210 = vector.extract_strided_slice %203 {offsets = [0, 32], sizes = [8, 32], strides = [1, 1]} : vector<8x96xf32> to vector<8x32xf32>
    %211 = arith.negf %210 : vector<8x32xf32>
    %212 = math.exp %211 : vector<8x32xf32>
    %cst_65 = arith.constant 1.000000e+00 : f32
    %213 = vector.broadcast %cst_65 : f32 to vector<8x32xf32>
    %214 = arith.addf %213, %212 : vector<8x32xf32>
    %215 = arith.divf %213, %214 : vector<8x32xf32>
    %216 = vector.extract_strided_slice %203 {offsets = [0, 64], sizes = [8, 32], strides = [1, 1]} : vector<8x96xf32> to vector<8x32xf32>
    %217 = math.tanh %216 : vector<8x32xf32>
    %218 = arith.mulf %215, %200 : vector<8x32xf32>
    %219 = arith.mulf %209, %217 : vector<8x32xf32>
    %220 = arith.addf %218, %219 : vector<8x32xf32>
    %cst_66 = arith.constant dense<0.000000e+00> : vector<8xf32>
    %221 = vector.multi_reduction <add>, %220, %cst_66 [1] : vector<8x32xf32> to vector<8xf32>
    %222 = vector.shape_cast %221 : vector<8xf32> to vector<8x1xf32>
    %cst_67 = arith.constant 3.200000e+01 : f32
    %223 = vector.broadcast %cst_67 : f32 to vector<8x1xf32>
    %224 = arith.divf %222, %223 : vector<8x1xf32>
    %225 = vector.broadcast %224 : vector<8x1xf32> to vector<8x32xf32>
    %226 = arith.subf %220, %225 : vector<8x32xf32>
    %227 = arith.mulf %226, %226 : vector<8x32xf32>
    %cst_68 = arith.constant dense<0.000000e+00> : vector<8xf32>
    %228 = vector.multi_reduction <add>, %227, %cst_68 [1] : vector<8x32xf32> to vector<8xf32>
    %229 = vector.shape_cast %228 : vector<8xf32> to vector<8x1xf32>
    %cst_69 = arith.constant 3.200000e+01 : f32
    %230 = vector.broadcast %cst_69 : f32 to vector<8x1xf32>
    %231 = arith.divf %229, %230 : vector<8x1xf32>
    %cst_70 = arith.constant 9.99999974E-6 : f32
    %232 = vector.broadcast %cst_70 : f32 to vector<8x1xf32>
    %233 = arith.addf %231, %232 : vector<8x1xf32>
    %234 = math.rsqrt %233 : vector<8x1xf32>
    %235 = vector.broadcast %234 : vector<8x1xf32> to vector<8x32xf32>
    %236 = arith.mulf %226, %235 : vector<8x32xf32>
    %237 = arith.mulf %234, %234 : vector<8x1xf32>
    %238 = arith.mulf %231, %237 : vector<8x1xf32>
    %cst_71 = arith.constant 9.99999974E-6 : f32
    %239 = vector.broadcast %cst_71 : f32 to vector<8x1xf32>
    %240 = arith.addf %238, %239 : vector<8x1xf32>
    %241 = math.rsqrt %240 : vector<8x1xf32>
    %242 = vector.broadcast %241 : vector<8x1xf32> to vector<8x32xf32>
    %243 = arith.mulf %236, %242 : vector<8x32xf32>
    %244 = arith.mulf %243, %5 : vector<8x32xf32>
    %245 = arith.addf %244, %8 : vector<8x32xf32>
    %246 = arith.index_cast %c3_i32 : i32 to index
    %c0_72 = arith.constant 0 : index
    %c0_73 = arith.constant 0 : index
    %247 = vector.load %arg7[%246, %c0_72, %c0_73] : memref<8x8x32xf32, #tpu.memory_space<vmem>>, vector<1x8x32xf32>
    %248 = vector.shape_cast %247 : vector<1x8x32xf32> to vector<8x32xf32>
    %249 = vector.shape_cast %245 : vector<8x32xf32> to vector<1x8x32xf32>
    tpu.vector_store %arg7[%246, %c0_72, %c0_73], %249 {strides = array<i32>} : memref<8x8x32xf32, #tpu.memory_space<vmem>>, vector<1x8x32xf32>,
    %c4_i32 = arith.constant 4 : i32
    %250 = arith.index_cast %c4_i32 : i32 to index
    %c0_74 = arith.constant 0 : index
    %c0_75 = arith.constant 0 : index
    %251 = vector.load %arg2[%250, %c0_74, %c0_75] : memref<8x8x96xf32, #tpu.memory_space<vmem>>, vector<1x8x96xf32>
    %252 = vector.shape_cast %251 : vector<1x8x96xf32> to vector<8x96xf32>
    %253 = arith.mulf %236, %236 : vector<8x32xf32>
    %cst_76 = arith.constant dense<0.000000e+00> : vector<8xf32>
    %254 = vector.multi_reduction <add>, %253, %cst_76 [1] : vector<8x32xf32> to vector<8xf32>
    %255 = vector.shape_cast %254 : vector<8xf32> to vector<8x1xf32>
    %256 = math.sqrt %255 : vector<8x1xf32>
    %cst_77 = arith.constant 9.99999993E-9 : f32
    %257 = vector.broadcast %cst_77 : f32 to vector<8x1xf32>
    %258 = arith.addf %256, %257 : vector<8x1xf32>
    %259 = vector.broadcast %258 : vector<8x1xf32> to vector<8x32xf32>
    %260 = arith.divf %236, %259 : vector<8x32xf32>
    %c0_78 = arith.constant 0 : index
    %c0_79 = arith.constant 0 : index
    %261 = vector.load %arg3[%c0_78, %c0_79] : memref<32x96xf32, #tpu.memory_space<vmem>>, vector<32x96xf32>
    %cst_80 = arith.constant dense<0.000000e+00> : vector<8x96xf32>
    %262 = tpu.matmul %260, %261, %cst_80 {dimension_numbers = #tpu.dot_dimension_numbers<[1], [0], [0], [1], [0, 0, 1, 1], [], []>} : vector<8x32xf32>, vector<32x96xf32>, vector<8x96xf32> -> vector<8x96xf32>
    %263 = arith.addf %252, %262 : vector<8x96xf32>
    %264 = vector.extract_strided_slice %263 {offsets = [0, 0], sizes = [8, 32], strides = [1, 1]} : vector<8x96xf32> to vector<8x32xf32>
    %265 = arith.negf %264 : vector<8x32xf32>
    %266 = math.exp %265 : vector<8x32xf32>
    %cst_81 = arith.constant 1.000000e+00 : f32
    %267 = vector.broadcast %cst_81 : f32 to vector<8x32xf32>
    %268 = arith.addf %267, %266 : vector<8x32xf32>
    %269 = arith.divf %267, %268 : vector<8x32xf32>
    %270 = vector.extract_strided_slice %263 {offsets = [0, 32], sizes = [8, 32], strides = [1, 1]} : vector<8x96xf32> to vector<8x32xf32>
    %271 = arith.negf %270 : vector<8x32xf32>
    %272 = math.exp %271 : vector<8x32xf32>
    %cst_82 = arith.constant 1.000000e+00 : f32
    %273 = vector.broadcast %cst_82 : f32 to vector<8x32xf32>
    %274 = arith.addf %273, %272 : vector<8x32xf32>
    %275 = arith.divf %273, %274 : vector<8x32xf32>
    %276 = vector.extract_strided_slice %263 {offsets = [0, 64], sizes = [8, 32], strides = [1, 1]} : vector<8x96xf32> to vector<8x32xf32>
    %277 = math.tanh %276 : vector<8x32xf32>
    %278 = arith.mulf %275, %260 : vector<8x32xf32>
    %279 = arith.mulf %269, %277 : vector<8x32xf32>
    %280 = arith.addf %278, %279 : vector<8x32xf32>
    %cst_83 = arith.constant dense<0.000000e+00> : vector<8xf32>
    %281 = vector.multi_reduction <add>, %280, %cst_83 [1] : vector<8x32xf32> to vector<8xf32>
    %282 = vector.shape_cast %281 : vector<8xf32> to vector<8x1xf32>
    %cst_84 = arith.constant 3.200000e+01 : f32
    %283 = vector.broadcast %cst_84 : f32 to vector<8x1xf32>
    %284 = arith.divf %282, %283 : vector<8x1xf32>
    %285 = vector.broadcast %284 : vector<8x1xf32> to vector<8x32xf32>
    %286 = arith.subf %280, %285 : vector<8x32xf32>
    %287 = arith.mulf %286, %286 : vector<8x32xf32>
    %cst_85 = arith.constant dense<0.000000e+00> : vector<8xf32>
    %288 = vector.multi_reduction <add>, %287, %cst_85 [1] : vector<8x32xf32> to vector<8xf32>
    %289 = vector.shape_cast %288 : vector<8xf32> to vector<8x1xf32>
    %cst_86 = arith.constant 3.200000e+01 : f32
    %290 = vector.broadcast %cst_86 : f32 to vector<8x1xf32>
    %291 = arith.divf %289, %290 : vector<8x1xf32>
    %cst_87 = arith.constant 9.99999974E-6 : f32
    %292 = vector.broadcast %cst_87 : f32 to vector<8x1xf32>
    %293 = arith.addf %291, %292 : vector<8x1xf32>
    %294 = math.rsqrt %293 : vector<8x1xf32>
    %295 = vector.broadcast %294 : vector<8x1xf32> to vector<8x32xf32>
    %296 = arith.mulf %286, %295 : vector<8x32xf32>
    %297 = arith.mulf %294, %294 : vector<8x1xf32>
    %298 = arith.mulf %291, %297 : vector<8x1xf32>
    %cst_88 = arith.constant 9.99999974E-6 : f32
    %299 = vector.broadcast %cst_88 : f32 to vector<8x1xf32>
    %300 = arith.addf %298, %299 : vector<8x1xf32>
    %301 = math.rsqrt %300 : vector<8x1xf32>
    %302 = vector.broadcast %301 : vector<8x1xf32> to vector<8x32xf32>
    %303 = arith.mulf %296, %302 : vector<8x32xf32>
    %304 = arith.mulf %303, %5 : vector<8x32xf32>
    %305 = arith.addf %304, %8 : vector<8x32xf32>
    %306 = arith.index_cast %c4_i32 : i32 to index
    %c0_89 = arith.constant 0 : index
    %c0_90 = arith.constant 0 : index
    %307 = vector.load %arg7[%306, %c0_89, %c0_90] : memref<8x8x32xf32, #tpu.memory_space<vmem>>, vector<1x8x32xf32>
    %308 = vector.shape_cast %307 : vector<1x8x32xf32> to vector<8x32xf32>
    %309 = vector.shape_cast %305 : vector<8x32xf32> to vector<1x8x32xf32>
    tpu.vector_store %arg7[%306, %c0_89, %c0_90], %309 {strides = array<i32>} : memref<8x8x32xf32, #tpu.memory_space<vmem>>, vector<1x8x32xf32>,
    %c5_i32 = arith.constant 5 : i32
    %310 = arith.index_cast %c5_i32 : i32 to index
    %c0_91 = arith.constant 0 : index
    %c0_92 = arith.constant 0 : index
    %311 = vector.load %arg2[%310, %c0_91, %c0_92] : memref<8x8x96xf32, #tpu.memory_space<vmem>>, vector<1x8x96xf32>
    %312 = vector.shape_cast %311 : vector<1x8x96xf32> to vector<8x96xf32>
    %313 = arith.mulf %296, %296 : vector<8x32xf32>
    %cst_93 = arith.constant dense<0.000000e+00> : vector<8xf32>
    %314 = vector.multi_reduction <add>, %313, %cst_93 [1] : vector<8x32xf32> to vector<8xf32>
    %315 = vector.shape_cast %314 : vector<8xf32> to vector<8x1xf32>
    %316 = math.sqrt %315 : vector<8x1xf32>
    %cst_94 = arith.constant 9.99999993E-9 : f32
    %317 = vector.broadcast %cst_94 : f32 to vector<8x1xf32>
    %318 = arith.addf %316, %317 : vector<8x1xf32>
    %319 = vector.broadcast %318 : vector<8x1xf32> to vector<8x32xf32>
    %320 = arith.divf %296, %319 : vector<8x32xf32>
    %c0_95 = arith.constant 0 : index
    %c0_96 = arith.constant 0 : index
    %321 = vector.load %arg3[%c0_95, %c0_96] : memref<32x96xf32, #tpu.memory_space<vmem>>, vector<32x96xf32>
    %cst_97 = arith.constant dense<0.000000e+00> : vector<8x96xf32>
    %322 = tpu.matmul %320, %321, %cst_97 {dimension_numbers = #tpu.dot_dimension_numbers<[1], [0], [0], [1], [0, 0, 1, 1], [], []>} : vector<8x32xf32>, vector<32x96xf32>, vector<8x96xf32> -> vector<8x96xf32>
    %323 = arith.addf %312, %322 : vector<8x96xf32>
    %324 = vector.extract_strided_slice %323 {offsets = [0, 0], sizes = [8, 32], strides = [1, 1]} : vector<8x96xf32> to vector<8x32xf32>
    %325 = arith.negf %324 : vector<8x32xf32>
    %326 = math.exp %325 : vector<8x32xf32>
    %cst_98 = arith.constant 1.000000e+00 : f32
    %327 = vector.broadcast %cst_98 : f32 to vector<8x32xf32>
    %328 = arith.addf %327, %326 : vector<8x32xf32>
    %329 = arith.divf %327, %328 : vector<8x32xf32>
    %330 = vector.extract_strided_slice %323 {offsets = [0, 32], sizes = [8, 32], strides = [1, 1]} : vector<8x96xf32> to vector<8x32xf32>
    %331 = arith.negf %330 : vector<8x32xf32>
    %332 = math.exp %331 : vector<8x32xf32>
    %cst_99 = arith.constant 1.000000e+00 : f32
    %333 = vector.broadcast %cst_99 : f32 to vector<8x32xf32>
    %334 = arith.addf %333, %332 : vector<8x32xf32>
    %335 = arith.divf %333, %334 : vector<8x32xf32>
    %336 = vector.extract_strided_slice %323 {offsets = [0, 64], sizes = [8, 32], strides = [1, 1]} : vector<8x96xf32> to vector<8x32xf32>
    %337 = math.tanh %336 : vector<8x32xf32>
    %338 = arith.mulf %335, %320 : vector<8x32xf32>
    %339 = arith.mulf %329, %337 : vector<8x32xf32>
    %340 = arith.addf %338, %339 : vector<8x32xf32>
    %cst_100 = arith.constant dense<0.000000e+00> : vector<8xf32>
    %341 = vector.multi_reduction <add>, %340, %cst_100 [1] : vector<8x32xf32> to vector<8xf32>
    %342 = vector.shape_cast %341 : vector<8xf32> to vector<8x1xf32>
    %cst_101 = arith.constant 3.200000e+01 : f32
    %343 = vector.broadcast %cst_101 : f32 to vector<8x1xf32>
    %344 = arith.divf %342, %343 : vector<8x1xf32>
    %345 = vector.broadcast %344 : vector<8x1xf32> to vector<8x32xf32>
    %346 = arith.subf %340, %345 : vector<8x32xf32>
    %347 = arith.mulf %346, %346 : vector<8x32xf32>
    %cst_102 = arith.constant dense<0.000000e+00> : vector<8xf32>
    %348 = vector.multi_reduction <add>, %347, %cst_102 [1] : vector<8x32xf32> to vector<8xf32>
    %349 = vector.shape_cast %348 : vector<8xf32> to vector<8x1xf32>
    %cst_103 = arith.constant 3.200000e+01 : f32
    %350 = vector.broadcast %cst_103 : f32 to vector<8x1xf32>
    %351 = arith.divf %349, %350 : vector<8x1xf32>
    %cst_104 = arith.constant 9.99999974E-6 : f32
    %352 = vector.broadcast %cst_104 : f32 to vector<8x1xf32>
    %353 = arith.addf %351, %352 : vector<8x1xf32>
    %354 = math.rsqrt %353 : vector<8x1xf32>
    %355 = vector.broadcast %354 : vector<8x1xf32> to vector<8x32xf32>
    %356 = arith.mulf %346, %355 : vector<8x32xf32>
    %357 = arith.mulf %354, %354 : vector<8x1xf32>
    %358 = arith.mulf %351, %357 : vector<8x1xf32>
    %cst_105 = arith.constant 9.99999974E-6 : f32
    %359 = vector.broadcast %cst_105 : f32 to vector<8x1xf32>
    %360 = arith.addf %358, %359 : vector<8x1xf32>
    %361 = math.rsqrt %360 : vector<8x1xf32>
    %362 = vector.broadcast %361 : vector<8x1xf32> to vector<8x32xf32>
    %363 = arith.mulf %356, %362 : vector<8x32xf32>
    %364 = arith.mulf %363, %5 : vector<8x32xf32>
    %365 = arith.addf %364, %8 : vector<8x32xf32>
    %366 = arith.index_cast %c5_i32 : i32 to index
    %c0_106 = arith.constant 0 : index
    %c0_107 = arith.constant 0 : index
    %367 = vector.load %arg7[%366, %c0_106, %c0_107] : memref<8x8x32xf32, #tpu.memory_space<vmem>>, vector<1x8x32xf32>
    %368 = vector.shape_cast %367 : vector<1x8x32xf32> to vector<8x32xf32>
    %369 = vector.shape_cast %365 : vector<8x32xf32> to vector<1x8x32xf32>
    tpu.vector_store %arg7[%366, %c0_106, %c0_107], %369 {strides = array<i32>} : memref<8x8x32xf32, #tpu.memory_space<vmem>>, vector<1x8x32xf32>,
    %c6_i32 = arith.constant 6 : i32
    %370 = arith.index_cast %c6_i32 : i32 to index
    %c0_108 = arith.constant 0 : index
    %c0_109 = arith.constant 0 : index
    %371 = vector.load %arg2[%370, %c0_108, %c0_109] : memref<8x8x96xf32, #tpu.memory_space<vmem>>, vector<1x8x96xf32>
    %372 = vector.shape_cast %371 : vector<1x8x96xf32> to vector<8x96xf32>
    %373 = arith.mulf %356, %356 : vector<8x32xf32>
    %cst_110 = arith.constant dense<0.000000e+00> : vector<8xf32>
    %374 = vector.multi_reduction <add>, %373, %cst_110 [1] : vector<8x32xf32> to vector<8xf32>
    %375 = vector.shape_cast %374 : vector<8xf32> to vector<8x1xf32>
    %376 = math.sqrt %375 : vector<8x1xf32>
    %cst_111 = arith.constant 9.99999993E-9 : f32
    %377 = vector.broadcast %cst_111 : f32 to vector<8x1xf32>
    %378 = arith.addf %376, %377 : vector<8x1xf32>
    %379 = vector.broadcast %378 : vector<8x1xf32> to vector<8x32xf32>
    %380 = arith.divf %356, %379 : vector<8x32xf32>
    %c0_112 = arith.constant 0 : index
    %c0_113 = arith.constant 0 : index
    %381 = vector.load %arg3[%c0_112, %c0_113] : memref<32x96xf32, #tpu.memory_space<vmem>>, vector<32x96xf32>
    %cst_114 = arith.constant dense<0.000000e+00> : vector<8x96xf32>
    %382 = tpu.matmul %380, %381, %cst_114 {dimension_numbers = #tpu.dot_dimension_numbers<[1], [0], [0], [1], [0, 0, 1, 1], [], []>} : vector<8x32xf32>, vector<32x96xf32>, vector<8x96xf32> -> vector<8x96xf32>
    %383 = arith.addf %372, %382 : vector<8x96xf32>
    %384 = vector.extract_strided_slice %383 {offsets = [0, 0], sizes = [8, 32], strides = [1, 1]} : vector<8x96xf32> to vector<8x32xf32>
    %385 = arith.negf %384 : vector<8x32xf32>
    %386 = math.exp %385 : vector<8x32xf32>
    %cst_115 = arith.constant 1.000000e+00 : f32
    %387 = vector.broadcast %cst_115 : f32 to vector<8x32xf32>
    %388 = arith.addf %387, %386 : vector<8x32xf32>
    %389 = arith.divf %387, %388 : vector<8x32xf32>
    %390 = vector.extract_strided_slice %383 {offsets = [0, 32], sizes = [8, 32], strides = [1, 1]} : vector<8x96xf32> to vector<8x32xf32>
    %391 = arith.negf %390 : vector<8x32xf32>
    %392 = math.exp %391 : vector<8x32xf32>
    %cst_116 = arith.constant 1.000000e+00 : f32
    %393 = vector.broadcast %cst_116 : f32 to vector<8x32xf32>
    %394 = arith.addf %393, %392 : vector<8x32xf32>
    %395 = arith.divf %393, %394 : vector<8x32xf32>
    %396 = vector.extract_strided_slice %383 {offsets = [0, 64], sizes = [8, 32], strides = [1, 1]} : vector<8x96xf32> to vector<8x32xf32>
    %397 = math.tanh %396 : vector<8x32xf32>
    %398 = arith.mulf %395, %380 : vector<8x32xf32>
    %399 = arith.mulf %389, %397 : vector<8x32xf32>
    %400 = arith.addf %398, %399 : vector<8x32xf32>
    %cst_117 = arith.constant dense<0.000000e+00> : vector<8xf32>
    %401 = vector.multi_reduction <add>, %400, %cst_117 [1] : vector<8x32xf32> to vector<8xf32>
    %402 = vector.shape_cast %401 : vector<8xf32> to vector<8x1xf32>
    %cst_118 = arith.constant 3.200000e+01 : f32
    %403 = vector.broadcast %cst_118 : f32 to vector<8x1xf32>
    %404 = arith.divf %402, %403 : vector<8x1xf32>
    %405 = vector.broadcast %404 : vector<8x1xf32> to vector<8x32xf32>
    %406 = arith.subf %400, %405 : vector<8x32xf32>
    %407 = arith.mulf %406, %406 : vector<8x32xf32>
    %cst_119 = arith.constant dense<0.000000e+00> : vector<8xf32>
    %408 = vector.multi_reduction <add>, %407, %cst_119 [1] : vector<8x32xf32> to vector<8xf32>
    %409 = vector.shape_cast %408 : vector<8xf32> to vector<8x1xf32>
    %cst_120 = arith.constant 3.200000e+01 : f32
    %410 = vector.broadcast %cst_120 : f32 to vector<8x1xf32>
    %411 = arith.divf %409, %410 : vector<8x1xf32>
    %cst_121 = arith.constant 9.99999974E-6 : f32
    %412 = vector.broadcast %cst_121 : f32 to vector<8x1xf32>
    %413 = arith.addf %411, %412 : vector<8x1xf32>
    %414 = math.rsqrt %413 : vector<8x1xf32>
    %415 = vector.broadcast %414 : vector<8x1xf32> to vector<8x32xf32>
    %416 = arith.mulf %406, %415 : vector<8x32xf32>
    %417 = arith.mulf %414, %414 : vector<8x1xf32>
    %418 = arith.mulf %411, %417 : vector<8x1xf32>
    %cst_122 = arith.constant 9.99999974E-6 : f32
    %419 = vector.broadcast %cst_122 : f32 to vector<8x1xf32>
    %420 = arith.addf %418, %419 : vector<8x1xf32>
    %421 = math.rsqrt %420 : vector<8x1xf32>
    %422 = vector.broadcast %421 : vector<8x1xf32> to vector<8x32xf32>
    %423 = arith.mulf %416, %422 : vector<8x32xf32>
    %424 = arith.mulf %423, %5 : vector<8x32xf32>
    %425 = arith.addf %424, %8 : vector<8x32xf32>
    %426 = arith.index_cast %c6_i32 : i32 to index
    %c0_123 = arith.constant 0 : index
    %c0_124 = arith.constant 0 : index
    %427 = vector.load %arg7[%426, %c0_123, %c0_124] : memref<8x8x32xf32, #tpu.memory_space<vmem>>, vector<1x8x32xf32>
    %428 = vector.shape_cast %427 : vector<1x8x32xf32> to vector<8x32xf32>
    %429 = vector.shape_cast %425 : vector<8x32xf32> to vector<1x8x32xf32>
    tpu.vector_store %arg7[%426, %c0_123, %c0_124], %429 {strides = array<i32>} : memref<8x8x32xf32, #tpu.memory_space<vmem>>, vector<1x8x32xf32>,
    %c7_i32 = arith.constant 7 : i32
    %430 = arith.index_cast %c7_i32 : i32 to index
    %c0_125 = arith.constant 0 : index
    %c0_126 = arith.constant 0 : index
    %431 = vector.load %arg2[%430, %c0_125, %c0_126] : memref<8x8x96xf32, #tpu.memory_space<vmem>>, vector<1x8x96xf32>
    %432 = vector.shape_cast %431 : vector<1x8x96xf32> to vector<8x96xf32>
    %433 = arith.mulf %416, %416 : vector<8x32xf32>
    %cst_127 = arith.constant dense<0.000000e+00> : vector<8xf32>
    %434 = vector.multi_reduction <add>, %433, %cst_127 [1] : vector<8x32xf32> to vector<8xf32>
    %435 = vector.shape_cast %434 : vector<8xf32> to vector<8x1xf32>
    %436 = math.sqrt %435 : vector<8x1xf32>
    %cst_128 = arith.constant 9.99999993E-9 : f32
    %437 = vector.broadcast %cst_128 : f32 to vector<8x1xf32>
    %438 = arith.addf %436, %437 : vector<8x1xf32>
    %439 = vector.broadcast %438 : vector<8x1xf32> to vector<8x32xf32>
    %440 = arith.divf %416, %439 : vector<8x32xf32>
    %c0_129 = arith.constant 0 : index
    %c0_130 = arith.constant 0 : index
    %441 = vector.load %arg3[%c0_129, %c0_130] : memref<32x96xf32, #tpu.memory_space<vmem>>, vector<32x96xf32>
    %cst_131 = arith.constant dense<0.000000e+00> : vector<8x96xf32>
    %442 = tpu.matmul %440, %441, %cst_131 {dimension_numbers = #tpu.dot_dimension_numbers<[1], [0], [0], [1], [0, 0, 1, 1], [], []>} : vector<8x32xf32>, vector<32x96xf32>, vector<8x96xf32> -> vector<8x96xf32>
    %443 = arith.addf %432, %442 : vector<8x96xf32>
    %444 = vector.extract_strided_slice %443 {offsets = [0, 0], sizes = [8, 32], strides = [1, 1]} : vector<8x96xf32> to vector<8x32xf32>
    %445 = arith.negf %444 : vector<8x32xf32>
    %446 = math.exp %445 : vector<8x32xf32>
    %cst_132 = arith.constant 1.000000e+00 : f32
    %447 = vector.broadcast %cst_132 : f32 to vector<8x32xf32>
    %448 = arith.addf %447, %446 : vector<8x32xf32>
    %449 = arith.divf %447, %448 : vector<8x32xf32>
    %450 = vector.extract_strided_slice %443 {offsets = [0, 32], sizes = [8, 32], strides = [1, 1]} : vector<8x96xf32> to vector<8x32xf32>
    %451 = arith.negf %450 : vector<8x32xf32>
    %452 = math.exp %451 : vector<8x32xf32>
    %cst_133 = arith.constant 1.000000e+00 : f32
    %453 = vector.broadcast %cst_133 : f32 to vector<8x32xf32>
    %454 = arith.addf %453, %452 : vector<8x32xf32>
    %455 = arith.divf %453, %454 : vector<8x32xf32>
    %456 = vector.extract_strided_slice %443 {offsets = [0, 64], sizes = [8, 32], strides = [1, 1]} : vector<8x96xf32> to vector<8x32xf32>
    %457 = math.tanh %456 : vector<8x32xf32>
    %458 = arith.mulf %455, %440 : vector<8x32xf32>
    %459 = arith.mulf %449, %457 : vector<8x32xf32>
    %460 = arith.addf %458, %459 : vector<8x32xf32>
    %cst_134 = arith.constant dense<0.000000e+00> : vector<8xf32>
    %461 = vector.multi_reduction <add>, %460, %cst_134 [1] : vector<8x32xf32> to vector<8xf32>
    %462 = vector.shape_cast %461 : vector<8xf32> to vector<8x1xf32>
    %cst_135 = arith.constant 3.200000e+01 : f32
    %463 = vector.broadcast %cst_135 : f32 to vector<8x1xf32>
    %464 = arith.divf %462, %463 : vector<8x1xf32>
    %465 = vector.broadcast %464 : vector<8x1xf32> to vector<8x32xf32>
    %466 = arith.subf %460, %465 : vector<8x32xf32>
    %467 = arith.mulf %466, %466 : vector<8x32xf32>
    %cst_136 = arith.constant dense<0.000000e+00> : vector<8xf32>
    %468 = vector.multi_reduction <add>, %467, %cst_136 [1] : vector<8x32xf32> to vector<8xf32>
    %469 = vector.shape_cast %468 : vector<8xf32> to vector<8x1xf32>
    %cst_137 = arith.constant 3.200000e+01 : f32
    %470 = vector.broadcast %cst_137 : f32 to vector<8x1xf32>
    %471 = arith.divf %469, %470 : vector<8x1xf32>
    %cst_138 = arith.constant 9.99999974E-6 : f32
    %472 = vector.broadcast %cst_138 : f32 to vector<8x1xf32>
    %473 = arith.addf %471, %472 : vector<8x1xf32>
    %474 = math.rsqrt %473 : vector<8x1xf32>
    %475 = vector.broadcast %474 : vector<8x1xf32> to vector<8x32xf32>
    %476 = arith.mulf %466, %475 : vector<8x32xf32>
    %477 = arith.mulf %474, %474 : vector<8x1xf32>
    %478 = arith.mulf %471, %477 : vector<8x1xf32>
    %cst_139 = arith.constant 9.99999974E-6 : f32
    %479 = vector.broadcast %cst_139 : f32 to vector<8x1xf32>
    %480 = arith.addf %478, %479 : vector<8x1xf32>
    %481 = math.rsqrt %480 : vector<8x1xf32>
    %482 = vector.broadcast %481 : vector<8x1xf32> to vector<8x32xf32>
    %483 = arith.mulf %476, %482 : vector<8x32xf32>
    %484 = arith.mulf %483, %5 : vector<8x32xf32>
    %485 = arith.addf %484, %8 : vector<8x32xf32>
    %486 = arith.index_cast %c7_i32 : i32 to index
    %c0_140 = arith.constant 0 : index
    %c0_141 = arith.constant 0 : index
    %487 = vector.load %arg7[%486, %c0_140, %c0_141] : memref<8x8x32xf32, #tpu.memory_space<vmem>>, vector<1x8x32xf32>
    %488 = vector.shape_cast %487 : vector<1x8x32xf32> to vector<8x32xf32>
    %489 = vector.shape_cast %485 : vector<8x32xf32> to vector<1x8x32xf32>
    tpu.vector_store %arg7[%486, %c0_140, %c0_141], %489 {strides = array<i32>} : memref<8x8x32xf32, #tpu.memory_space<vmem>>, vector<1x8x32xf32>,
    %c8_i32 = arith.constant 8 : i32
    %c0_142 = arith.constant 0 : index
    %c0_143 = arith.constant 0 : index
    %490 = vector.load %arg9[%c0_142, %c0_143] : memref<8x32xf32, #tpu.memory_space<vmem>>, vector<8x32xf32>
    tpu.vector_store %arg9[%c0_142, %c0_143], %476 {strides = array<i32>} : memref<8x32xf32, #tpu.memory_space<vmem>>, vector<8x32xf32>,
    %c1_i32_144 = arith.constant 1 : i32
    %491 = arith.cmpi eq, %arg1, %c1_i32_144 : i32
    %492 = arith.extui %491 : i1 to i32
    %c0_i32_145 = arith.constant 0 : i32
    %493 = arith.cmpi ne, %492, %c0_i32_145 : i32
    scf.if %493 {
      %c0_146 = arith.constant 0 : index
      %c0_147 = arith.constant 0 : index
      %494 = vector.load %arg8[%c0_146, %c0_147] : memref<8x32xf32, #tpu.memory_space<vmem>>, vector<8x32xf32>
      tpu.vector_store %arg8[%c0_146, %c0_147], %476 {strides = array<i32>} : memref<8x32xf32, #tpu.memory_space<vmem>>, vector<8x32xf32>,
    } else {
    }
    return
  }
  func.func @transform_0(%arg0: i32, %arg1: i32) -> (i32, i32, i32) {
    %c0_i32 = arith.constant 0 : i32
    %c0_i32_0 = arith.constant 0 : i32
    return %arg1, %arg0, %c0_i32 : i32, i32, i32
  }
  func.func @transform_1(%arg0: i32, %arg1: i32) -> (i32, i32) {
    %c0_i32 = arith.constant 0 : i32
    %c0_i32_0 = arith.constant 0 : i32
    %c0_i32_1 = arith.constant 0 : i32
    return %c0_i32, %c0_i32_0 : i32, i32
  }
  func.func @transform_2(%arg0: i32, %arg1: i32) -> (i32, i32) {
    %c0_i32 = arith.constant 0 : i32
    %c0_i32_0 = arith.constant 0 : i32
    %c0_i32_1 = arith.constant 0 : i32
    return %c0_i32, %c0_i32_0 : i32, i32
  }
  func.func @transform_3(%arg0: i32, %arg1: i32) -> (i32, i32) {
    %c0_i32 = arith.constant 0 : i32
    %c0_i32_0 = arith.constant 0 : i32
    %c0_i32_1 = arith.constant 0 : i32
    return %c0_i32, %c0_i32_0 : i32, i32
  }
  func.func @transform_4(%arg0: i32, %arg1: i32) -> (i32, i32) {
    %c0_i32 = arith.constant 0 : i32
    %c0_i32_0 = arith.constant 0 : i32
    return %arg0, %c0_i32 : i32, i32
  }
  func.func @transform_5(%arg0: i32, %arg1: i32) -> (i32, i32, i32) {
    %c0_i32 = arith.constant 0 : i32
    %c0_i32_0 = arith.constant 0 : i32
    return %arg1, %arg0, %c0_i32 : i32, i32, i32
  }
  func.func @transform_6(%arg0: i32, %arg1: i32) -> (i32, i32) {
    %c0_i32 = arith.constant 0 : i32
    %c0_i32_0 = arith.constant 0 : i32
    return %arg0, %c0_i32 : i32, i32
  }
}

</mosaic_0001>

<llo_original>
// kernel: tpu_custom_call.1
$region0: #{tpu_custom_call.1}
  #allocation0 [shape = 'u32[]', space=smem, size = 0x4, offset = 0x4, fixed_abs, tag = 'smem constant byte address 0x4 - core index']
  #allocation1 [shape = 'u32[72,128]{1,0:T(1,128)}', space=vmem, size = 0x9000, scoped, tag = 'internal scratch']
  #allocation2 [shape = 'f32[8,32]{1,0:T(8,128)}', space=vmem, size = 0x1000, scoped, tag = 'scratch operand']
  %s0 = inlined_call_operand.hbm [shape: f32[16,16,96], index: 0, kind: input, shape index: {}]
  %s1 = inlined_call_operand.hbm [shape: f32[32,96], index: 1, kind: input, shape index: {}]
  %s2 = inlined_call_operand.vmem [shape: f32[1,32], index: 2, kind: input, shape index: {}]
  %s3 = inlined_call_operand.vmem [shape: f32[1,32], index: 3, kind: input, shape index: {}]
  %s4 = inlined_call_operand.hbm [shape: f32[16,32], index: 4, kind: input, shape index: {}]
  %s5 = inlined_call_operand.hbm [shape: f32[16,16,32], index: 5, kind: output, shape index: {0}]
  %s6 = inlined_call_operand.hbm [shape: f32[16,32], index: 6, kind: output, shape index: {1}]
  %7 = xla_tuple %s5, %s6
  %s8 = sld [smem:[#allocation0]]
  $region81: #{tpu_custom_call.1} parent=0
    _
  %s10 = ssub.s32 1, %s8
  %s11 = scalar_select 0, %s10, %s8
  $region1: #{tpu_custom_call.1} parent=0
    #allocation3 [shape = 'u8[65536]{0}', space=vmem, size = 0x10000, scoped, tag = 'input window, operand 0']
    #allocation4 [shape = 's32[2]{0}', space=sflag, size = 0x8, scoped, tag = 'scoped memory for tpu_custom_call.1']
    #allocation5 [shape = 's32[2]{0}', space=sflag, size = 0x8, scoped, tag = 'scoped memory for tpu_custom_call.1']
    #allocation6 [shape = 'u8[16384]{0}', space=vmem, size = 0x4000, scoped, tag = 'input window, operand 1, single buffered']
    #allocation7 [shape = 's32[1]{0}', space=sflag, size = 0x4, scoped, tag = 'scoped memory for tpu_custom_call.1']
    #allocation8 [shape = 'u8[8192]{0}', space=vmem, size = 0x2000, scoped, tag = 'input window, operand 4']
    #allocation9 [shape = 'u8[65536]{0}', space=vmem, size = 0x10000, scoped, tag = 'output window, operand 0']
    #allocation10 [shape = 'u8[8192]{0}', space=vmem, size = 0x2000, scoped, tag = 'output window, operand 1']
    #allocation11 [shape = 's32[2]{0}', space=sflag, size = 0x8, scoped, tag = 'scoped memory for tpu_custom_call.1']
    %12 = vsyncpa [#allocation4], 0
    %s13 = scalar_lea.sflag [#allocation4], 1
    %14 = vsyncpa %s13, 0
    %15 = vsyncpa [#allocation7], 0
    %16 = vsyncpa [#allocation5], 0
    %s17 = scalar_lea.sflag [#allocation5], 1
    %18 = vsyncpa %s17, 0
    %19 = vsyncpa [#allocation11], 0
    %s20 = scalar_lea.sflag [#allocation11], 1
    %21 = vsyncpa %s20, 0
    loop: start=0, step=1, limit=6
    $region2: #{tpu_custom_call.1} parent=1 // loop_pre_header
      _
    $region3: #{tpu_custom_call.1} parent=1 // loop_header
      %s23 = sphi 0, %s27
      %p24 = scmp.ge.s32.totalorder %s23, 6
      %s30 = sphi 0, %s42
      %s31 = sphi 0, %s38
      %s32 = sphi 0, %s30
      %s33 = sphi 0, %s31
      %s34 = sphi 0, %s32
      %s35 = sphi 0, %s33
      %s47 = sphi 0, %s49
      %s50 = sphi 0, %s47
      %s51 = sphi 0, %s50
      %s67 = sphi 0, %s51
      %s71 = sphi 0, %s71
      %s73 = sphi 0, %s71
      %s74 = sphi 0, %s73
      %s88 = sphi 0, %s74
      %s92 = sphi 0, %s92
      %s94 = sphi 0, %s92
      %s95 = sphi 0, %s94
      %s109 = sphi 0, %s95
      %s113 = sphi 0, %s113
      %s115 = sphi 0, %s113
      %s116 = sphi 0, %s115
      %s130 = sphi 0, %s116
      %s136 = sphi 0, %s138
      %s139 = sphi 0, %s136
      %s140 = sphi 0, %s139
      %s156 = sphi 0, %s140
      %s164 = sphi 0, %s166
      %s167 = sphi 0, %s164
      %s168 = sphi 0, %s167
      %s184 = sphi 0, %s168
      %s190 = sphi 0, %s192
      %s193 = sphi 0, %s190
      %s194 = sphi 0, %s193
      %s210 = sphi 0, %s194
    $region4: #{tpu_custom_call.1} parent=1 // loop_header_branch
      %26 = sbr.rel (%p24) target = $region8
    $region5: #{tpu_custom_call.1} parent=1 // loop_body
      %s28 = ssub.s32 %s23, 1
      %s29 = ssub.s32 %s23, 2
      %s36 = sadd.s32 1, %s31
      %p37 = scmp.ge.s32.totalorder %s36, 2
      %s38 = scalar_select %p37, 0, %s36
      %s39 = sadd.s32 1, %s30
      %s40 = scalar_select %p37, %s39, %s30
      %p41 = scmp.ge.s32.totalorder %s40, 2
      %s42 = scalar_select %p41, 0, %s40
      %s43 = ssub.s32 %s31, %s38
      %s44 = ssub.s32 %s30, %s42
      %s45 = sor.u32 %s43, %s44
      %p46 = scmp.eq.s32.totalorder %s45, 0
      %s48 = sadd.s32 %s47, 1
      %s49 = scalar_select %p46, %s47, %s48
      %p52 = pneg %p46
      %p53 = scmp.eq.s32.totalorder %s23, 3
      %p54 = por %p52, %p53
      %p55 = scmp.ne.s32.totalorder %s47, %s50
      %p56 = scmp.eq.s32.totalorder %s23, 0
      %p57 = por %p55, %p56
      %p58 = scmp.ne.s32.totalorder %s47, %s50
      %p59 = scmp.eq.s32.totalorder %s28, 3
      %p60 = por %p58, %p59
      %p61 = scmp.ne.s32.totalorder %s50, %s51
      %p62 = scmp.eq.s32.totalorder %s28, 0
      %p63 = por %p61, %p62
      %p64 = scmp.ne.s32.totalorder %s50, %s51
      %p65 = scmp.eq.s32.totalorder %s29, 3
      %p66 = por %p64, %p65
      %p68 = scmp.ne.s32.totalorder %s51, %s67
      %p69 = scmp.eq.s32.totalorder %s29, 0
      %p70 = por %p68, %p69
      %s72 = sadd.s32 %s71, 1
      %p75 = scmp.eq.s32.totalorder %s23, 3
      %p76 = scmp.ne.s32.totalorder %s71, %s73
      %p77 = scmp.eq.s32.totalorder %s23, 0
      %p78 = por %p76, %p77
      %p79 = scmp.ne.s32.totalorder %s71, %s73
      %p80 = scmp.eq.s32.totalorder %s28, 3
      %p81 = por %p79, %p80
      %p82 = scmp.ne.s32.totalorder %s73, %s74
      %p83 = scmp.eq.s32.totalorder %s28, 0
      %p84 = por %p82, %p83
      %p85 = scmp.ne.s32.totalorder %s73, %s74
      %p86 = scmp.eq.s32.totalorder %s29, 3
      %p87 = por %p85, %p86
      %p89 = scmp.ne.s32.totalorder %s74, %s88
      %p90 = scmp.eq.s32.totalorder %s29, 0
      %p91 = por %p89, %p90
      %s93 = sadd.s32 %s92, 1
      %p96 = scmp.eq.s32.totalorder %s23, 3
      %p97 = scmp.ne.s32.totalorder %s92, %s94
      %p98 = scmp.eq.s32.totalorder %s23, 0
      %p99 = por %p97, %p98
      %p100 = scmp.ne.s32.totalorder %s92, %s94
      %p101 = scmp.eq.s32.totalorder %s28, 3
      %p102 = por %p100, %p101
      %p103 = scmp.ne.s32.totalorder %s94, %s95
      %p104 = scmp.eq.s32.totalorder %s28, 0
      %p105 = por %p103, %p104
      %p106 = scmp.ne.s32.totalorder %s94, %s95
      %p107 = scmp.eq.s32.totalorder %s29, 3
      %p108 = por %p106, %p107
      %p110 = scmp.ne.s32.totalorder %s95, %s109
      %p111 = scmp.eq.s32.totalorder %s29, 0
      %p112 = por %p110, %p111
      %s114 = sadd.s32 %s113, 1
      %p117 = scmp.eq.s32.totalorder %s23, 3
      %p118 = scmp.ne.s32.totalorder %s113, %s115
      %p119 = scmp.eq.s32.totalorder %s23, 0
      %p120 = por %p118, %p119
      %p121 = scmp.ne.s32.totalorder %s113, %s115
      %p122 = scmp.eq.s32.totalorder %s28, 3
      %p123 = por %p121, %p122
      %p124 = scmp.ne.s32.totalorder %s115, %s116
      %p125 = scmp.eq.s32.totalorder %s28, 0
      %p126 = por %p124, %p125
      %p127 = scmp.ne.s32.totalorder %s115, %s116
      %p128 = scmp.eq.s32.totalorder %s29, 3
      %p129 = por %p127, %p128
      %p131 = scmp.ne.s32.totalorder %s116, %s130
      %p132 = scmp.eq.s32.totalorder %s29, 0
      %p133 = por %p131, %p132
      %s134 = ssub.s32 %s30, %s42
      %p135 = scmp.eq.s32.totalorder %s134, 0
      %s137 = sadd.s32 %s136, 1
      %s138 = scalar_select %p135, %s136, %s137
      %p141 = pneg %p135
      %p142 = scmp.eq.s32.totalorder %s23, 3
      %p143 = por %p141, %p142
      %p144 = scmp.ne.s32.totalorder %s136, %s139
      %p145 = scmp.eq.s32.totalorder %s23, 0
      %p146 = por %p144, %p145
      %p147 = scmp.ne.s32.totalorder %s136, %s139
      %p148 = scmp.eq.s32.totalorder %s28, 3
      %p149 = por %p147, %p148
      %p150 = scmp.ne.s32.totalorder %s139, %s140
      %p151 = scmp.eq.s32.totalorder %s28, 0
      %p152 = por %p150, %p151
      %p153 = scmp.ne.s32.totalorder %s139, %s140
      %p154 = scmp.eq.s32.totalorder %s29, 3
      %p155 = por %p153, %p154
      %p157 = scmp.ne.s32.totalorder %s140, %s156
      %p158 = scmp.eq.s32.totalorder %s29, 0
      %p159 = por %p157, %p158
      %s160 = ssub.s32 %s31, %s38
      %s161 = ssub.s32 %s30, %s42
      %s162 = sor.u32 %s160, %s161
      %p163 = scmp.eq.s32.totalorder %s162, 0
      %s165 = sadd.s32 %s164, 1
      %s166 = scalar_select %p163, %s164, %s165
      %p169 = pneg %p163
      %p170 = scmp.eq.s32.totalorder %s23, 3
      %p171 = por %p169, %p170
      %p172 = scmp.ne.s32.totalorder %s164, %s167
      %p173 = scmp.eq.s32.totalorder %s23, 0
      %p174 = por %p172, %p173
      %p175 = scmp.ne.s32.totalorder %s164, %s167
      %p176 = scmp.eq.s32.totalorder %s28, 3
      %p177 = por %p175, %p176
      %p178 = scmp.ne.s32.totalorder %s167, %s168
      %p179 = scmp.eq.s32.totalorder %s28, 0
      %p180 = por %p178, %p179
      %p181 = scmp.ne.s32.totalorder %s167, %s168
      %p182 = scmp.eq.s32.totalorder %s29, 3
      %p183 = por %p181, %p182
      %p185 = scmp.ne.s32.totalorder %s168, %s184
      %p186 = scmp.eq.s32.totalorder %s29, 0
      %p187 = por %p185, %p186
      %s188 = ssub.s32 %s30, %s42
      %p189 = scmp.eq.s32.totalorder %s188, 0
      %s191 = sadd.s32 %s190, 1
      %s192 = scalar_select %p189, %s190, %s191
      %p195 = pneg %p189
      %p196 = scmp.eq.s32.totalorder %s23, 3
      %p197 = por %p195, %p196
      %p198 = scmp.ne.s32.totalorder %s190, %s193
      %p199 = scmp.eq.s32.totalorder %s23, 0
      %p200 = por %p198, %p199
      %p201 = scmp.ne.s32.totalorder %s190, %s193
      %p202 = scmp.eq.s32.totalorder %s28, 3
      %p203 = por %p201, %p202
      %p204 = scmp.ne.s32.totalorder %s193, %s194
      %p205 = scmp.eq.s32.totalorder %s28, 0
      %p206 = por %p204, %p205
      %p207 = scmp.ne.s32.totalorder %s193, %s194
      %p208 = scmp.eq.s32.totalorder %s29, 3
      %p209 = por %p207, %p208
      %p211 = scmp.ne.s32.totalorder %s194, %s210
      %p212 = scmp.eq.s32.totalorder %s29, 0
      %p213 = por %p211, %p212
      %p214 = scmp.le.s32.totalorder 1, %s23
      %p215 = scmp.lt.s32.totalorder %s23, 5
      %p216 = pnand %p214, %p215
      %p217 = pneg %p216
      // Predicated region
      $region9: #{tpu_custom_call.1} parent=5 // pred_check
        _
      $region10: #{tpu_custom_call.1} parent=5 // pred_check_branch
        %219 = sbr.rel (%p216) target = $region12
      $region11: #{tpu_custom_call.1} parent=5 // pred_region
        %s220 = ssub.s32 %s23, 1
        // Predicated region
        $region13: #{tpu_custom_call.1} parent=11 // pred_check
          %p221 = pneg %p84
        $region14: #{tpu_custom_call.1} parent=11 // pred_check_branch
          %223 = sbr.rel (%p221) target = $region16
        $region15: #{tpu_custom_call.1} parent=11 // pred_region
          %225 = vsyncadd [#allocation7], 0
          %s226 = sshll.u32 %s1, 4
          %s227 = int_to_ptr.hbm [resolvable:$true] %s226
          %s228 = sshll.u32 [#allocation6], 4
          %s229 = int_to_ptr.vmem [resolvable:$true] %s228
          %234 = dma.hbm_to_vmem [thread:$0]  %s227, 512, %s229, [#allocation7], 128, 128, 8
        $region16: #{tpu_custom_call.1} parent=11 // pred_fallthru
          _
        // Predicated region
        $region17: #{tpu_custom_call.1} parent=11 // pred_check
          %p235 = pneg %p105
        $region18: #{tpu_custom_call.1} parent=11 // pred_check_branch
          %237 = sbr.rel (%p235) target = $region20
        $region19: #{tpu_custom_call.1} parent=11 // pred_region
          _
        $region20: #{tpu_custom_call.1} parent=11 // pred_fallthru
          _
        // Predicated region
        $region21: #{tpu_custom_call.1} parent=11 // pred_check
          %p238 = pneg %p126
        $region22: #{tpu_custom_call.1} parent=11 // pred_check_branch
          %240 = sbr.rel (%p238) target = $region24
        $region23: #{tpu_custom_call.1} parent=11 // pred_region
          _
        $region24: #{tpu_custom_call.1} parent=11 // pred_fallthru
          _
      $region12: #{tpu_custom_call.1} parent=5 // pred_fallthru
        _
      %p241 = scmp.lt.s32.totalorder %s23, 4
      // Predicated region
      $region25: #{tpu_custom_call.1} parent=5 // pred_check
        %p242 = pneg %p241
      $region26: #{tpu_custom_call.1} parent=5 // pred_check_branch
        %244 = sbr.rel (%p242) target = $region28
      $region27: #{tpu_custom_call.1} parent=5 // pred_region
        // Predicated region
        $region29: #{tpu_custom_call.1} parent=27 // pred_check
          %p245 = pneg %p57
        $region30: #{tpu_custom_call.1} parent=27 // pred_check_branch
          %247 = sbr.rel (%p245) target = $region32
        $region31: #{tpu_custom_call.1} parent=27 // pred_region
          %s248 = sand.u32 %s23, 1
          %s249 = scalar_lea.sflag [#allocation4], %s248
          %s250 = sand.u32 %s47, 1
          %s251 = smul.addr %s250, 64
          %s252 = scalar_lea.vmem [#allocation3], %s251
          %s253 = smul.u32 8, %s31
          %255 = vsyncadd %s249, 0
          %s256 = smul.addr %s253, 2
          %s257 = sadd.s32 %s30, %s256
          %s258 = smul.addr %s257, 8
          %s259 = scalar_lea.hbm %s0, %s258
          %s260 = sshll.u32 %s259, 4
          %s261 = int_to_ptr.hbm [resolvable:$true] %s260
          %s262 = sshll.u32 %s252, 4
          %s263 = int_to_ptr.vmem [resolvable:$true] %s262
          %268 = dma.hbm_to_vmem [thread:$0]  %s261, 1024, %s263, %s249, 256, 128, 8
        $region32: #{tpu_custom_call.1} parent=27 // pred_fallthru
          _
        // Predicated region
        $region33: #{tpu_custom_call.1} parent=27 // pred_check
          %p269 = pneg %p146
        $region34: #{tpu_custom_call.1} parent=27 // pred_check_branch
          %271 = sbr.rel (%p269) target = $region36
        $region35: #{tpu_custom_call.1} parent=27 // pred_region
          %s272 = sand.u32 %s23, 1
          %s273 = scalar_lea.sflag [#allocation4], %s272
          %s274 = sand.u32 %s136, 1
          %s275 = smul.addr %s274, 8
          %s276 = scalar_lea.vmem [#allocation8], %s275
          %278 = vsyncadd %s273, 0
          %s279 = smul.addr %s30, 8
          %s280 = scalar_lea.hbm %s4, %s279
          %s282 = sshll.u32 %s280, 4
          %s283 = int_to_ptr.hbm [resolvable:$true] %s282
          %s284 = sshll.u32 %s276, 4
          %s285 = int_to_ptr.vmem [resolvable:$true] %s284
          %287 = dma.hbm_to_vmem [thread:$0]  %s283, 128, %s285, %s273
        $region36: #{tpu_custom_call.1} parent=27 // pred_fallthru
          _
      $region28: #{tpu_custom_call.1} parent=5 // pred_fallthru
        _
      %p288 = scmp.le.s32.totalorder 1, %s23
      %p289 = scmp.lt.s32.totalorder %s23, 5
      %p290 = pnand %p288, %p289
      %p291 = pneg %p290
      // Predicated region
      $region37: #{tpu_custom_call.1} parent=5 // pred_check
        _
      $region38: #{tpu_custom_call.1} parent=5 // pred_check_branch
        %293 = sbr.rel (%p290) target = $region40
      $region39: #{tpu_custom_call.1} parent=5 // pred_region
        %s294 = ssub.s32 %s23, 1
        %s295 = sand.u32 %s28, 1
        %s296 = scalar_lea.sflag [#allocation4], %s295
        %s297 = sand.u32 %s50, 1
        %s298 = smul.addr %s297, 64
        %s299 = scalar_lea.vmem [#allocation3], %s298
        // Predicated region
        $region41: #{tpu_custom_call.1} parent=39 // pred_check
          %p300 = pneg %p63
        $region42: #{tpu_custom_call.1} parent=39 // pred_check_branch
          %302 = sbr.rel (%p300) target = $region44
        $region43: #{tpu_custom_call.1} parent=39 // pred_region
          %304 = dma.done %s296, 1024
        $region44: #{tpu_custom_call.1} parent=39 // pred_fallthru
          _
        // Predicated region
        $region45: #{tpu_custom_call.1} parent=39 // pred_check
          %p305 = pneg %p84
        $region46: #{tpu_custom_call.1} parent=39 // pred_check_branch
          %307 = sbr.rel (%p305) target = $region48
        $region47: #{tpu_custom_call.1} parent=39 // pred_region
          %309 = dma.done [#allocation7], 512
        $region48: #{tpu_custom_call.1} parent=39 // pred_fallthru
          _
        %s310 = sand.u32 %s28, 1
        %s311 = scalar_lea.sflag [#allocation4], %s310
        %s312 = sand.u32 %s139, 1
        %s313 = smul.addr %s312, 8
        %s314 = scalar_lea.vmem [#allocation8], %s313
        // Predicated region
        $region49: #{tpu_custom_call.1} parent=39 // pred_check
          %p315 = pneg %p152
        $region50: #{tpu_custom_call.1} parent=39 // pred_check_branch
          %317 = sbr.rel (%p315) target = $region52
        $region51: #{tpu_custom_call.1} parent=39 // pred_region
          %319 = dma.done %s311, 128
        $region52: #{tpu_custom_call.1} parent=39 // pred_fallthru
          _
        %s320 = sand.u32 %s28, 1
        %s321 = scalar_lea.sflag [#allocation4], %s320
        %s322 = sand.u32 %s50, 1
        %s323 = smul.addr %s322, 64
        %s324 = scalar_lea.vmem [#allocation3], %s323
        %p325 = pneg %p63
        %p326 = pneg %p60
        %p327 = pneg %p84
        %p328 = pneg %p81
        %p329 = pneg %p105
        %p330 = pneg %p102
        %p331 = pneg %p126
        %p332 = pneg %p123
        %s333 = sand.u32 %s28, 1
        %s334 = scalar_lea.sflag [#allocation4], %s333
        %s335 = sand.u32 %s139, 1
        %s336 = smul.addr %s335, 8
        %s337 = scalar_lea.vmem [#allocation8], %s336
        %p338 = pneg %p152
        %p339 = pneg %p149
        %p340 = pneg %p180
        %p341 = pneg %p177
        %s342 = sand.u32 %s167, 1
        %s343 = scalar_lea.sflag [#allocation5], %s342
        %s344 = sand.u32 %s167, 1
        %s345 = smul.addr %s344, 64
        %s346 = scalar_lea.vmem [#allocation9], %s345
        %p347 = pneg %p206
        %p348 = pneg %p203
        %s349 = sand.u32 %s193, 1
        %s350 = scalar_lea.sflag [#allocation11], %s349
        %s351 = sand.u32 %s193, 1
        %s352 = smul.addr %s351, 8
        %s353 = scalar_lea.vmem [#allocation10], %s352
        %s354 = smul.u32 8, %s33
        %s355 = smul.u32 8, %s33
        %p356 = scmp.eq.s32.totalorder %s33, 0
        // Predicated region
        $region53: #{tpu_custom_call.1} parent=39 // pred_check
          %p357 = pneg %p356
        $region54: #{tpu_custom_call.1} parent=39 // pred_check_branch
          %359 = sbr.rel (%p357) target = $region56
        $region55: #{tpu_custom_call.1} parent=39 // pred_region
          %v360 = vld [vmem:[%s314] sm:$0xff]
          %vm361 = vcmask 261120
          %362 = vst.msk [vmem:[#allocation2] sm:$0xff] %vm361, %v360
        $region56: #{tpu_custom_call.1} parent=39 // pred_fallthru
          _
        %v363 = vld [vmem:[%s2] sm:$0x1]
        %v365 = vperm.slane %v363, 0
        %v366 = vld [vmem:[%s3] sm:$0x1]
        %v368 = vperm.slane %v366, 0
        %v369 = vld [vmem:[#allocation2] sm:$0xff]
        %v370 = vld [vmem:[%s299] sm:$0xff]
        %v371 = vmul.f32 %v369, %v369
        %vm372 = vcmask 261120
        %v373 = vsel %vm372, %v371, 0.0
        %374 = vadd.xlane.f32.xlu0 %v373
        %v375 = vpop.xlane.xlu0 %374
        %v376 = vrsqrt.pop %v375
        %v377 = vmul.f32 %v376, %v375
        %v378 = vmul.f32 %v377, %v376
        %v379 = vmul.f32 0.5, %v378
        %v380 = vsub.f32 1.5, %v379
        %v381 = vmul.f32 %v376, %v380
        %v382 = vmul.f32 %v375, %v381
        %vm383 = vcmp.eq.f32.partialorder %v375, inf
        %v384 = vsel %vm383, %v375, %v382
        %vm385 = vcmp.eq.f32.partialorder %v375, 0.0
        %v386 = vand.u32 %v375, 2147483648
        %v387 = vsel %vm385, %v386, %v384
        %v388 = vadd.f32 %v387, 1e-08
        %v389 = vrcp.pop %v388
        %v390 = vmul.f32 %v388, %v389
        %v391 = vsub.f32 1.0, %v390
        %v392 = vmul.f32 %v389, %v391
        %v393 = vadd.f32 %v389, %v392
        %vm394 = vweird.f32 %v388
        %vm395 = vweird.f32 %v389
        %vm396 = vmor %vm394, %vm395
        %v397 = vsel %vm396, %v389, %v393
        %v398 = vand.u32 2147483647, %v388
        %vm399 = vcmp.eq.f32.partialorder %v398, 8.507059e+37
        %v400 = vand.u32 %v388, 2147483648
        %v401 = vor.u32 1.1754944e-38, %v400
        %v402 = vsel %vm399, %v401, %v397
        %v403 = vmul.f32 %v369, %v402
        %v404 = vld [vmem:[#allocation6] sm:$0xff]
        %v405 = vld [vmem:[#allocation6 + $0x8] sm:$0xff]
        %v406 = vld [vmem:[#allocation6 + $0x10] sm:$0xff]
        %v407 = vld [vmem:[#allocation6 + $0x18] sm:$0xff]
        %v409 = vsel %vm372, %v403, 0
        %411 = vmatpush.msra.mxu0 0.0
        %412 = vmatpush.msra.mxu0 0.0
        %413 = vmatpush.msra.mxu0 0.0
        %414 = vmatpush.msra.mxu0 0.0
        %415 = vmatpush.msra.mxu0 0.0
        %416 = vmatpush.msra.mxu0 0.0
        %417 = vmatpush.msra.mxu0 0.0
        %418 = vmatpush.msra.mxu0 0.0
        %419 = vmatpush.msra.mxu0 0.0
        %420 = vmatpush.msra.mxu0 0.0
        %421 = vmatpush.msra.mxu0 0.0
        %422 = vmatpush.msra.mxu0 0.0
        %423 = vmatpush.msra.mxu0 %v407
        %424 = vmatpush.msra.mxu0 %v406
        %425 = vmatpush.msra.mxu0 %v405
        %426 = vmatpush.msra.mxu0 %v404
        %427 = vmatmul.f32.gmra.mxu0 %v409
        %v428 = vpop.f32.mrf.mxu0
        %v429 = vadd.f32 0.0, %v428
        %430 = vdwg.mxu0
        %v431 = vadd.f32 %v370, %v429
        %v432 = vxor.u32 %v431, 2147483648
        %v433 = vmul.f32 %v432, 1.442695
        %v434 = vpow.pop %v433
        %v435 = vadd.f32 %v434, 1.0
        %v436 = vrcp.pop %v435
        %v437 = vmul.f32 %v435, %v436
        %v438 = vsub.f32 1.0, %v437
        %v439 = vmul.f32 %v436, %v438
        %v440 = vadd.f32 %v436, %v439
        %vm441 = vweird.f32 %v435
        %vm442 = vweird.f32 %v436
        %vm443 = vmor %vm441, %vm442
        %v444 = vsel %vm443, %v436, %v440
        %v445 = vand.u32 2147483647, %v435
        %vm446 = vcmp.eq.f32.partialorder %v445, 8.507059e+37
        %v447 = vand.u32 %v435, 2147483648
        %v448 = vor.u32 1.1754944e-38, %v447
        %v449 = vsel %vm446, %v448, %v444
        %v450 = vmul.f32 1.0, %v449
        %v451 = vtanh.pop %v431
        %452 = vrot.lane.b32.xlu0 %v403, 32
        %v453 = vpop.permute.xlu0 %452
        %v455 = vmul.f32 %v450, %v453
        %457 = vrot.lane.b32.xlu0 %v451, 64
        %v458 = vpop.permute.xlu0 %457
        %v460 = vmul.f32 %v450, %v458
        %462 = vrot.lane.b32.xlu0 %v460, 32
        %v463 = vpop.permute.xlu0 %462
        %v465 = vadd.f32 %v455, %v463
        %467 = vrot.lane.b32.xlu0 %v465, 96
        %v468 = vpop.permute.xlu0 %467
        %v470 = vsel %vm372, %v468, 0.0
        %471 = vadd.xlane.f32.xlu0 %v470
        %v472 = vpop.xlane.xlu0 %471
        %v473 = vrcp.pop 32.0
        %v474 = vmul.f32 32.0, %v473
        %v475 = vsub.f32 1.0, %v474
        %v476 = vmul.f32 %v473, %v475
        %v477 = vadd.f32 %v473, %v476
        %vm478 = vweird.f32 %v473
        %v479 = vsel %vm478, %v473, %v477
        %v480 = vmul.f32 %v472, %v479
        %v481 = vsub.f32 %v465, %v480
        %v482 = vmul.f32 %v481, %v481
        %484 = vrot.lane.b32.xlu0 %v482, 96
        %v485 = vpop.permute.xlu0 %484
        %v487 = vsel %vm372, %v485, 0.0
        %488 = vadd.xlane.f32.xlu0 %v487
        %v489 = vpop.xlane.xlu0 %488
        %v490 = vmul.f32 %v489, %v479
        %v491 = vadd.f32 %v490, 1e-05
        %v492 = vrsqrt.pop %v491
        %v493 = vmul.f32 %v492, %v491
        %v494 = vmul.f32 %v493, %v492
        %v495 = vmul.f32 0.5, %v494
        %v496 = vsub.f32 1.5, %v495
        %v497 = vmul.f32 %v492, %v496
        %vm498 = vweird.f32 %v491
        %vm499 = vweird.f32 %v492
        %vm500 = vmor %vm498, %vm499
        %v501 = vsel %vm500, %v492, %v497
        %v502 = vmul.f32 %v481, %v501
        %v503 = vmul.f32 %v501, %v501
        %v504 = vmul.f32 %v490, %v503
        %v505 = vadd.f32 %v504, 1e-05
        %v506 = vrsqrt.pop %v505
        %v507 = vmul.f32 %v506, %v505
        %v508 = vmul.f32 %v507, %v506
        %v509 = vmul.f32 0.5, %v508
        %v510 = vsub.f32 1.5, %v509
        %v511 = vmul.f32 %v506, %v510
        %vm512 = vweird.f32 %v505
        %vm513 = vweird.f32 %v506
        %vm514 = vmor %vm512, %vm513
        %v515 = vsel %vm514, %v506, %v511
        %v516 = vmul.f32 %v502, %v515
        %517 = vrot.lane.b32.xlu0 %v365, 32
        %v518 = vpop.permute.xlu0 %517
        %v520 = vmul.f32 %v516, %v518
        %521 = vrot.lane.b32.xlu0 %v368, 32
        %v522 = vpop.permute.xlu0 %521
        %v524 = vadd.f32 %v520, %v522
        %526 = vrot.lane.b32.xlu0 %v524, 96
        %v527 = vpop.permute.xlu0 %526
        %529 = vst.msk [vmem:[%s346] sm:$0xff] %vm372, %v527
        %s530 = scalar_lea.vmem %s299, 8 [#allocation3]
        %v531 = vld [vmem:[%s530] sm:$0xff]
        %v532 = vmul.f32 %v502, %v502
        %534 = vrot.lane.b32.xlu0 %v532, 96
        %v535 = vpop.permute.xlu0 %534
        %v537 = vsel %vm372, %v535, 0.0
        %538 = vadd.xlane.f32.xlu0 %v537
        %v539 = vpop.xlane.xlu0 %538
        %v540 = vrsqrt.pop %v539
        %v541 = vmul.f32 %v540, %v539
        %v542 = vmul.f32 %v541, %v540
        %v543 = vmul.f32 0.5, %v542
        %v544 = vsub.f32 1.5, %v543
        %v545 = vmul.f32 %v540, %v544
        %v546 = vmul.f32 %v539, %v545
        %vm547 = vcmp.eq.f32.partialorder %v539, inf
        %v548 = vsel %vm547, %v539, %v546
        %vm549 = vcmp.eq.f32.partialorder %v539, 0.0
        %v550 = vand.u32 %v539, 2147483648
        %v551 = vsel %vm549, %v550, %v548
        %v552 = vadd.f32 %v551, 1e-08
        %v553 = vrcp.pop %v552
        %v554 = vmul.f32 %v552, %v553
        %v555 = vsub.f32 1.0, %v554
        %v556 = vmul.f32 %v553, %v555
        %v557 = vadd.f32 %v553, %v556
        %vm558 = vweird.f32 %v552
        %vm559 = vweird.f32 %v553
        %vm560 = vmor %vm558, %vm559
        %v561 = vsel %vm560, %v553, %v557
        %v562 = vand.u32 2147483647, %v552
        %vm563 = vcmp.eq.f32.partialorder %v562, 8.507059e+37
        %v564 = vand.u32 %v552, 2147483648
        %v565 = vor.u32 1.1754944e-38, %v564
        %v566 = vsel %vm563, %v565, %v561
        %v567 = vmul.f32 %v502, %v566
        %v568 = vld [vmem:[#allocation6] sm:$0xff]
        %v569 = vld [vmem:[#allocation6 + $0x8] sm:$0xff]
        %v570 = vld [vmem:[#allocation6 + $0x10] sm:$0xff]
        %v571 = vld [vmem:[#allocation6 + $0x18] sm:$0xff]
        %573 = vrot.lane.b32.xlu0 %v567, 96
        %v574 = vpop.permute.xlu0 %573
        %v575 = vsel %vm372, %v574, 0
        %577 = vmatpush.msra.mxu0 0.0
        %578 = vmatpush.msra.mxu0 0.0
        %579 = vmatpush.msra.mxu0 0.0
        %580 = vmatpush.msra.mxu0 0.0
        %581 = vmatpush.msra.mxu0 0.0
        %582 = vmatpush.msra.mxu0 0.0
        %583 = vmatpush.msra.mxu0 0.0
        %584 = vmatpush.msra.mxu0 0.0
        %585 = vmatpush.msra.mxu0 0.0
        %586 = vmatpush.msra.mxu0 0.0
        %587 = vmatpush.msra.mxu0 0.0
        %588 = vmatpush.msra.mxu0 0.0
        %589 = vmatpush.msra.mxu0 %v571
        %590 = vmatpush.msra.mxu0 %v570
        %591 = vmatpush.msra.mxu0 %v569
        %592 = vmatpush.msra.mxu0 %v568
        %593 = vmatmul.f32.gmra.mxu0 %v575
        %v594 = vpop.f32.mrf.mxu0
        %v595 = vadd.f32 0.0, %v594
        %596 = vdwg.mxu0
        %v597 = vadd.f32 %v531, %v595
        %v598 = vxor.u32 %v597, 2147483648
        %v599 = vmul.f32 %v598, 1.442695
        %v600 = vpow.pop %v599
        %v601 = vadd.f32 %v600, 1.0
        %v602 = vrcp.pop %v601
        %v603 = vmul.f32 %v601, %v602
        %v604 = vsub.f32 1.0, %v603
        %v605 = vmul.f32 %v602, %v604
        %v606 = vadd.f32 %v602, %v605
        %vm607 = vweird.f32 %v601
        %vm608 = vweird.f32 %v602
        %vm609 = vmor %vm607, %vm608
        %v610 = vsel %vm609, %v602, %v606
        %v611 = vand.u32 2147483647, %v601
        %vm612 = vcmp.eq.f32.partialorder %v611, 8.507059e+37
        %v613 = vand.u32 %v601, 2147483648
        %v614 = vor.u32 1.1754944e-38, %v613
        %v615 = vsel %vm612, %v614, %v610
        %v616 = vmul.f32 1.0, %v615
        %v617 = vtanh.pop %v597
        %v618 = vmul.f32 %v616, %v567
        %620 = vrot.lane.b32.xlu0 %v617, 64
        %v621 = vpop.permute.xlu0 %620
        %v623 = vmul.f32 %v616, %v621
        %625 = vrot.lane.b32.xlu0 %v623, 32
        %v626 = vpop.permute.xlu0 %625
        %v628 = vadd.f32 %v618, %v626
        %630 = vrot.lane.b32.xlu0 %v628, 96
        %v631 = vpop.permute.xlu0 %630
        %v633 = vsel %vm372, %v631, 0.0
        %634 = vadd.xlane.f32.xlu0 %v633
        %v635 = vpop.xlane.xlu0 %634
        %v636 = vmul.f32 %v635, %v479
        %v637 = vsub.f32 %v628, %v636
        %v638 = vmul.f32 %v637, %v637
        %640 = vrot.lane.b32.xlu0 %v638, 96
        %v641 = vpop.permute.xlu0 %640
        %v643 = vsel %vm372, %v641, 0.0
        %644 = vadd.xlane.f32.xlu0 %v643
        %v645 = vpop.xlane.xlu0 %644
        %v646 = vmul.f32 %v645, %v479
        %v647 = vadd.f32 %v646, 1e-05
        %v648 = vrsqrt.pop %v647
        %v649 = vmul.f32 %v648, %v647
        %v650 = vmul.f32 %v649, %v648
        %v651 = vmul.f32 0.5, %v650
        %v652 = vsub.f32 1.5, %v651
        %v653 = vmul.f32 %v648, %v652
        %vm654 = vweird.f32 %v647
        %vm655 = vweird.f32 %v648
        %vm656 = vmor %vm654, %vm655
        %v657 = vsel %vm656, %v648, %v653
        %v658 = vmul.f32 %v637, %v657
        %v659 = vmul.f32 %v657, %v657
        %v660 = vmul.f32 %v646, %v659
        %v661 = vadd.f32 %v660, 1e-05
        %v662 = vrsqrt.pop %v661
        %v663 = vmul.f32 %v662, %v661
        %v664 = vmul.f32 %v663, %v662
        %v665 = vmul.f32 0.5, %v664
        %v666 = vsub.f32 1.5, %v665
        %v667 = vmul.f32 %v662, %v666
        %vm668 = vweird.f32 %v661
        %vm669 = vweird.f32 %v662
        %vm670 = vmor %vm668, %vm669
        %v671 = vsel %vm670, %v662, %v667
        %v672 = vmul.f32 %v658, %v671
        %v673 = vmul.f32 %v672, %v518
        %v674 = vadd.f32 %v673, %v522
        %676 = vrot.lane.b32.xlu0 %v674, 96
        %v677 = vpop.permute.xlu0 %676
        %s679 = scalar_lea.vmem %s346, 8 [#allocation9]
        %680 = vst.msk [vmem:[%s679] sm:$0xff] %vm372, %v677
        %s681 = scalar_lea.vmem %s299, 16 [#allocation3]
        %v682 = vld [vmem:[%s681] sm:$0xff]
        %v683 = vmul.f32 %v658, %v658
        %685 = vrot.lane.b32.xlu0 %v683, 96
        %v686 = vpop.permute.xlu0 %685
        %v688 = vsel %vm372, %v686, 0.0
        %689 = vadd.xlane.f32.xlu0 %v688
        %v690 = vpop.xlane.xlu0 %689
        %v691 = vrsqrt.pop %v690
        %v692 = vmul.f32 %v691, %v690
        %v693 = vmul.f32 %v692, %v691
        %v694 = vmul.f32 0.5, %v693
        %v695 = vsub.f32 1.5, %v694
        %v696 = vmul.f32 %v691, %v695
        %v697 = vmul.f32 %v690, %v696
        %vm698 = vcmp.eq.f32.partialorder %v690, inf
        %v699 = vsel %vm698, %v690, %v697
        %vm700 = vcmp.eq.f32.partialorder %v690, 0.0
        %v701 = vand.u32 %v690, 2147483648
        %v702 = vsel %vm700, %v701, %v699
        %v703 = vadd.f32 %v702, 1e-08
        %v704 = vrcp.pop %v703
        %v705 = vmul.f32 %v703, %v704
        %v706 = vsub.f32 1.0, %v705
        %v707 = vmul.f32 %v704, %v706
        %v708 = vadd.f32 %v704, %v707
        %vm709 = vweird.f32 %v703
        %vm710 = vweird.f32 %v704
        %vm711 = vmor %vm709, %vm710
        %v712 = vsel %vm711, %v704, %v708
        %v713 = vand.u32 2147483647, %v703
        %vm714 = vcmp.eq.f32.partialorder %v713, 8.507059e+37
        %v715 = vand.u32 %v703, 2147483648
        %v716 = vor.u32 1.1754944e-38, %v715
        %v717 = vsel %vm714, %v716, %v712
        %v718 = vmul.f32 %v658, %v717
        %v719 = vld [vmem:[#allocation6] sm:$0xff]
        %v720 = vld [vmem:[#allocation6 + $0x8] sm:$0xff]
        %v721 = vld [vmem:[#allocation6 + $0x10] sm:$0xff]
        %v722 = vld [vmem:[#allocation6 + $0x18] sm:$0xff]
        %724 = vrot.lane.b32.xlu0 %v718, 96
        %v725 = vpop.permute.xlu0 %724
        %v726 = vsel %vm372, %v725, 0
        %728 = vmatpush.msra.mxu0 0.0
        %729 = vmatpush.msra.mxu0 0.0
        %730 = vmatpush.msra.mxu0 0.0
        %731 = vmatpush.msra.mxu0 0.0
        %732 = vmatpush.msra.mxu0 0.0
        %733 = vmatpush.msra.mxu0 0.0
        %734 = vmatpush.msra.mxu0 0.0
        %735 = vmatpush.msra.mxu0 0.0
        %736 = vmatpush.msra.mxu0 0.0
        %737 = vmatpush.msra.mxu0 0.0
        %738 = vmatpush.msra.mxu0 0.0
        %739 = vmatpush.msra.mxu0 0.0
        %740 = vmatpush.msra.mxu0 %v722
        %741 = vmatpush.msra.mxu0 %v721
        %742 = vmatpush.msra.mxu0 %v720
        %743 = vmatpush.msra.mxu0 %v719
        %744 = vmatmul.f32.gmra.mxu0 %v726
        %v745 = vpop.f32.mrf.mxu0
        %v746 = vadd.f32 0.0, %v745
        %747 = vdwg.mxu0
        %v748 = vadd.f32 %v682, %v746
        %v749 = vxor.u32 %v748, 2147483648
        %v750 = vmul.f32 %v749, 1.442695
        %v751 = vpow.pop %v750
        %v752 = vadd.f32 %v751, 1.0
        %v753 = vrcp.pop %v752
        %v754 = vmul.f32 %v752, %v753
        %v755 = vsub.f32 1.0, %v754
        %v756 = vmul.f32 %v753, %v755
        %v757 = vadd.f32 %v753, %v756
        %vm758 = vweird.f32 %v752
        %vm759 = vweird.f32 %v753
        %vm760 = vmor %vm758, %vm759
        %v761 = vsel %vm760, %v753, %v757
        %v762 = vand.u32 2147483647, %v752
        %vm763 = vcmp.eq.f32.partialorder %v762, 8.507059e+37
        %v764 = vand.u32 %v752, 2147483648
        %v765 = vor.u32 1.1754944e-38, %v764
        %v766 = vsel %vm763, %v765, %v761
        %v767 = vmul.f32 1.0, %v766
        %v768 = vtanh.pop %v748
        %v769 = vmul.f32 %v767, %v718
        %771 = vrot.lane.b32.xlu0 %v768, 64
        %v772 = vpop.permute.xlu0 %771
        %v774 = vmul.f32 %v767, %v772
        %776 = vrot.lane.b32.xlu0 %v774, 32
        %v777 = vpop.permute.xlu0 %776
        %v779 = vadd.f32 %v769, %v777
        %781 = vrot.lane.b32.xlu0 %v779, 96
        %v782 = vpop.permute.xlu0 %781
        %v784 = vsel %vm372, %v782, 0.0
        %785 = vadd.xlane.f32.xlu0 %v784
        %v786 = vpop.xlane.xlu0 %785
        %v787 = vmul.f32 %v786, %v479
        %v788 = vsub.f32 %v779, %v787
        %v789 = vmul.f32 %v788, %v788
        %791 = vrot.lane.b32.xlu0 %v789, 96
        %v792 = vpop.permute.xlu0 %791
        %v794 = vsel %vm372, %v792, 0.0
        %795 = vadd.xlane.f32.xlu0 %v794
        %v796 = vpop.xlane.xlu0 %795
        %v797 = vmul.f32 %v796, %v479
        %v798 = vadd.f32 %v797, 1e-05
        %v799 = vrsqrt.pop %v798
        %v800 = vmul.f32 %v799, %v798
        %v801 = vmul.f32 %v800, %v799
        %v802 = vmul.f32 0.5, %v801
        %v803 = vsub.f32 1.5, %v802
        %v804 = vmul.f32 %v799, %v803
        %vm805 = vweird.f32 %v798
        %vm806 = vweird.f32 %v799
        %vm807 = vmor %vm805, %vm806
        %v808 = vsel %vm807, %v799, %v804
        %v809 = vmul.f32 %v788, %v808
        %v810 = vmul.f32 %v808, %v808
        %v811 = vmul.f32 %v797, %v810
        %v812 = vadd.f32 %v811, 1e-05
        %v813 = vrsqrt.pop %v812
        %v814 = vmul.f32 %v813, %v812
        %v815 = vmul.f32 %v814, %v813
        %v816 = vmul.f32 0.5, %v815
        %v817 = vsub.f32 1.5, %v816
        %v818 = vmul.f32 %v813, %v817
        %vm819 = vweird.f32 %v812
        %vm820 = vweird.f32 %v813
        %vm821 = vmor %vm819, %vm820
        %v822 = vsel %vm821, %v813, %v818
        %v823 = vmul.f32 %v809, %v822
        %v824 = vmul.f32 %v823, %v518
        %v825 = vadd.f32 %v824, %v522
        %827 = vrot.lane.b32.xlu0 %v825, 96
        %v828 = vpop.permute.xlu0 %827
        %s830 = scalar_lea.vmem %s346, 16 [#allocation9]
        %831 = vst.msk [vmem:[%s830] sm:$0xff] %vm372, %v828
        %s832 = scalar_lea.vmem %s299, 24 [#allocation3]
        %v833 = vld [vmem:[%s832] sm:$0xff]
        %v834 = vmul.f32 %v809, %v809
        %836 = vrot.lane.b32.xlu0 %v834, 96
        %v837 = vpop.permute.xlu0 %836
        %v839 = vsel %vm372, %v837, 0.0
        %840 = vadd.xlane.f32.xlu0 %v839
        %v841 = vpop.xlane.xlu0 %840
        %v842 = vrsqrt.pop %v841
        %v843 = vmul.f32 %v842, %v841
        %v844 = vmul.f32 %v843, %v842
        %v845 = vmul.f32 0.5, %v844
        %v846 = vsub.f32 1.5, %v845
        %v847 = vmul.f32 %v842, %v846
        %v848 = vmul.f32 %v841, %v847
        %vm849 = vcmp.eq.f32.partialorder %v841, inf
        %v850 = vsel %vm849, %v841, %v848
        %vm851 = vcmp.eq.f32.partialorder %v841, 0.0
        %v852 = vand.u32 %v841, 2147483648
        %v853 = vsel %vm851, %v852, %v850
        %v854 = vadd.f32 %v853, 1e-08
        %v855 = vrcp.pop %v854
        %v856 = vmul.f32 %v854, %v855
        %v857 = vsub.f32 1.0, %v856
        %v858 = vmul.f32 %v855, %v857
        %v859 = vadd.f32 %v855, %v858
        %vm860 = vweird.f32 %v854
        %vm861 = vweird.f32 %v855
        %vm862 = vmor %vm860, %vm861
        %v863 = vsel %vm862, %v855, %v859
        %v864 = vand.u32 2147483647, %v854
        %vm865 = vcmp.eq.f32.partialorder %v864, 8.507059e+37
        %v866 = vand.u32 %v854, 2147483648
        %v867 = vor.u32 1.1754944e-38, %v866
        %v868 = vsel %vm865, %v867, %v863
        %v869 = vmul.f32 %v809, %v868
        %v870 = vld [vmem:[#allocation6] sm:$0xff]
        %v871 = vld [vmem:[#allocation6 + $0x8] sm:$0xff]
        %v872 = vld [vmem:[#allocation6 + $0x10] sm:$0xff]
        %v873 = vld [vmem:[#allocation6 + $0x18] sm:$0xff]
        %875 = vrot.lane.b32.xlu0 %v869, 96
        %v876 = vpop.permute.xlu0 %875
        %v877 = vsel %vm372, %v876, 0
        %879 = vmatpush.msra.mxu0 0.0
        %880 = vmatpush.msra.mxu0 0.0
        %881 = vmatpush.msra.mxu0 0.0
        %882 = vmatpush.msra.mxu0 0.0
        %883 = vmatpush.msra.mxu0 0.0
        %884 = vmatpush.msra.mxu0 0.0
        %885 = vmatpush.msra.mxu0 0.0
        %886 = vmatpush.msra.mxu0 0.0
        %887 = vmatpush.msra.mxu0 0.0
        %888 = vmatpush.msra.mxu0 0.0
        %889 = vmatpush.msra.mxu0 0.0
        %890 = vmatpush.msra.mxu0 0.0
        %891 = vmatpush.msra.mxu0 %v873
        %892 = vmatpush.msra.mxu0 %v872
        %893 = vmatpush.msra.mxu0 %v871
        %894 = vmatpush.msra.mxu0 %v870
        %895 = vmatmul.f32.gmra.mxu0 %v877
        %v896 = vpop.f32.mrf.mxu0
        %v897 = vadd.f32 0.0, %v896
        %898 = vdwg.mxu0
        %v899 = vadd.f32 %v833, %v897
        %v900 = vxor.u32 %v899, 2147483648
        %v901 = vmul.f32 %v900, 1.442695
        %v902 = vpow.pop %v901
        %v903 = vadd.f32 %v902, 1.0
        %v904 = vrcp.pop %v903
        %v905 = vmul.f32 %v903, %v904
        %v906 = vsub.f32 1.0, %v905
        %v907 = vmul.f32 %v904, %v906
        %v908 = vadd.f32 %v904, %v907
        %vm909 = vweird.f32 %v903
        %vm910 = vweird.f32 %v904
        %vm911 = vmor %vm909, %vm910
        %v912 = vsel %vm911, %v904, %v908
        %v913 = vand.u32 2147483647, %v903
        %vm914 = vcmp.eq.f32.partialorder %v913, 8.507059e+37
        %v915 = vand.u32 %v903, 2147483648
        %v916 = vor.u32 1.1754944e-38, %v915
        %v917 = vsel %vm914, %v916, %v912
        %v918 = vmul.f32 1.0, %v917
        %v919 = vtanh.pop %v899
        %v920 = vmul.f32 %v918, %v869
        %922 = vrot.lane.b32.xlu0 %v919, 64
        %v923 = vpop.permute.xlu0 %922
        %v925 = vmul.f32 %v918, %v923
        %927 = vrot.lane.b32.xlu0 %v925, 32
        %v928 = vpop.permute.xlu0 %927
        %v930 = vadd.f32 %v920, %v928
        %932 = vrot.lane.b32.xlu0 %v930, 96
        %v933 = vpop.permute.xlu0 %932
        %v935 = vsel %vm372, %v933, 0.0
        %936 = vadd.xlane.f32.xlu0 %v935
        %v937 = vpop.xlane.xlu0 %936
        %v938 = vmul.f32 %v937, %v479
        %v939 = vsub.f32 %v930, %v938
        %v940 = vmul.f32 %v939, %v939
        %942 = vrot.lane.b32.xlu0 %v940, 96
        %v943 = vpop.permute.xlu0 %942
        %v945 = vsel %vm372, %v943, 0.0
        %946 = vadd.xlane.f32.xlu0 %v945
        %v947 = vpop.xlane.xlu0 %946
        %v948 = vmul.f32 %v947, %v479
        %v949 = vadd.f32 %v948, 1e-05
        %v950 = vrsqrt.pop %v949
        %v951 = vmul.f32 %v950, %v949
        %v952 = vmul.f32 %v951, %v950
        %v953 = vmul.f32 0.5, %v952
        %v954 = vsub.f32 1.5, %v953
        %v955 = vmul.f32 %v950, %v954
        %vm956 = vweird.f32 %v949
        %vm957 = vweird.f32 %v950
        %vm958 = vmor %vm956, %vm957
        %v959 = vsel %vm958, %v950, %v955
        %v960 = vmul.f32 %v939, %v959
        %v961 = vmul.f32 %v959, %v959
        %v962 = vmul.f32 %v948, %v961
        %v963 = vadd.f32 %v962, 1e-05
        %v964 = vrsqrt.pop %v963
        %v965 = vmul.f32 %v964, %v963
        %v966 = vmul.f32 %v965, %v964
        %v967 = vmul.f32 0.5, %v966
        %v968 = vsub.f32 1.5, %v967
        %v969 = vmul.f32 %v964, %v968
        %vm970 = vweird.f32 %v963
        %vm971 = vweird.f32 %v964
        %vm972 = vmor %vm970, %vm971
        %v973 = vsel %vm972, %v964, %v969
        %v974 = vmul.f32 %v960, %v973
        %v975 = vmul.f32 %v974, %v518
        %v976 = vadd.f32 %v975, %v522
        %978 = vrot.lane.b32.xlu0 %v976, 96
        %v979 = vpop.permute.xlu0 %978
        %s981 = scalar_lea.vmem %s346, 24 [#allocation9]
        %982 = vst.msk [vmem:[%s981] sm:$0xff] %vm372, %v979
        %s983 = scalar_lea.vmem %s299, 32 [#allocation3]
        %v984 = vld [vmem:[%s983] sm:$0xff]
        %v985 = vmul.f32 %v960, %v960
        %987 = vrot.lane.b32.xlu0 %v985, 96
        %v988 = vpop.permute.xlu0 %987
        %v990 = vsel %vm372, %v988, 0.0
        %991 = vadd.xlane.f32.xlu0 %v990
        %v992 = vpop.xlane.xlu0 %991
        %v993 = vrsqrt.pop %v992
        %v994 = vmul.f32 %v993, %v992
        %v995 = vmul.f32 %v994, %v993
        %v996 = vmul.f32 0.5, %v995
        %v997 = vsub.f32 1.5, %v996
        %v998 = vmul.f32 %v993, %v997
        %v999 = vmul.f32 %v992, %v998
        %vm1000 = vcmp.eq.f32.partialorder %v992, inf
        %v1001 = vsel %vm1000, %v992, %v999
        %vm1002 = vcmp.eq.f32.partialorder %v992, 0.0
        %v1003 = vand.u32 %v992, 2147483648
        %v1004 = vsel %vm1002, %v1003, %v1001
        %v1005 = vadd.f32 %v1004, 1e-08
        %v1006 = vrcp.pop %v1005
        %v1007 = vmul.f32 %v1005, %v1006
        %v1008 = vsub.f32 1.0, %v1007
        %v1009 = vmul.f32 %v1006, %v1008
        %v1010 = vadd.f32 %v1006, %v1009
        %vm1011 = vweird.f32 %v1005
        %vm1012 = vweird.f32 %v1006
        %vm1013 = vmor %vm1011, %vm1012
        %v1014 = vsel %vm1013, %v1006, %v1010
        %v1015 = vand.u32 2147483647, %v1005
        %vm1016 = vcmp.eq.f32.partialorder %v1015, 8.507059e+37
        %v1017 = vand.u32 %v1005, 2147483648
        %v1018 = vor.u32 1.1754944e-38, %v1017
        %v1019 = vsel %vm1016, %v1018, %v1014
        %v1020 = vmul.f32 %v960, %v1019
        %v1021 = vld [vmem:[#allocation6] sm:$0xff]
        %v1022 = vld [vmem:[#allocation6 + $0x8] sm:$0xff]
        %v1023 = vld [vmem:[#allocation6 + $0x10] sm:$0xff]
        %v1024 = vld [vmem:[#allocation6 + $0x18] sm:$0xff]
        %1026 = vrot.lane.b32.xlu0 %v1020, 96
        %v1027 = vpop.permute.xlu0 %1026
        %v1028 = vsel %vm372, %v1027, 0
        %1030 = vmatpush.msra.mxu0 0.0
        %1031 = vmatpush.msra.mxu0 0.0
        %1032 = vmatpush.msra.mxu0 0.0
        %1033 = vmatpush.msra.mxu0 0.0
        %1034 = vmatpush.msra.mxu0 0.0
        %1035 = vmatpush.msra.mxu0 0.0
        %1036 = vmatpush.msra.mxu0 0.0
        %1037 = vmatpush.msra.mxu0 0.0
        %1038 = vmatpush.msra.mxu0 0.0
        %1039 = vmatpush.msra.mxu0 0.0
        %1040 = vmatpush.msra.mxu0 0.0
        %1041 = vmatpush.msra.mxu0 0.0
        %1042 = vmatpush.msra.mxu0 %v1024
        %1043 = vmatpush.msra.mxu0 %v1023
        %1044 = vmatpush.msra.mxu0 %v1022
        %1045 = vmatpush.msra.mxu0 %v1021
        %1046 = vmatmul.f32.gmra.mxu0 %v1028
        %v1047 = vpop.f32.mrf.mxu0
        %v1048 = vadd.f32 0.0, %v1047
        %1049 = vdwg.mxu0
        %v1050 = vadd.f32 %v984, %v1048
        %v1051 = vxor.u32 %v1050, 2147483648
        %v1052 = vmul.f32 %v1051, 1.442695
        %v1053 = vpow.pop %v1052
        %v1054 = vadd.f32 %v1053, 1.0
        %v1055 = vrcp.pop %v1054
        %v1056 = vmul.f32 %v1054, %v1055
        %v1057 = vsub.f32 1.0, %v1056
        %v1058 = vmul.f32 %v1055, %v1057
        %v1059 = vadd.f32 %v1055, %v1058
        %vm1060 = vweird.f32 %v1054
        %vm1061 = vweird.f32 %v1055
        %vm1062 = vmor %vm1060, %vm1061
        %v1063 = vsel %vm1062, %v1055, %v1059
        %v1064 = vand.u32 2147483647, %v1054
        %vm1065 = vcmp.eq.f32.partialorder %v1064, 8.507059e+37
        %v1066 = vand.u32 %v1054, 2147483648
        %v1067 = vor.u32 1.1754944e-38, %v1066
        %v1068 = vsel %vm1065, %v1067, %v1063
        %v1069 = vmul.f32 1.0, %v1068
        %v1070 = vtanh.pop %v1050
        %v1071 = vmul.f32 %v1069, %v1020
        %1073 = vrot.lane.b32.xlu0 %v1070, 64
        %v1074 = vpop.permute.xlu0 %1073
        %v1076 = vmul.f32 %v1069, %v1074
        %1078 = vrot.lane.b32.xlu0 %v1076, 32
        %v1079 = vpop.permute.xlu0 %1078
        %v1081 = vadd.f32 %v1071, %v1079
        %1083 = vrot.lane.b32.xlu0 %v1081, 96
        %v1084 = vpop.permute.xlu0 %1083
        %v1086 = vsel %vm372, %v1084, 0.0
        %1087 = vadd.xlane.f32.xlu0 %v1086
        %v1088 = vpop.xlane.xlu0 %1087
        %v1089 = vmul.f32 %v1088, %v479
        %v1090 = vsub.f32 %v1081, %v1089
        %v1091 = vmul.f32 %v1090, %v1090
        %1093 = vrot.lane.b32.xlu0 %v1091, 96
        %v1094 = vpop.permute.xlu0 %1093
        %v1096 = vsel %vm372, %v1094, 0.0
        %1097 = vadd.xlane.f32.xlu0 %v1096
        %v1098 = vpop.xlane.xlu0 %1097
        %v1099 = vmul.f32 %v1098, %v479
        %v1100 = vadd.f32 %v1099, 1e-05
        %v1101 = vrsqrt.pop %v1100
        %v1102 = vmul.f32 %v1101, %v1100
        %v1103 = vmul.f32 %v1102, %v1101
        %v1104 = vmul.f32 0.5, %v1103
        %v1105 = vsub.f32 1.5, %v1104
        %v1106 = vmul.f32 %v1101, %v1105
        %vm1107 = vweird.f32 %v1100
        %vm1108 = vweird.f32 %v1101
        %vm1109 = vmor %vm1107, %vm1108
        %v1110 = vsel %vm1109, %v1101, %v1106
        %v1111 = vmul.f32 %v1090, %v1110
        %v1112 = vmul.f32 %v1110, %v1110
        %v1113 = vmul.f32 %v1099, %v1112
        %v1114 = vadd.f32 %v1113, 1e-05
        %v1115 = vrsqrt.pop %v1114
        %v1116 = vmul.f32 %v1115, %v1114
        %v1117 = vmul.f32 %v1116, %v1115
        %v1118 = vmul.f32 0.5, %v1117
        %v1119 = vsub.f32 1.5, %v1118
        %v1120 = vmul.f32 %v1115, %v1119
        %vm1121 = vweird.f32 %v1114
        %vm1122 = vweird.f32 %v1115
        %vm1123 = vmor %vm1121, %vm1122
        %v1124 = vsel %vm1123, %v1115, %v1120
        %v1125 = vmul.f32 %v1111, %v1124
        %v1126 = vmul.f32 %v1125, %v518
        %v1127 = vadd.f32 %v1126, %v522
        %1129 = vrot.lane.b32.xlu0 %v1127, 96
        %v1130 = vpop.permute.xlu0 %1129
        %s1132 = scalar_lea.vmem %s346, 32 [#allocation9]
        %1133 = vst.msk [vmem:[%s1132] sm:$0xff] %vm372, %v1130
        %s1134 = scalar_lea.vmem %s299, 40 [#allocation3]
        %v1135 = vld [vmem:[%s1134] sm:$0xff]
        %v1136 = vmul.f32 %v1111, %v1111
        %1138 = vrot.lane.b32.xlu0 %v1136, 96
        %v1139 = vpop.permute.xlu0 %1138
        %v1141 = vsel %vm372, %v1139, 0.0
        %1142 = vadd.xlane.f32.xlu0 %v1141
        %v1143 = vpop.xlane.xlu0 %1142
        %v1144 = vrsqrt.pop %v1143
        %v1145 = vmul.f32 %v1144, %v1143
        %v1146 = vmul.f32 %v1145, %v1144
        %v1147 = vmul.f32 0.5, %v1146
        %v1148 = vsub.f32 1.5, %v1147
        %v1149 = vmul.f32 %v1144, %v1148
        %v1150 = vmul.f32 %v1143, %v1149
        %vm1151 = vcmp.eq.f32.partialorder %v1143, inf
        %v1152 = vsel %vm1151, %v1143, %v1150
        %vm1153 = vcmp.eq.f32.partialorder %v1143, 0.0
        %v1154 = vand.u32 %v1143, 2147483648
        %v1155 = vsel %vm1153, %v1154, %v1152
        %v1156 = vadd.f32 %v1155, 1e-08
        %v1157 = vrcp.pop %v1156
        %v1158 = vmul.f32 %v1156, %v1157
        %v1159 = vsub.f32 1.0, %v1158
        %v1160 = vmul.f32 %v1157, %v1159
        %v1161 = vadd.f32 %v1157, %v1160
        %vm1162 = vweird.f32 %v1156
        %vm1163 = vweird.f32 %v1157
        %vm1164 = vmor %vm1162, %vm1163
        %v1165 = vsel %vm1164, %v1157, %v1161
        %v1166 = vand.u32 2147483647, %v1156
        %vm1167 = vcmp.eq.f32.partialorder %v1166, 8.507059e+37
        %v1168 = vand.u32 %v1156, 2147483648
        %v1169 = vor.u32 1.1754944e-38, %v1168
        %v1170 = vsel %vm1167, %v1169, %v1165
        %v1171 = vmul.f32 %v1111, %v1170
        %v1172 = vld [vmem:[#allocation6] sm:$0xff]
        %v1173 = vld [vmem:[#allocation6 + $0x8] sm:$0xff]
        %v1174 = vld [vmem:[#allocation6 + $0x10] sm:$0xff]
        %v1175 = vld [vmem:[#allocation6 + $0x18] sm:$0xff]
        %1177 = vrot.lane.b32.xlu0 %v1171, 96
        %v1178 = vpop.permute.xlu0 %1177
        %v1179 = vsel %vm372, %v1178, 0
        %1181 = vmatpush.msra.mxu0 0.0
        %1182 = vmatpush.msra.mxu0 0.0
        %1183 = vmatpush.msra.mxu0 0.0
        %1184 = vmatpush.msra.mxu0 0.0
        %1185 = vmatpush.msra.mxu0 0.0
        %1186 = vmatpush.msra.mxu0 0.0
        %1187 = vmatpush.msra.mxu0 0.0
        %1188 = vmatpush.msra.mxu0 0.0
        %1189 = vmatpush.msra.mxu0 0.0
        %1190 = vmatpush.msra.mxu0 0.0
        %1191 = vmatpush.msra.mxu0 0.0
        %1192 = vmatpush.msra.mxu0 0.0
        %1193 = vmatpush.msra.mxu0 %v1175
        %1194 = vmatpush.msra.mxu0 %v1174
        %1195 = vmatpush.msra.mxu0 %v1173
        %1196 = vmatpush.msra.mxu0 %v1172
        %1197 = vmatmul.f32.gmra.mxu0 %v1179
        %v1198 = vpop.f32.mrf.mxu0
        %v1199 = vadd.f32 0.0, %v1198
        %1200 = vdwg.mxu0
        %v1201 = vadd.f32 %v1135, %v1199
        %v1202 = vxor.u32 %v1201, 2147483648
        %v1203 = vmul.f32 %v1202, 1.442695
        %v1204 = vpow.pop %v1203
        %v1205 = vadd.f32 %v1204, 1.0
        %v1206 = vrcp.pop %v1205
        %v1207 = vmul.f32 %v1205, %v1206
        %v1208 = vsub.f32 1.0, %v1207
        %v1209 = vmul.f32 %v1206, %v1208
        %v1210 = vadd.f32 %v1206, %v1209
        %vm1211 = vweird.f32 %v1205
        %vm1212 = vweird.f32 %v1206
        %vm1213 = vmor %vm1211, %vm1212
        %v1214 = vsel %vm1213, %v1206, %v1210
        %v1215 = vand.u32 2147483647, %v1205
        %vm1216 = vcmp.eq.f32.partialorder %v1215, 8.507059e+37
        %v1217 = vand.u32 %v1205, 2147483648
        %v1218 = vor.u32 1.1754944e-38, %v1217
        %v1219 = vsel %vm1216, %v1218, %v1214
        %v1220 = vmul.f32 1.0, %v1219
        %v1221 = vtanh.pop %v1201
        %v1222 = vmul.f32 %v1220, %v1171
        %1224 = vrot.lane.b32.xlu0 %v1221, 64
        %v1225 = vpop.permute.xlu0 %1224
        %v1227 = vmul.f32 %v1220, %v1225
        %1229 = vrot.lane.b32.xlu0 %v1227, 32
        %v1230 = vpop.permute.xlu0 %1229
        %v1232 = vadd.f32 %v1222, %v1230
        %1234 = vrot.lane.b32.xlu0 %v1232, 96
        %v1235 = vpop.permute.xlu0 %1234
        %v1237 = vsel %vm372, %v1235, 0.0
        %1238 = vadd.xlane.f32.xlu0 %v1237
        %v1239 = vpop.xlane.xlu0 %1238
        %v1240 = vmul.f32 %v1239, %v479
        %v1241 = vsub.f32 %v1232, %v1240
        %v1242 = vmul.f32 %v1241, %v1241
        %1244 = vrot.lane.b32.xlu0 %v1242, 96
        %v1245 = vpop.permute.xlu0 %1244
        %v1247 = vsel %vm372, %v1245, 0.0
        %1248 = vadd.xlane.f32.xlu0 %v1247
        %v1249 = vpop.xlane.xlu0 %1248
        %v1250 = vmul.f32 %v1249, %v479
        %v1251 = vadd.f32 %v1250, 1e-05
        %v1252 = vrsqrt.pop %v1251
        %v1253 = vmul.f32 %v1252, %v1251
        %v1254 = vmul.f32 %v1253, %v1252
        %v1255 = vmul.f32 0.5, %v1254
        %v1256 = vsub.f32 1.5, %v1255
        %v1257 = vmul.f32 %v1252, %v1256
        %vm1258 = vweird.f32 %v1251
        %vm1259 = vweird.f32 %v1252
        %vm1260 = vmor %vm1258, %vm1259
        %v1261 = vsel %vm1260, %v1252, %v1257
        %v1262 = vmul.f32 %v1241, %v1261
        %v1263 = vmul.f32 %v1261, %v1261
        %v1264 = vmul.f32 %v1250, %v1263
        %v1265 = vadd.f32 %v1264, 1e-05
        %v1266 = vrsqrt.pop %v1265
        %v1267 = vmul.f32 %v1266, %v1265
        %v1268 = vmul.f32 %v1267, %v1266
        %v1269 = vmul.f32 0.5, %v1268
        %v1270 = vsub.f32 1.5, %v1269
        %v1271 = vmul.f32 %v1266, %v1270
        %vm1272 = vweird.f32 %v1265
        %vm1273 = vweird.f32 %v1266
        %vm1274 = vmor %vm1272, %vm1273
        %v1275 = vsel %vm1274, %v1266, %v1271
        %v1276 = vmul.f32 %v1262, %v1275
        %v1277 = vmul.f32 %v1276, %v518
        %v1278 = vadd.f32 %v1277, %v522
        %1280 = vrot.lane.b32.xlu0 %v1278, 96
        %v1281 = vpop.permute.xlu0 %1280
        %s1283 = scalar_lea.vmem %s346, 40 [#allocation9]
        %1284 = vst.msk [vmem:[%s1283] sm:$0xff] %vm372, %v1281
        %s1285 = scalar_lea.vmem %s299, 48 [#allocation3]
        %v1286 = vld [vmem:[%s1285] sm:$0xff]
        %v1287 = vmul.f32 %v1262, %v1262
        %1289 = vrot.lane.b32.xlu0 %v1287, 96
        %v1290 = vpop.permute.xlu0 %1289
        %v1292 = vsel %vm372, %v1290, 0.0
        %1293 = vadd.xlane.f32.xlu0 %v1292
        %v1294 = vpop.xlane.xlu0 %1293
        %v1295 = vrsqrt.pop %v1294
        %v1296 = vmul.f32 %v1295, %v1294
        %v1297 = vmul.f32 %v1296, %v1295
        %v1298 = vmul.f32 0.5, %v1297
        %v1299 = vsub.f32 1.5, %v1298
        %v1300 = vmul.f32 %v1295, %v1299
        %v1301 = vmul.f32 %v1294, %v1300
        %vm1302 = vcmp.eq.f32.partialorder %v1294, inf
        %v1303 = vsel %vm1302, %v1294, %v1301
        %vm1304 = vcmp.eq.f32.partialorder %v1294, 0.0
        %v1305 = vand.u32 %v1294, 2147483648
        %v1306 = vsel %vm1304, %v1305, %v1303
        %v1307 = vadd.f32 %v1306, 1e-08
        %v1308 = vrcp.pop %v1307
        %v1309 = vmul.f32 %v1307, %v1308
        %v1310 = vsub.f32 1.0, %v1309
        %v1311 = vmul.f32 %v1308, %v1310
        %v1312 = vadd.f32 %v1308, %v1311
        %vm1313 = vweird.f32 %v1307
        %vm1314 = vweird.f32 %v1308
        %vm1315 = vmor %vm1313, %vm1314
        %v1316 = vsel %vm1315, %v1308, %v1312
        %v1317 = vand.u32 2147483647, %v1307
        %vm1318 = vcmp.eq.f32.partialorder %v1317, 8.507059e+37
        %v1319 = vand.u32 %v1307, 2147483648
        %v1320 = vor.u32 1.1754944e-38, %v1319
        %v1321 = vsel %vm1318, %v1320, %v1316
        %v1322 = vmul.f32 %v1262, %v1321
        %v1323 = vld [vmem:[#allocation6] sm:$0xff]
        %v1324 = vld [vmem:[#allocation6 + $0x8] sm:$0xff]
        %v1325 = vld [vmem:[#allocation6 + $0x10] sm:$0xff]
        %v1326 = vld [vmem:[#allocation6 + $0x18] sm:$0xff]
        %1328 = vrot.lane.b32.xlu0 %v1322, 96
        %v1329 = vpop.permute.xlu0 %1328
        %v1330 = vsel %vm372, %v1329, 0
        %1332 = vmatpush.msra.mxu0 0.0
        %1333 = vmatpush.msra.mxu0 0.0
        %1334 = vmatpush.msra.mxu0 0.0
        %1335 = vmatpush.msra.mxu0 0.0
        %1336 = vmatpush.msra.mxu0 0.0
        %1337 = vmatpush.msra.mxu0 0.0
        %1338 = vmatpush.msra.mxu0 0.0
        %1339 = vmatpush.msra.mxu0 0.0
        %1340 = vmatpush.msra.mxu0 0.0
        %1341 = vmatpush.msra.mxu0 0.0
        %1342 = vmatpush.msra.mxu0 0.0
        %1343 = vmatpush.msra.mxu0 0.0
        %1344 = vmatpush.msra.mxu0 %v1326
        %1345 = vmatpush.msra.mxu0 %v1325
        %1346 = vmatpush.msra.mxu0 %v1324
        %1347 = vmatpush.msra.mxu0 %v1323
        %1348 = vmatmul.f32.gmra.mxu0 %v1330
        %v1349 = vpop.f32.mrf.mxu0
        %v1350 = vadd.f32 0.0, %v1349
        %1351 = vdwg.mxu0
        %v1352 = vadd.f32 %v1286, %v1350
        %v1353 = vxor.u32 %v1352, 2147483648
        %v1354 = vmul.f32 %v1353, 1.442695
        %v1355 = vpow.pop %v1354
        %v1356 = vadd.f32 %v1355, 1.0
        %v1357 = vrcp.pop %v1356
        %v1358 = vmul.f32 %v1356, %v1357
        %v1359 = vsub.f32 1.0, %v1358
        %v1360 = vmul.f32 %v1357, %v1359
        %v1361 = vadd.f32 %v1357, %v1360
        %vm1362 = vweird.f32 %v1356
        %vm1363 = vweird.f32 %v1357
        %vm1364 = vmor %vm1362, %vm1363
        %v1365 = vsel %vm1364, %v1357, %v1361
        %v1366 = vand.u32 2147483647, %v1356
        %vm1367 = vcmp.eq.f32.partialorder %v1366, 8.507059e+37
        %v1368 = vand.u32 %v1356, 2147483648
        %v1369 = vor.u32 1.1754944e-38, %v1368
        %v1370 = vsel %vm1367, %v1369, %v1365
        %v1371 = vmul.f32 1.0, %v1370
        %v1372 = vtanh.pop %v1352
        %v1373 = vmul.f32 %v1371, %v1322
        %1375 = vrot.lane.b32.xlu0 %v1372, 64
        %v1376 = vpop.permute.xlu0 %1375
        %v1378 = vmul.f32 %v1371, %v1376
        %1380 = vrot.lane.b32.xlu0 %v1378, 32
        %v1381 = vpop.permute.xlu0 %1380
        %v1383 = vadd.f32 %v1373, %v1381
        %1385 = vrot.lane.b32.xlu0 %v1383, 96
        %v1386 = vpop.permute.xlu0 %1385
        %v1388 = vsel %vm372, %v1386, 0.0
        %1389 = vadd.xlane.f32.xlu0 %v1388
        %v1390 = vpop.xlane.xlu0 %1389
        %v1391 = vmul.f32 %v1390, %v479
        %v1392 = vsub.f32 %v1383, %v1391
        %v1393 = vmul.f32 %v1392, %v1392
        %1395 = vrot.lane.b32.xlu0 %v1393, 96
        %v1396 = vpop.permute.xlu0 %1395
        %v1398 = vsel %vm372, %v1396, 0.0
        %1399 = vadd.xlane.f32.xlu0 %v1398
        %v1400 = vpop.xlane.xlu0 %1399
        %v1401 = vmul.f32 %v1400, %v479
        %v1402 = vadd.f32 %v1401, 1e-05
        %v1403 = vrsqrt.pop %v1402
        %v1404 = vmul.f32 %v1403, %v1402
        %v1405 = vmul.f32 %v1404, %v1403
        %v1406 = vmul.f32 0.5, %v1405
        %v1407 = vsub.f32 1.5, %v1406
        %v1408 = vmul.f32 %v1403, %v1407
        %vm1409 = vweird.f32 %v1402
        %vm1410 = vweird.f32 %v1403
        %vm1411 = vmor %vm1409, %vm1410
        %v1412 = vsel %vm1411, %v1403, %v1408
        %v1413 = vmul.f32 %v1392, %v1412
        %v1414 = vmul.f32 %v1412, %v1412
        %v1415 = vmul.f32 %v1401, %v1414
        %v1416 = vadd.f32 %v1415, 1e-05
        %v1417 = vrsqrt.pop %v1416
        %v1418 = vmul.f32 %v1417, %v1416
        %v1419 = vmul.f32 %v1418, %v1417
        %v1420 = vmul.f32 0.5, %v1419
        %v1421 = vsub.f32 1.5, %v1420
        %v1422 = vmul.f32 %v1417, %v1421
        %vm1423 = vweird.f32 %v1416
        %vm1424 = vweird.f32 %v1417
        %vm1425 = vmor %vm1423, %vm1424
        %v1426 = vsel %vm1425, %v1417, %v1422
        %v1427 = vmul.f32 %v1413, %v1426
        %v1428 = vmul.f32 %v1427, %v518
        %v1429 = vadd.f32 %v1428, %v522
        %1431 = vrot.lane.b32.xlu0 %v1429, 96
        %v1432 = vpop.permute.xlu0 %1431
        %s1434 = scalar_lea.vmem %s346, 48 [#allocation9]
        %1435 = vst.msk [vmem:[%s1434] sm:$0xff] %vm372, %v1432
        %s1436 = scalar_lea.vmem %s299, 56 [#allocation3]
        %v1437 = vld [vmem:[%s1436] sm:$0xff]
        %v1438 = vmul.f32 %v1413, %v1413
        %1440 = vrot.lane.b32.xlu0 %v1438, 96
        %v1441 = vpop.permute.xlu0 %1440
        %v1443 = vsel %vm372, %v1441, 0.0
        %1444 = vadd.xlane.f32.xlu0 %v1443
        %v1445 = vpop.xlane.xlu0 %1444
        %v1446 = vrsqrt.pop %v1445
        %v1447 = vmul.f32 %v1446, %v1445
        %v1448 = vmul.f32 %v1447, %v1446
        %v1449 = vmul.f32 0.5, %v1448
        %v1450 = vsub.f32 1.5, %v1449
        %v1451 = vmul.f32 %v1446, %v1450
        %v1452 = vmul.f32 %v1445, %v1451
        %vm1453 = vcmp.eq.f32.partialorder %v1445, inf
        %v1454 = vsel %vm1453, %v1445, %v1452
        %vm1455 = vcmp.eq.f32.partialorder %v1445, 0.0
        %v1456 = vand.u32 %v1445, 2147483648
        %v1457 = vsel %vm1455, %v1456, %v1454
        %v1458 = vadd.f32 %v1457, 1e-08
        %v1459 = vrcp.pop %v1458
        %v1460 = vmul.f32 %v1458, %v1459
        %v1461 = vsub.f32 1.0, %v1460
        %v1462 = vmul.f32 %v1459, %v1461
        %v1463 = vadd.f32 %v1459, %v1462
        %vm1464 = vweird.f32 %v1458
        %vm1465 = vweird.f32 %v1459
        %vm1466 = vmor %vm1464, %vm1465
        %v1467 = vsel %vm1466, %v1459, %v1463
        %v1468 = vand.u32 2147483647, %v1458
        %vm1469 = vcmp.eq.f32.partialorder %v1468, 8.507059e+37
        %v1470 = vand.u32 %v1458, 2147483648
        %v1471 = vor.u32 1.1754944e-38, %v1470
        %v1472 = vsel %vm1469, %v1471, %v1467
        %v1473 = vmul.f32 %v1413, %v1472
        %v1474 = vld [vmem:[#allocation6] sm:$0xff]
        %v1475 = vld [vmem:[#allocation6 + $0x8] sm:$0xff]
        %v1476 = vld [vmem:[#allocation6 + $0x10] sm:$0xff]
        %v1477 = vld [vmem:[#allocation6 + $0x18] sm:$0xff]
        %1479 = vrot.lane.b32.xlu0 %v1473, 96
        %v1480 = vpop.permute.xlu0 %1479
        %v1481 = vsel %vm372, %v1480, 0
        %1483 = vmatpush.msra.mxu0 0.0
        %1484 = vmatpush.msra.mxu0 0.0
        %1485 = vmatpush.msra.mxu0 0.0
        %1486 = vmatpush.msra.mxu0 0.0
        %1487 = vmatpush.msra.mxu0 0.0
        %1488 = vmatpush.msra.mxu0 0.0
        %1489 = vmatpush.msra.mxu0 0.0
        %1490 = vmatpush.msra.mxu0 0.0
        %1491 = vmatpush.msra.mxu0 0.0
        %1492 = vmatpush.msra.mxu0 0.0
        %1493 = vmatpush.msra.mxu0 0.0
        %1494 = vmatpush.msra.mxu0 0.0
        %1495 = vmatpush.msra.mxu0 %v1477
        %1496 = vmatpush.msra.mxu0 %v1476
        %1497 = vmatpush.msra.mxu0 %v1475
        %1498 = vmatpush.msra.mxu0 %v1474
        %1499 = vmatmul.f32.gmra.mxu0 %v1481
        %v1500 = vpop.f32.mrf.mxu0
        %v1501 = vadd.f32 0.0, %v1500
        %1502 = vdwg.mxu0
        %v1503 = vadd.f32 %v1437, %v1501
        %v1504 = vxor.u32 %v1503, 2147483648
        %v1505 = vmul.f32 %v1504, 1.442695
        %v1506 = vpow.pop %v1505
        %v1507 = vadd.f32 %v1506, 1.0
        %v1508 = vrcp.pop %v1507
        %v1509 = vmul.f32 %v1507, %v1508
        %v1510 = vsub.f32 1.0, %v1509
        %v1511 = vmul.f32 %v1508, %v1510
        %v1512 = vadd.f32 %v1508, %v1511
        %vm1513 = vweird.f32 %v1507
        %vm1514 = vweird.f32 %v1508
        %vm1515 = vmor %vm1513, %vm1514
        %v1516 = vsel %vm1515, %v1508, %v1512
        %v1517 = vand.u32 2147483647, %v1507
        %vm1518 = vcmp.eq.f32.partialorder %v1517, 8.507059e+37
        %v1519 = vand.u32 %v1507, 2147483648
        %v1520 = vor.u32 1.1754944e-38, %v1519
        %v1521 = vsel %vm1518, %v1520, %v1516
        %v1522 = vmul.f32 1.0, %v1521
        %v1523 = vtanh.pop %v1503
        %v1524 = vmul.f32 %v1522, %v1473
        %1526 = vrot.lane.b32.xlu0 %v1523, 64
        %v1527 = vpop.permute.xlu0 %1526
        %v1529 = vmul.f32 %v1522, %v1527
        %1531 = vrot.lane.b32.xlu0 %v1529, 32
        %v1532 = vpop.permute.xlu0 %1531
        %v1534 = vadd.f32 %v1524, %v1532
        %1536 = vrot.lane.b32.xlu0 %v1534, 96
        %v1537 = vpop.permute.xlu0 %1536
        %v1539 = vsel %vm372, %v1537, 0.0
        %1540 = vadd.xlane.f32.xlu0 %v1539
        %v1541 = vpop.xlane.xlu0 %1540
        %v1542 = vmul.f32 %v1541, %v479
        %v1543 = vsub.f32 %v1534, %v1542
        %v1544 = vmul.f32 %v1543, %v1543
        %1546 = vrot.lane.b32.xlu0 %v1544, 96
        %v1547 = vpop.permute.xlu0 %1546
        %v1549 = vsel %vm372, %v1547, 0.0
        %1550 = vadd.xlane.f32.xlu0 %v1549
        %v1551 = vpop.xlane.xlu0 %1550
        %v1552 = vmul.f32 %v1551, %v479
        %v1553 = vadd.f32 %v1552, 1e-05
        %v1554 = vrsqrt.pop %v1553
        %v1555 = vmul.f32 %v1554, %v1553
        %v1556 = vmul.f32 %v1555, %v1554
        %v1557 = vmul.f32 0.5, %v1556
        %v1558 = vsub.f32 1.5, %v1557
        %v1559 = vmul.f32 %v1554, %v1558
        %vm1560 = vweird.f32 %v1553
        %vm1561 = vweird.f32 %v1554
        %vm1562 = vmor %vm1560, %vm1561
        %v1563 = vsel %vm1562, %v1554, %v1559
        %v1564 = vmul.f32 %v1543, %v1563
        %v1565 = vmul.f32 %v1563, %v1563
        %v1566 = vmul.f32 %v1552, %v1565
        %v1567 = vadd.f32 %v1566, 1e-05
        %v1568 = vrsqrt.pop %v1567
        %v1569 = vmul.f32 %v1568, %v1567
        %v1570 = vmul.f32 %v1569, %v1568
        %v1571 = vmul.f32 0.5, %v1570
        %v1572 = vsub.f32 1.5, %v1571
        %v1573 = vmul.f32 %v1568, %v1572
        %vm1574 = vweird.f32 %v1567
        %vm1575 = vweird.f32 %v1568
        %vm1576 = vmor %vm1574, %vm1575
        %v1577 = vsel %vm1576, %v1568, %v1573
        %v1578 = vmul.f32 %v1564, %v1577
        %v1579 = vmul.f32 %v1578, %v518
        %v1580 = vadd.f32 %v1579, %v522
        %1582 = vrot.lane.b32.xlu0 %v1580, 96
        %v1583 = vpop.permute.xlu0 %1582
        %s1585 = scalar_lea.vmem %s346, 56 [#allocation9]
        %1586 = vst.msk [vmem:[%s1585] sm:$0xff] %vm372, %v1583
        %1588 = vrot.lane.b32.xlu0 %v1564, 96
        %v1589 = vpop.permute.xlu0 %1588
        %1591 = vst.msk [vmem:[#allocation2] sm:$0xff] %vm372, %v1589
        %p1592 = scmp.eq.s32.totalorder %s33, 1
        // Predicated region
        $region57: #{tpu_custom_call.1} parent=39 // pred_check
          %p1593 = pneg %p1592
        $region58: #{tpu_custom_call.1} parent=39 // pred_check_branch
          %1595 = sbr.rel (%p1593) target = $region60
        $region59: #{tpu_custom_call.1} parent=39 // pred_region
          %1596 = vst.msk [vmem:[%s353] sm:$0xff] %vm372, %v1589
        $region60: #{tpu_custom_call.1} parent=39 // pred_fallthru
          _
        %s1597 = sand.u32 %s167, 1
        %s1598 = scalar_lea.sflag [#allocation5], %s1597
        %s1599 = sand.u32 %s167, 1
        %s1600 = smul.addr %s1599, 64
        %s1601 = scalar_lea.vmem [#allocation9], %s1600
        %s1602 = sand.u32 %s193, 1
        %s1603 = scalar_lea.sflag [#allocation11], %s1602
        %s1604 = sand.u32 %s193, 1
        %s1605 = smul.addr %s1604, 8
        %s1606 = scalar_lea.vmem [#allocation10], %s1605
        // Predicated region
        $region61: #{tpu_custom_call.1} parent=39 // pred_check
          %p1607 = pneg %p177
        $region62: #{tpu_custom_call.1} parent=39 // pred_check_branch
          %1609 = sbr.rel (%p1607) target = $region64
        $region63: #{tpu_custom_call.1} parent=39 // pred_region
          %s1610 = smul.u32 8, %s33
          %1612 = vsyncadd %s1598, 0
          %s1613 = smul.addr %s1610, 2
          %s1614 = sadd.s32 %s32, %s1613
          %s1615 = smul.addr %s1614, 8
          %s1616 = scalar_lea.hbm %s5, %s1615
          %s1617 = sshll.u32 %s1601, 4
          %s1618 = int_to_ptr.vmem [resolvable:$true] %s1617
          %s1619 = sshll.u32 %s1616, 4
          %s1620 = int_to_ptr.hbm [resolvable:$true] %s1619
          %1625 = dma.vmem_to_hbm [thread:$0]  %s1618, 1024, %s1620, %s1598, 128, 256, 8
        $region64: #{tpu_custom_call.1} parent=39 // pred_fallthru
          _
        // Predicated region
        $region65: #{tpu_custom_call.1} parent=39 // pred_check
          %p1626 = pneg %p203
        $region66: #{tpu_custom_call.1} parent=39 // pred_check_branch
          %1628 = sbr.rel (%p1626) target = $region68
        $region67: #{tpu_custom_call.1} parent=39 // pred_region
          %1630 = vsyncadd %s1603, 0
          %s1631 = smul.addr %s32, 8
          %s1632 = scalar_lea.hbm %s6, %s1631
          %s1634 = sshll.u32 %s1606, 4
          %s1635 = int_to_ptr.vmem [resolvable:$true] %s1634
          %s1636 = sshll.u32 %s1632, 4
          %s1637 = int_to_ptr.hbm [resolvable:$true] %s1636
          %1639 = dma.vmem_to_hbm [thread:$0]  %s1635, 128, %s1637, %s1603
        $region68: #{tpu_custom_call.1} parent=39 // pred_fallthru
          _
      $region40: #{tpu_custom_call.1} parent=5 // pred_fallthru
        _
      %p1640 = scmp.le.s32.totalorder 2, %s23
      // Predicated region
      $region69: #{tpu_custom_call.1} parent=5 // pred_check
        %p1641 = pneg %p1640
      $region70: #{tpu_custom_call.1} parent=5 // pred_check_branch
        %1643 = sbr.rel (%p1641) target = $region72
      $region71: #{tpu_custom_call.1} parent=5 // pred_region
        %s1644 = ssub.s32 %s23, 2
        // Predicated region
        $region73: #{tpu_custom_call.1} parent=71 // pred_check
          %p1645 = pneg %p183
        $region74: #{tpu_custom_call.1} parent=71 // pred_check_branch
          %1647 = sbr.rel (%p1645) target = $region76
        $region75: #{tpu_custom_call.1} parent=71 // pred_region
          %s1648 = sand.u32 %s168, 1
          %s1649 = scalar_lea.sflag [#allocation5], %s1648
          %s1650 = sand.u32 %s168, 1
          %s1651 = smul.addr %s1650, 64
          %s1652 = scalar_lea.vmem [#allocation9], %s1651
          %1654 = dma.done %s1649, 1024
        $region76: #{tpu_custom_call.1} parent=71 // pred_fallthru
          _
        // Predicated region
        $region77: #{tpu_custom_call.1} parent=71 // pred_check
          %p1655 = pneg %p209
        $region78: #{tpu_custom_call.1} parent=71 // pred_check_branch
          %1657 = sbr.rel (%p1655) target = $region80
        $region79: #{tpu_custom_call.1} parent=71 // pred_region
          %s1658 = sand.u32 %s194, 1
          %s1659 = scalar_lea.sflag [#allocation11], %s1658
          %s1660 = sand.u32 %s194, 1
          %s1661 = smul.addr %s1660, 8
          %s1662 = scalar_lea.vmem [#allocation10], %s1661
          %1664 = dma.done %s1659, 128
        $region80: #{tpu_custom_call.1} parent=71 // pred_fallthru
          _
      $region72: #{tpu_custom_call.1} parent=5 // pred_fallthru
        _
    $region6: #{tpu_custom_call.1} parent=1 // loop_footer
      %s27 = sadd.s32 1, %s23
    $region7: #{tpu_custom_call.1} parent=1 // loop_footer_branch
      %22 = sbr.rel target = $region3
    $region8: #{tpu_custom_call.1} parent=1 // loop_exit
      _
    %1665 = vsyncpa [#allocation4], 1
    %s1666 = scalar_lea.sflag [#allocation4], 1
    %1667 = vsyncpa %s1666, 1
    %1668 = vsyncpa [#allocation7], 1
    %1669 = vsyncpa [#allocation5], 1
    %s1670 = scalar_lea.sflag [#allocation5], 1
    %1671 = vsyncpa %s1670, 1
    %1672 = vsyncpa [#allocation11], 1
    %s1673 = scalar_lea.sflag [#allocation11], 1
    %1674 = vsyncpa %s1673, 1

// kernel: tpu_custom_call.1
$region0: #{tpu_custom_call.1}
  #allocation0 [shape = 'u32[]', space=smem, size = 0x4, offset = 0x4, fixed_abs, tag = 'smem constant byte address 0x4 - core index']
  #allocation1 [shape = 'u32[72,128]{1,0:T(1,128)}', space=vmem, size = 0x9000, scoped, tag = 'internal scratch']
  #allocation2 [shape = 'f32[8,32]{1,0:T(8,128)}', space=vmem, size = 0x1000, scoped, tag = 'scratch operand']
  %s0 = inlined_call_operand.hbm [shape: f32[16,16,96], index: 0, kind: input, shape index: {}]
  %s1 = inlined_call_operand.hbm [shape: f32[32,96], index: 1, kind: input, shape index: {}]
  %s2 = inlined_call_operand.vmem [shape: f32[1,32], index: 2, kind: input, shape index: {}]
  %s3 = inlined_call_operand.vmem [shape: f32[1,32], index: 3, kind: input, shape index: {}]
  %s4 = inlined_call_operand.hbm [shape: f32[16,32], index: 4, kind: input, shape index: {}]
  %s5 = inlined_call_operand.hbm [shape: f32[16,16,32], index: 5, kind: output, shape index: {0}]
  %s6 = inlined_call_operand.hbm [shape: f32[16,32], index: 6, kind: output, shape index: {1}]
  %7 = xla_tuple %s5, %s6
  %s8 = sld [smem:[#allocation0]]
  $region81: #{tpu_custom_call.1} parent=0
    _
  %s10 = ssub.s32 1, %s8
  %s11 = scalar_select 0, %s10, %s8
  $region1: #{tpu_custom_call.1} parent=0
    #allocation3 [shape = 'u8[65536]{0}', space=vmem, size = 0x10000, scoped, tag = 'input window, operand 0']
    #allocation4 [shape = 's32[2]{0}', space=sflag, size = 0x8, scoped, tag = 'scoped memory for tpu_custom_call.1']
    #allocation5 [shape = 's32[2]{0}', space=sflag, size = 0x8, scoped, tag = 'scoped memory for tpu_custom_call.1']
    #allocation6 [shape = 'u8[16384]{0}', space=vmem, size = 0x4000, scoped, tag = 'input window, operand 1, single buffered']
    #allocation7 [shape = 's32[1]{0}', space=sflag, size = 0x4, scoped, tag = 'scoped memory for tpu_custom_call.1']
    #allocation8 [shape = 'u8[8192]{0}', space=vmem, size = 0x2000, scoped, tag = 'input window, operand 4']
    #allocation9 [shape = 'u8[65536]{0}', space=vmem, size = 0x10000, scoped, tag = 'output window, operand 0']
    #allocation10 [shape = 'u8[8192]{0}', space=vmem, size = 0x2000, scoped, tag = 'output window, operand 1']
    #allocation11 [shape = 's32[2]{0}', space=sflag, size = 0x8, scoped, tag = 'scoped memory for tpu_custom_call.1']
    %12 = vsyncpa [#allocation4], 0
    %s13 = scalar_lea.sflag [#allocation4], 1
    %14 = vsyncpa %s13, 0
    %15 = vsyncpa [#allocation7], 0
    %16 = vsyncpa [#allocation5], 0
    %s17 = scalar_lea.sflag [#allocation5], 1
    %18 = vsyncpa %s17, 0
    %19 = vsyncpa [#allocation11], 0
    %s20 = scalar_lea.sflag [#allocation11], 1
    %21 = vsyncpa %s20, 0
    loop: start=0, step=1, limit=6
    $region2: #{tpu_custom_call.1} parent=1 // loop_pre_header
      _
    $region3: #{tpu_custom_call.1} parent=1 // loop_header
      %s23 = sphi 0, %s27
      %p24 = scmp.ge.s32.totalorder %s23, 6
      %s30 = sphi 0, %s42
      %s31 = sphi 0, %s38
      %s32 = sphi 0, %s30
      %s33 = sphi 0, %s31
      %s34 = sphi 0, %s32
      %s35 = sphi 0, %s33
      %s47 = sphi 0, %s49
      %s50 = sphi 0, %s47
      %s51 = sphi 0, %s50
      %s67 = sphi 0, %s51
      %s71 = sphi 0, %s71
      %s73 = sphi 0, %s71
      %s74 = sphi 0, %s73
      %s88 = sphi 0, %s74
      %s92 = sphi 0, %s92
      %s94 = sphi 0, %s92
      %s95 = sphi 0, %s94
      %s109 = sphi 0, %s95
      %s113 = sphi 0, %s113
      %s115 = sphi 0, %s113
      %s116 = sphi 0, %s115
      %s130 = sphi 0, %s116
      %s136 = sphi 0, %s138
      %s139 = sphi 0, %s136
      %s140 = sphi 0, %s139
      %s156 = sphi 0, %s140
      %s164 = sphi 0, %s166
      %s167 = sphi 0, %s164
      %s168 = sphi 0, %s167
      %s184 = sphi 0, %s168
      %s190 = sphi 0, %s192
      %s193 = sphi 0, %s190
      %s194 = sphi 0, %s193
      %s210 = sphi 0, %s194
    $region4: #{tpu_custom_call.1} parent=1 // loop_header_branch
      %26 = sbr.rel (%p24) target = $region8
    $region5: #{tpu_custom_call.1} parent=1 // loop_body
      %s28 = ssub.s32 %s23, 1
      %s29 = ssub.s32 %s23, 2
      %s36 = sadd.s32 1, %s31
      %p37 = scmp.ge.s32.totalorder %s36, 2
      %s38 = scalar_select %p37, 0, %s36
      %s39 = sadd.s32 1, %s30
      %s40 = scalar_select %p37, %s39, %s30
      %p41 = scmp.ge.s32.totalorder %s40, 2
      %s42 = scalar_select %p41, 0, %s40
      %s43 = ssub.s32 %s31, %s38
      %s44 = ssub.s32 %s30, %s42
      %s45 = sor.u32 %s43, %s44
      %p46 = scmp.eq.s32.totalorder %s45, 0
      %s48 = sadd.s32 %s47, 1
      %s49 = scalar_select %p46, %s47, %s48
      %p52 = pneg %p46
      %p53 = scmp.eq.s32.totalorder %s23, 3
      %p54 = por %p52, %p53
      %p55 = scmp.ne.s32.totalorder %s47, %s50
      %p56 = scmp.eq.s32.totalorder %s23, 0
      %p57 = por %p55, %p56
      %p58 = scmp.ne.s32.totalorder %s47, %s50
      %p59 = scmp.eq.s32.totalorder %s28, 3
      %p60 = por %p58, %p59
      %p61 = scmp.ne.s32.totalorder %s50, %s51
      %p62 = scmp.eq.s32.totalorder %s28, 0
      %p63 = por %p61, %p62
      %p64 = scmp.ne.s32.totalorder %s50, %s51
      %p65 = scmp.eq.s32.totalorder %s29, 3
      %p66 = por %p64, %p65
      %p68 = scmp.ne.s32.totalorder %s51, %s67
      %p69 = scmp.eq.s32.totalorder %s29, 0
      %p70 = por %p68, %p69
      %s72 = sadd.s32 %s71, 1
      %p75 = scmp.eq.s32.totalorder %s23, 3
      %p76 = scmp.ne.s32.totalorder %s71, %s73
      %p77 = scmp.eq.s32.totalorder %s23, 0
      %p78 = por %p76, %p77
      %p79 = scmp.ne.s32.totalorder %s71, %s73
      %p80 = scmp.eq.s32.totalorder %s28, 3
      %p81 = por %p79, %p80
      %p82 = scmp.ne.s32.totalorder %s73, %s74
      %p83 = scmp.eq.s32.totalorder %s28, 0
      %p84 = por %p82, %p83
      %p85 = scmp.ne.s32.totalorder %s73, %s74
      %p86 = scmp.eq.s32.totalorder %s29, 3
      %p87 = por %p85, %p86
      %p89 = scmp.ne.s32.totalorder %s74, %s88
      %p90 = scmp.eq.s32.totalorder %s29, 0
      %p91 = por %p89, %p90
      %s93 = sadd.s32 %s92, 1
      %p96 = scmp.eq.s32.totalorder %s23, 3
      %p97 = scmp.ne.s32.totalorder %s92, %s94
      %p98 = scmp.eq.s32.totalorder %s23, 0
      %p99 = por %p97, %p98
      %p100 = scmp.ne.s32.totalorder %s92, %s94
      %p101 = scmp.eq.s32.totalorder %s28, 3
      %p102 = por %p100, %p101
      %p103 = scmp.ne.s32.totalorder %s94, %s95
      %p104 = scmp.eq.s32.totalorder %s28, 0
      %p105 = por %p103, %p104
      %p106 = scmp.ne.s32.totalorder %s94, %s95
      %p107 = scmp.eq.s32.totalorder %s29, 3
      %p108 = por %p106, %p107
      %p110 = scmp.ne.s32.totalorder %s95, %s109
      %p111 = scmp.eq.s32.totalorder %s29, 0
      %p112 = por %p110, %p111
      %s114 = sadd.s32 %s113, 1
      %p117 = scmp.eq.s32.totalorder %s23, 3
      %p118 = scmp.ne.s32.totalorder %s113, %s115
      %p119 = scmp.eq.s32.totalorder %s23, 0
      %p120 = por %p118, %p119
      %p121 = scmp.ne.s32.totalorder %s113, %s115
      %p122 = scmp.eq.s32.totalorder %s28, 3
      %p123 = por %p121, %p122
      %p124 = scmp.ne.s32.totalorder %s115, %s116
      %p125 = scmp.eq.s32.totalorder %s28, 0
      %p126 = por %p124, %p125
      %p127 = scmp.ne.s32.totalorder %s115, %s116
      %p128 = scmp.eq.s32.totalorder %s29, 3
      %p129 = por %p127, %p128
      %p131 = scmp.ne.s32.totalorder %s116, %s130
      %p132 = scmp.eq.s32.totalorder %s29, 0
      %p133 = por %p131, %p132
      %s134 = ssub.s32 %s30, %s42
      %p135 = scmp.eq.s32.totalorder %s134, 0
      %s137 = sadd.s32 %s136, 1
      %s138 = scalar_select %p135, %s136, %s137
      %p141 = pneg %p135
      %p142 = scmp.eq.s32.totalorder %s23, 3
      %p143 = por %p141, %p142
      %p144 = scmp.ne.s32.totalorder %s136, %s139
      %p145 = scmp.eq.s32.totalorder %s23, 0
      %p146 = por %p144, %p145
      %p147 = scmp.ne.s32.totalorder %s136, %s139
      %p148 = scmp.eq.s32.totalorder %s28, 3
      %p149 = por %p147, %p148
      %p150 = scmp.ne.s32.totalorder %s139, %s140
      %p151 = scmp.eq.s32.totalorder %s28, 0
      %p152 = por %p150, %p151
      %p153 = scmp.ne.s32.totalorder %s139, %s140
      %p154 = scmp.eq.s32.totalorder %s29, 3
      %p155 = por %p153, %p154
      %p157 = scmp.ne.s32.totalorder %s140, %s156
      %p158 = scmp.eq.s32.totalorder %s29, 0
      %p159 = por %p157, %p158
      %s160 = ssub.s32 %s31, %s38
      %s161 = ssub.s32 %s30, %s42
      %s162 = sor.u32 %s160, %s161
      %p163 = scmp.eq.s32.totalorder %s162, 0
      %s165 = sadd.s32 %s164, 1
      %s166 = scalar_select %p163, %s164, %s165
      %p169 = pneg %p163
      %p170 = scmp.eq.s32.totalorder %s23, 3
      %p171 = por %p169, %p170
      %p172 = scmp.ne.s32.totalorder %s164, %s167
      %p173 = scmp.eq.s32.totalorder %s23, 0
      %p174 = por %p172, %p173
      %p175 = scmp.ne.s32.totalorder %s164, %s167
      %p176 = scmp.eq.s32.totalorder %s28, 3
      %p177 = por %p175, %p176
      %p178 = scmp.ne.s32.totalorder %s167, %s168
      %p179 = scmp.eq.s32.totalorder %s28, 0
      %p180 = por %p178, %p179
      %p181 = scmp.ne.s32.totalorder %s167, %s168
      %p182 = scmp.eq.s32.totalorder %s29, 3
      %p183 = por %p181, %p182
      %p185 = scmp.ne.s32.totalorder %s168, %s184
      %p186 = scmp.eq.s32.totalorder %s29, 0
      %p187 = por %p185, %p186
      %s188 = ssub.s32 %s30, %s42
      %p189 = scmp.eq.s32.totalorder %s188, 0
      %s191 = sadd.s32 %s190, 1
      %s192 = scalar_select %p189, %s190, %s191
      %p195 = pneg %p189
      %p196 = scmp.eq.s32.totalorder %s23, 3
      %p197 = por %p195, %p196
      %p198 = scmp.ne.s32.totalorder %s190, %s193
      %p199 = scmp.eq.s32.totalorder %s23, 0
      %p200 = por %p198, %p199
      %p201 = scmp.ne.s32.totalorder %s190, %s193
      %p202 = scmp.eq.s32.totalorder %s28, 3
      %p203 = por %p201, %p202
      %p204 = scmp.ne.s32.totalorder %s193, %s194
      %p205 = scmp.eq.s32.totalorder %s28, 0
      %p206 = por %p204, %p205
      %p207 = scmp.ne.s32.totalorder %s193, %s194
      %p208 = scmp.eq.s32.totalorder %s29, 3
      %p209 = por %p207, %p208
      %p211 = scmp.ne.s32.totalorder %s194, %s210
      %p212 = scmp.eq.s32.totalorder %s29, 0
      %p213 = por %p211, %p212
      %p214 = scmp.le.s32.totalorder 1, %s23
      %p215 = scmp.lt.s32.totalorder %s23, 5
      %p216 = pnand %p214, %p215
      %p217 = pneg %p216
      // Predicated region
      $region9: #{tpu_custom_call.1} parent=5 // pred_check
        _
      $region10: #{tpu_custom_call.1} parent=5 // pred_check_branch
        %219 = sbr.rel (%p216) target = $region12
      $region11: #{tpu_custom_call.1} parent=5 // pred_region
        %s220 = ssub.s32 %s23, 1
        // Predicated region
        $region13: #{tpu_custom_call.1} parent=11 // pred_check
          %p221 = pneg %p84
        $region14: #{tpu_custom_call.1} parent=11 // pred_check_branch
          %223 = sbr.rel (%p221) target = $region16
        $region15: #{tpu_custom_call.1} parent=11 // pred_region
          %225 = vsyncadd [#allocation7], 0
          %s226 = sshll.u32 %s1, 4
          %s227 = int_to_ptr.hbm [resolvable:$true] %s226
          %s228 = sshll.u32 [#allocation6], 4
          %s229 = int_to_ptr.vmem [resolvable:$true] %s228
          %234 = dma.hbm_to_vmem [thread:$0]  %s227, 512, %s229, [#allocation7], 128, 128, 8
        $region16: #{tpu_custom_call.1} parent=11 // pred_fallthru
          _
        // Predicated region
        $region17: #{tpu_custom_call.1} parent=11 // pred_check
          %p235 = pneg %p105
        $region18: #{tpu_custom_call.1} parent=11 // pred_check_branch
          %237 = sbr.rel (%p235) target = $region20
        $region19: #{tpu_custom_call.1} parent=11 // pred_region
          _
        $region20: #{tpu_custom_call.1} parent=11 // pred_fallthru
          _
        // Predicated region
        $region21: #{tpu_custom_call.1} parent=11 // pred_check
          %p238 = pneg %p126
        $region22: #{tpu_custom_call.1} parent=11 // pred_check_branch
          %240 = sbr.rel (%p238) target = $region24
        $region23: #{tpu_custom_call.1} parent=11 // pred_region
          _
        $region24: #{tpu_custom_call.1} parent=11 // pred_fallthru
          _
      $region12: #{tpu_custom_call.1} parent=5 // pred_fallthru
        _
      %p241 = scmp.lt.s32.totalorder %s23, 4
      // Predicated region
      $region25: #{tpu_custom_call.1} parent=5 // pred_check
        %p242 = pneg %p241
      $region26: #{tpu_custom_call.1} parent=5 // pred_check_branch
        %244 = sbr.rel (%p242) target = $region28
      $region27: #{tpu_custom_call.1} parent=5 // pred_region
        // Predicated region
        $region29: #{tpu_custom_call.1} parent=27 // pred_check
          %p245 = pneg %p57
        $region30: #{tpu_custom_call.1} parent=27 // pred_check_branch
          %247 = sbr.rel (%p245) target = $region32
        $region31: #{tpu_custom_call.1} parent=27 // pred_region
          %s248 = sand.u32 %s23, 1
          %s249 = scalar_lea.sflag [#allocation4], %s248
          %s250 = sand.u32 %s47, 1
          %s251 = smul.addr %s250, 64
          %s252 = scalar_lea.vmem [#allocation3], %s251
          %s253 = smul.u32 8, %s31
          %255 = vsyncadd %s249, 0
          %s256 = smul.addr %s253, 2
          %s257 = sadd.s32 %s30, %s256
          %s258 = smul.addr %s257, 8
          %s259 = scalar_lea.hbm %s0, %s258
          %s260 = sshll.u32 %s259, 4
          %s261 = int_to_ptr.hbm [resolvable:$true] %s260
          %s262 = sshll.u32 %s252, 4
          %s263 = int_to_ptr.vmem [resolvable:$true] %s262
          %268 = dma.hbm_to_vmem [thread:$0]  %s261, 1024, %s263, %s249, 256, 128, 8
        $region32: #{tpu_custom_call.1} parent=27 // pred_fallthru
          _
        // Predicated region
        $region33: #{tpu_custom_call.1} parent=27 // pred_check
          %p269 = pneg %p146
        $region34: #{tpu_custom_call.1} parent=27 // pred_check_branch
          %271 = sbr.rel (%p269) target = $region36
        $region35: #{tpu_custom_call.1} parent=27 // pred_region
          %s272 = sand.u32 %s23, 1
          %s273 = scalar_lea.sflag [#allocation4], %s272
          %s274 = sand.u32 %s136, 1
          %s275 = smul.addr %s274, 8
          %s276 = scalar_lea.vmem [#allocation8], %s275
          %278 = vsyncadd %s273, 0
          %s279 = smul.addr %s30, 8
          %s280 = scalar_lea.hbm %s4, %s279
          %s282 = sshll.u32 %s280, 4
          %s283 = int_to_ptr.hbm [resolvable:$true] %s282
          %s284 = sshll.u32 %s276, 4
          %s285 = int_to_ptr.vmem [resolvable:$true] %s284
          %287 = dma.hbm_to_vmem [thread:$0]  %s283, 128, %s285, %s273
        $region36: #{tpu_custom_call.1} parent=27 // pred_fallthru
          _
      $region28: #{tpu_custom_call.1} parent=5 // pred_fallthru
        _
      %p288 = scmp.le.s32.totalorder 1, %s23
      %p289 = scmp.lt.s32.totalorder %s23, 5
      %p290 = pnand %p288, %p289
      %p291 = pneg %p290
      // Predicated region
      $region37: #{tpu_custom_call.1} parent=5 // pred_check
        _
      $region38: #{tpu_custom_call.1} parent=5 // pred_check_branch
        %293 = sbr.rel (%p290) target = $region40
      $region39: #{tpu_custom_call.1} parent=5 // pred_region
        %s294 = ssub.s32 %s23, 1
        %s295 = sand.u32 %s28, 1
        %s296 = scalar_lea.sflag [#allocation4], %s295
        %s297 = sand.u32 %s50, 1
        %s298 = smul.addr %s297, 64
        %s299 = scalar_lea.vmem [#allocation3], %s298
        // Predicated region
        $region41: #{tpu_custom_call.1} parent=39 // pred_check
          %p300 = pneg %p63
        $region42: #{tpu_custom_call.1} parent=39 // pred_check_branch
          %302 = sbr.rel (%p300) target = $region44
        $region43: #{tpu_custom_call.1} parent=39 // pred_region
          %304 = dma.done %s296, 1024
        $region44: #{tpu_custom_call.1} parent=39 // pred_fallthru
          _
        // Predicated region
        $region45: #{tpu_custom_call.1} parent=39 // pred_check
          %p305 = pneg %p84
        $region46: #{tpu_custom_call.1} parent=39 // pred_check_branch
          %307 = sbr.rel (%p305) target = $region48
        $region47: #{tpu_custom_call.1} parent=39 // pred_region
          %309 = dma.done [#allocation7], 512
        $region48: #{tpu_custom_call.1} parent=39 // pred_fallthru
          _
        %s310 = sand.u32 %s28, 1
        %s311 = scalar_lea.sflag [#allocation4], %s310
        %s312 = sand.u32 %s139, 1
        %s313 = smul.addr %s312, 8
        %s314 = scalar_lea.vmem [#allocation8], %s313
        // Predicated region
        $region49: #{tpu_custom_call.1} parent=39 // pred_check
          %p315 = pneg %p152
        $region50: #{tpu_custom_call.1} parent=39 // pred_check_branch
          %317 = sbr.rel (%p315) target = $region52
        $region51: #{tpu_custom_call.1} parent=39 // pred_region
          %319 = dma.done %s311, 128
        $region52: #{tpu_custom_call.1} parent=39 // pred_fallthru
          _
        %s320 = sand.u32 %s28, 1
        %s321 = scalar_lea.sflag [#allocation4], %s320
        %s322 = sand.u32 %s50, 1
        %s323 = smul.addr %s322, 64
        %s324 = scalar_lea.vmem [#allocation3], %s323
        %p325 = pneg %p63
        %p326 = pneg %p60
        %p327 = pneg %p84
        %p328 = pneg %p81
        %p329 = pneg %p105
        %p330 = pneg %p102
        %p331 = pneg %p126
        %p332 = pneg %p123
        %s333 = sand.u32 %s28, 1
        %s334 = scalar_lea.sflag [#allocation4], %s333
        %s335 = sand.u32 %s139, 1
        %s336 = smul.addr %s335, 8
        %s337 = scalar_lea.vmem [#allocation8], %s336
        %p338 = pneg %p152
        %p339 = pneg %p149
        %p340 = pneg %p180
        %p341 = pneg %p177
        %s342 = sand.u32 %s167, 1
        %s343 = scalar_lea.sflag [#allocation5], %s342
        %s344 = sand.u32 %s167, 1
        %s345 = smul.addr %s344, 64
        %s346 = scalar_lea.vmem [#allocation9], %s345
        %p347 = pneg %p206
        %p348 = pneg %p203
        %s349 = sand.u32 %s193, 1
        %s350 = scalar_lea.sflag [#allocation11], %s349
        %s351 = sand.u32 %s193, 1
        %s352 = smul.addr %s351, 8
        %s353 = scalar_lea.vmem [#allocation10], %s352
        %s354 = smul.u32 8, %s33
        %s355 = smul.u32 8, %s33
        %p356 = scmp.eq.s32.totalorder %s33, 0
        // Predicated region
        $region53: #{tpu_custom_call.1} parent=39 // pred_check
          %p357 = pneg %p356
        $region54: #{tpu_custom_call.1} parent=39 // pred_check_branch
          %359 = sbr.rel (%p357) target = $region56
        $region55: #{tpu_custom_call.1} parent=39 // pred_region
          %v360 = vld [vmem:[%s314] sm:$0xff]
          %vm361 = vcmask 261120
          %362 = vst.msk [vmem:[#allocation2] sm:$0xff] %vm361, %v360
        $region56: #{tpu_custom_call.1} parent=39 // pred_fallthru
          _
        %v363 = vld [vmem:[%s2] sm:$0x1]
        %v365 = vperm.slane %v363, 0
        %v366 = vld [vmem:[%s3] sm:$0x1]
        %v368 = vperm.slane %v366, 0
        %v369 = vld [vmem:[#allocation2] sm:$0xff]
        %v370 = vld [vmem:[%s299] sm:$0xff]
        %v371 = vmul.f32 %v369, %v369
        %vm372 = vcmask 261120
        %v373 = vsel %vm372, %v371, 0.0
        %374 = vadd.xlane.f32.xlu0 %v373
        %v375 = vpop.xlane.xlu0 %374
        %v376 = vrsqrt.pop %v375
        %v377 = vmul.f32 %v376, %v375
        %v378 = vmul.f32 %v377, %v376
        %v379 = vmul.f32 0.5, %v378
        %v380 = vsub.f32 1.5, %v379
        %v381 = vmul.f32 %v376, %v380
        %v382 = vmul.f32 %v375, %v381
        %vm383 = vcmp.eq.f32.partialorder %v375, inf
        %v384 = vsel %vm383, %v375, %v382
        %vm385 = vcmp.eq.f32.partialorder %v375, 0.0
        %v386 = vand.u32 %v375, 2147483648
        %v387 = vsel %vm385, %v386, %v384
        %v388 = vadd.f32 %v387, 1e-08
        %v389 = vrcp.pop %v388
        %v390 = vmul.f32 %v388, %v389
        %v391 = vsub.f32 1.0, %v390
        %v392 = vmul.f32 %v389, %v391
        %v393 = vadd.f32 %v389, %v392
        %vm394 = vweird.f32 %v388
        %vm395 = vweird.f32 %v389
        %vm396 = vmor %vm394, %vm395
        %v397 = vsel %vm396, %v389, %v393
        %v398 = vand.u32 2147483647, %v388
        %vm399 = vcmp.eq.f32.partialorder %v398, 8.507059e+37
        %v400 = vand.u32 %v388, 2147483648
        %v401 = vor.u32 1.1754944e-38, %v400
        %v402 = vsel %vm399, %v401, %v397
        %v403 = vmul.f32 %v369, %v402
        %v404 = vld [vmem:[#allocation6] sm:$0xff]
        %v405 = vld [vmem:[#allocation6 + $0x8] sm:$0xff]
        %v406 = vld [vmem:[#allocation6 + $0x10] sm:$0xff]
        %v407 = vld [vmem:[#allocation6 + $0x18] sm:$0xff]
        %v409 = vsel %vm372, %v403, 0
        %411 = vmatpush.msra.mxu0 0.0
        %412 = vmatpush.msra.mxu0 0.0
        %413 = vmatpush.msra.mxu0 0.0
        %414 = vmatpush.msra.mxu0 0.0
        %415 = vmatpush.msra.mxu0 0.0
        %416 = vmatpush.msra.mxu0 0.0
        %417 = vmatpush.msra.mxu0 0.0
        %418 = vmatpush.msra.mxu0 0.0
        %419 = vmatpush.msra.mxu0 0.0
        %420 = vmatpush.msra.mxu0 0.0
        %421 = vmatpush.msra.mxu0 0.0
        %422 = vmatpush.msra.mxu0 0.0
        %423 = vmatpush.msra.mxu0 %v407
        %424 = vmatpush.msra.mxu0 %v406
        %425 = vmatpush.msra.mxu0 %v405
        %426 = vmatpush.msra.mxu0 %v404
        %427 = vmatmul.f32.gmra.mxu0 %v409
        %v428 = vpop.f32.mrf.mxu0
        %v429 = vadd.f32 0.0, %v428
        %430 = vdwg.mxu0
        %v431 = vadd.f32 %v370, %v429
        %v432 = vxor.u32 %v431, 2147483648
        %v433 = vmul.f32 %v432, 1.442695
        %v434 = vpow.pop %v433
        %v435 = vadd.f32 %v434, 1.0
        %v436 = vrcp.pop %v435
        %v437 = vmul.f32 %v435, %v436
        %v438 = vsub.f32 1.0, %v437
        %v439 = vmul.f32 %v436, %v438
        %v440 = vadd.f32 %v436, %v439
        %vm441 = vweird.f32 %v435
        %vm442 = vweird.f32 %v436
        %vm443 = vmor %vm441, %vm442
        %v444 = vsel %vm443, %v436, %v440
        %v445 = vand.u32 2147483647, %v435
        %vm446 = vcmp.eq.f32.partialorder %v445, 8.507059e+37
        %v447 = vand.u32 %v435, 2147483648
        %v448 = vor.u32 1.1754944e-38, %v447
        %v449 = vsel %vm446, %v448, %v444
        %v450 = vmul.f32 1.0, %v449
        %v451 = vtanh.pop %v431
        %452 = vrot.lane.b32.xlu0 %v403, 32
        %v453 = vpop.permute.xlu0 %452
        %v455 = vmul.f32 %v450, %v453
        %457 = vrot.lane.b32.xlu0 %v451, 64
        %v458 = vpop.permute.xlu0 %457
        %v460 = vmul.f32 %v450, %v458
        %462 = vrot.lane.b32.xlu0 %v460, 32
        %v463 = vpop.permute.xlu0 %462
        %v465 = vadd.f32 %v455, %v463
        %467 = vrot.lane.b32.xlu0 %v465, 96
        %v468 = vpop.permute.xlu0 %467
        %v470 = vsel %vm372, %v468, 0.0
        %471 = vadd.xlane.f32.xlu0 %v470
        %v472 = vpop.xlane.xlu0 %471
        %v473 = vrcp.pop 32.0
        %v474 = vmul.f32 32.0, %v473
        %v475 = vsub.f32 1.0, %v474
        %v476 = vmul.f32 %v473, %v475
        %v477 = vadd.f32 %v473, %v476
        %vm478 = vweird.f32 %v473
        %v479 = vsel %vm478, %v473, %v477
        %v480 = vmul.f32 %v472, %v479
        %v481 = vsub.f32 %v465, %v480
        %v482 = vmul.f32 %v481, %v481
        %484 = vrot.lane.b32.xlu0 %v482, 96
        %v485 = vpop.permute.xlu0 %484
        %v487 = vsel %vm372, %v485, 0.0
        %488 = vadd.xlane.f32.xlu0 %v487
        %v489 = vpop.xlane.xlu0 %488
        %v490 = vmul.f32 %v489, %v479
        %v491 = vadd.f32 %v490, 1e-05
        %v492 = vrsqrt.pop %v491
        %v493 = vmul.f32 %v492, %v491
        %v494 = vmul.f32 %v493, %v492
        %v495 = vmul.f32 0.5, %v494
        %v496 = vsub.f32 1.5, %v495
        %v497 = vmul.f32 %v492, %v496
        %vm498 = vweird.f32 %v491
        %vm499 = vweird.f32 %v492
        %vm500 = vmor %vm498, %vm499
        %v501 = vsel %vm500, %v492, %v497
        %v502 = vmul.f32 %v481, %v501
        %v503 = vmul.f32 %v501, %v501
        %v504 = vmul.f32 %v490, %v503
        %v505 = vadd.f32 %v504, 1e-05
        %v506 = vrsqrt.pop %v505
        %v507 = vmul.f32 %v506, %v505
        %v508 = vmul.f32 %v507, %v506
        %v509 = vmul.f32 0.5, %v508
        %v510 = vsub.f32 1.5, %v509
        %v511 = vmul.f32 %v506, %v510
        %vm512 = vweird.f32 %v505
        %vm513 = vweird.f32 %v506
        %vm514 = vmor %vm512, %vm513
        %v515 = vsel %vm514, %v506, %v511
        %v516 = vmul.f32 %v502, %v515
        %517 = vrot.lane.b32.xlu0 %v365, 32
        %v518 = vpop.permute.xlu0 %517
        %v520 = vmul.f32 %v516, %v518
        %521 = vrot.lane.b32.xlu0 %v368, 32
        %v522 = vpop.permute.xlu0 %521
        %v524 = vadd.f32 %v520, %v522
        %526 = vrot.lane.b32.xlu0 %v524, 96
        %v527 = vpop.permute.xlu0 %526
        %529 = vst.msk [vmem:[%s346] sm:$0xff] %vm372, %v527
        %s530 = scalar_lea.vmem %s299, 8 [#allocation3]
        %v531 = vld [vmem:[%s530] sm:$0xff]
        %v532 = vmul.f32 %v502, %v502
        %534 = vrot.lane.b32.xlu0 %v532, 96
        %v535 = vpop.permute.xlu0 %534
        %v537 = vsel %vm372, %v535, 0.0
        %538 = vadd.xlane.f32.xlu0 %v537
        %v539 = vpop.xlane.xlu0 %538
        %v540 = vrsqrt.pop %v539
        %v541 = vmul.f32 %v540, %v539
        %v542 = vmul.f32 %v541, %v540
        %v543 = vmul.f32 0.5, %v542
        %v544 = vsub.f32 1.5, %v543
        %v545 = vmul.f32 %v540, %v544
        %v546 = vmul.f32 %v539, %v545
        %vm547 = vcmp.eq.f32.partialorder %v539, inf
        %v548 = vsel %vm547, %v539, %v546
        %vm549 = vcmp.eq.f32.partialorder %v539, 0.0
        %v550 = vand.u32 %v539, 2147483648
        %v551 = vsel %vm549, %v550, %v548
        %v552 = vadd.f32 %v551, 1e-08
        %v553 = vrcp.pop %v552
        %v554 = vmul.f32 %v552, %v553
        %v555 = vsub.f32 1.0, %v554
        %v556 = vmul.f32 %v553, %v555
        %v557 = vadd.f32 %v553, %v556
        %vm558 = vweird.f32 %v552
        %vm559 = vweird.f32 %v553
        %vm560 = vmor %vm558, %vm559
        %v561 = vsel %vm560, %v553, %v557
        %v562 = vand.u32 2147483647, %v552
        %vm563 = vcmp.eq.f32.partialorder %v562, 8.507059e+37
        %v564 = vand.u32 %v552, 2147483648
        %v565 = vor.u32 1.1754944e-38, %v564
        %v566 = vsel %vm563, %v565, %v561
        %v567 = vmul.f32 %v502, %v566
        %v568 = vld [vmem:[#allocation6] sm:$0xff]
        %v569 = vld [vmem:[#allocation6 + $0x8] sm:$0xff]
        %v570 = vld [vmem:[#allocation6 + $0x10] sm:$0xff]
        %v571 = vld [vmem:[#allocation6 + $0x18] sm:$0xff]
        %573 = vrot.lane.b32.xlu0 %v567, 96
        %v574 = vpop.permute.xlu0 %573
        %v575 = vsel %vm372, %v574, 0
        %577 = vmatpush.msra.mxu0 0.0
        %578 = vmatpush.msra.mxu0 0.0
        %579 = vmatpush.msra.mxu0 0.0
        %580 = vmatpush.msra.mxu0 0.0
        %581 = vmatpush.msra.mxu0 0.0
        %582 = vmatpush.msra.mxu0 0.0
        %583 = vmatpush.msra.mxu0 0.0
        %584 = vmatpush.msra.mxu0 0.0
        %585 = vmatpush.msra.mxu0 0.0
        %586 = vmatpush.msra.mxu0 0.0
        %587 = vmatpush.msra.mxu0 0.0
        %588 = vmatpush.msra.mxu0 0.0
        %589 = vmatpush.msra.mxu0 %v571
        %590 = vmatpush.msra.mxu0 %v570
        %591 = vmatpush.msra.mxu0 %v569
        %592 = vmatpush.msra.mxu0 %v568
        %593 = vmatmul.f32.gmra.mxu0 %v575
        %v594 = vpop.f32.mrf.mxu0
        %v595 = vadd.f32 0.0, %v594
        %596 = vdwg.mxu0
        %v597 = vadd.f32 %v531, %v595
        %v598 = vxor.u32 %v597, 2147483648
        %v599 = vmul.f32 %v598, 1.442695
        %v600 = vpow.pop %v599
        %v601 = vadd.f32 %v600, 1.0
        %v602 = vrcp.pop %v601
        %v603 = vmul.f32 %v601, %v602
        %v604 = vsub.f32 1.0, %v603
        %v605 = vmul.f32 %v602, %v604
        %v606 = vadd.f32 %v602, %v605
        %vm607 = vweird.f32 %v601
        %vm608 = vweird.f32 %v602
        %vm609 = vmor %vm607, %vm608
        %v610 = vsel %vm609, %v602, %v606
        %v611 = vand.u32 2147483647, %v601
        %vm612 = vcmp.eq.f32.partialorder %v611, 8.507059e+37
        %v613 = vand.u32 %v601, 2147483648
        %v614 = vor.u32 1.1754944e-38, %v613
        %v615 = vsel %vm612, %v614, %v610
        %v616 = vmul.f32 1.0, %v615
        %v617 = vtanh.pop %v597
        %v618 = vmul.f32 %v616, %v567
        %620 = vrot.lane.b32.xlu0 %v617, 64
        %v621 = vpop.permute.xlu0 %620
        %v623 = vmul.f32 %v616, %v621
        %625 = vrot.lane.b32.xlu0 %v623, 32
        %v626 = vpop.permute.xlu0 %625
        %v628 = vadd.f32 %v618, %v626
        %630 = vrot.lane.b32.xlu0 %v628, 96
        %v631 = vpop.permute.xlu0 %630
        %v633 = vsel %vm372, %v631, 0.0
        %634 = vadd.xlane.f32.xlu0 %v633
        %v635 = vpop.xlane.xlu0 %634
        %v636 = vmul.f32 %v635, %v479
        %v637 = vsub.f32 %v628, %v636
        %v638 = vmul.f32 %v637, %v637
        %640 = vrot.lane.b32.xlu0 %v638, 96
        %v641 = vpop.permute.xlu0 %640
        %v643 = vsel %vm372, %v641, 0.0
        %644 = vadd.xlane.f32.xlu0 %v643
        %v645 = vpop.xlane.xlu0 %644
        %v646 = vmul.f32 %v645, %v479
        %v647 = vadd.f32 %v646, 1e-05
        %v648 = vrsqrt.pop %v647
        %v649 = vmul.f32 %v648, %v647
        %v650 = vmul.f32 %v649, %v648
        %v651 = vmul.f32 0.5, %v650
        %v652 = vsub.f32 1.5, %v651
        %v653 = vmul.f32 %v648, %v652
        %vm654 = vweird.f32 %v647
        %vm655 = vweird.f32 %v648
        %vm656 = vmor %vm654, %vm655
        %v657 = vsel %vm656, %v648, %v653
        %v658 = vmul.f32 %v637, %v657
        %v659 = vmul.f32 %v657, %v657
        %v660 = vmul.f32 %v646, %v659
        %v661 = vadd.f32 %v660, 1e-05
        %v662 = vrsqrt.pop %v661
        %v663 = vmul.f32 %v662, %v661
        %v664 = vmul.f32 %v663, %v662
        %v665 = vmul.f32 0.5, %v664
        %v666 = vsub.f32 1.5, %v665
        %v667 = vmul.f32 %v662, %v666
        %vm668 = vweird.f32 %v661
        %vm669 = vweird.f32 %v662
        %vm670 = vmor %vm668, %vm669
        %v671 = vsel %vm670, %v662, %v667
        %v672 = vmul.f32 %v658, %v671
        %v673 = vmul.f32 %v672, %v518
        %v674 = vadd.f32 %v673, %v522
        %676 = vrot.lane.b32.xlu0 %v674, 96
        %v677 = vpop.permute.xlu0 %676
        %s679 = scalar_lea.vmem %s346, 8 [#allocation9]
        %680 = vst.msk [vmem:[%s679] sm:$0xff] %vm372, %v677
        %s681 = scalar_lea.vmem %s299, 16 [#allocation3]
        %v682 = vld [vmem:[%s681] sm:$0xff]
        %v683 = vmul.f32 %v658, %v658
        %685 = vrot.lane.b32.xlu0 %v683, 96
        %v686 = vpop.permute.xlu0 %685
        %v688 = vsel %vm372, %v686, 0.0
        %689 = vadd.xlane.f32.xlu0 %v688
        %v690 = vpop.xlane.xlu0 %689
        %v691 = vrsqrt.pop %v690
        %v692 = vmul.f32 %v691, %v690
        %v693 = vmul.f32 %v692, %v691
        %v694 = vmul.f32 0.5, %v693
        %v695 = vsub.f32 1.5, %v694
        %v696 = vmul.f32 %v691, %v695
        %v697 = vmul.f32 %v690, %v696
        %vm698 = vcmp.eq.f32.partialorder %v690, inf
        %v699 = vsel %vm698, %v690, %v697
        %vm700 = vcmp.eq.f32.partialorder %v690, 0.0
        %v701 = vand.u32 %v690, 2147483648
        %v702 = vsel %vm700, %v701, %v699
        %v703 = vadd.f32 %v702, 1e-08
        %v704 = vrcp.pop %v703
        %v705 = vmul.f32 %v703, %v704
        %v706 = vsub.f32 1.0, %v705
        %v707 = vmul.f32 %v704, %v706
        %v708 = vadd.f32 %v704, %v707
        %vm709 = vweird.f32 %v703
        %vm710 = vweird.f32 %v704
        %vm711 = vmor %vm709, %vm710
        %v712 = vsel %vm711, %v704, %v708
        %v713 = vand.u32 2147483647, %v703
        %vm714 = vcmp.eq.f32.partialorder %v713, 8.507059e+37
        %v715 = vand.u32 %v703, 2147483648
        %v716 = vor.u32 1.1754944e-38, %v715
        %v717 = vsel %vm714, %v716, %v712
        %v718 = vmul.f32 %v658, %v717
        %v719 = vld [vmem:[#allocation6] sm:$0xff]
        %v720 = vld [vmem:[#allocation6 + $0x8] sm:$0xff]
        %v721 = vld [vmem:[#allocation6 + $0x10] sm:$0xff]
        %v722 = vld [vmem:[#allocation6 + $0x18] sm:$0xff]
        %724 = vrot.lane.b32.xlu0 %v718, 96
        %v725 = vpop.permute.xlu0 %724
        %v726 = vsel %vm372, %v725, 0
        %728 = vmatpush.msra.mxu0 0.0
        %729 = vmatpush.msra.mxu0 0.0
        %730 = vmatpush.msra.mxu0 0.0
        %731 = vmatpush.msra.mxu0 0.0
        %732 = vmatpush.msra.mxu0 0.0
        %733 = vmatpush.msra.mxu0 0.0
        %734 = vmatpush.msra.mxu0 0.0
        %735 = vmatpush.msra.mxu0 0.0
        %736 = vmatpush.msra.mxu0 0.0
        %737 = vmatpush.msra.mxu0 0.0
        %738 = vmatpush.msra.mxu0 0.0
        %739 = vmatpush.msra.mxu0 0.0
        %740 = vmatpush.msra.mxu0 %v722
        %741 = vmatpush.msra.mxu0 %v721
        %742 = vmatpush.msra.mxu0 %v720
        %743 = vmatpush.msra.mxu0 %v719
        %744 = vmatmul.f32.gmra.mxu0 %v726
        %v745 = vpop.f32.mrf.mxu0
        %v746 = vadd.f32 0.0, %v745
        %747 = vdwg.mxu0
        %v748 = vadd.f32 %v682, %v746
        %v749 = vxor.u32 %v748, 2147483648
        %v750 = vmul.f32 %v749, 1.442695
        %v751 = vpow.pop %v750
        %v752 = vadd.f32 %v751, 1.0
        %v753 = vrcp.pop %v752
        %v754 = vmul.f32 %v752, %v753
        %v755 = vsub.f32 1.0, %v754
        %v756 = vmul.f32 %v753, %v755
        %v757 = vadd.f32 %v753, %v756
        %vm758 = vweird.f32 %v752
        %vm759 = vweird.f32 %v753
        %vm760 = vmor %vm758, %vm759
        %v761 = vsel %vm760, %v753, %v757
        %v762 = vand.u32 2147483647, %v752
        %vm763 = vcmp.eq.f32.partialorder %v762, 8.507059e+37
        %v764 = vand.u32 %v752, 2147483648
        %v765 = vor.u32 1.1754944e-38, %v764
        %v766 = vsel %vm763, %v765, %v761
        %v767 = vmul.f32 1.0, %v766
        %v768 = vtanh.pop %v748
        %v769 = vmul.f32 %v767, %v718
        %771 = vrot.lane.b32.xlu0 %v768, 64
        %v772 = vpop.permute.xlu0 %771
        %v774 = vmul.f32 %v767, %v772
        %776 = vrot.lane.b32.xlu0 %v774, 32
        %v777 = vpop.permute.xlu0 %776
        %v779 = vadd.f32 %v769, %v777
        %781 = vrot.lane.b32.xlu0 %v779, 96
        %v782 = vpop.permute.xlu0 %781
        %v784 = vsel %vm372, %v782, 0.0
        %785 = vadd.xlane.f32.xlu0 %v784
        %v786 = vpop.xlane.xlu0 %785
        %v787 = vmul.f32 %v786, %v479
        %v788 = vsub.f32 %v779, %v787
        %v789 = vmul.f32 %v788, %v788
        %791 = vrot.lane.b32.xlu0 %v789, 96
        %v792 = vpop.permute.xlu0 %791
        %v794 = vsel %vm372, %v792, 0.0
        %795 = vadd.xlane.f32.xlu0 %v794
        %v796 = vpop.xlane.xlu0 %795
        %v797 = vmul.f32 %v796, %v479
        %v798 = vadd.f32 %v797, 1e-05
        %v799 = vrsqrt.pop %v798
        %v800 = vmul.f32 %v799, %v798
        %v801 = vmul.f32 %v800, %v799
        %v802 = vmul.f32 0.5, %v801
        %v803 = vsub.f32 1.5, %v802
        %v804 = vmul.f32 %v799, %v803
        %vm805 = vweird.f32 %v798
        %vm806 = vweird.f32 %v799
        %vm807 = vmor %vm805, %vm806
        %v808 = vsel %vm807, %v799, %v804
        %v809 = vmul.f32 %v788, %v808
        %v810 = vmul.f32 %v808, %v808
        %v811 = vmul.f32 %v797, %v810
        %v812 = vadd.f32 %v811, 1e-05
        %v813 = vrsqrt.pop %v812
        %v814 = vmul.f32 %v813, %v812
        %v815 = vmul.f32 %v814, %v813
        %v816 = vmul.f32 0.5, %v815
        %v817 = vsub.f32 1.5, %v816
        %v818 = vmul.f32 %v813, %v817
        %vm819 = vweird.f32 %v812
        %vm820 = vweird.f32 %v813
        %vm821 = vmor %vm819, %vm820
        %v822 = vsel %vm821, %v813, %v818
        %v823 = vmul.f32 %v809, %v822
        %v824 = vmul.f32 %v823, %v518
        %v825 = vadd.f32 %v824, %v522
        %827 = vrot.lane.b32.xlu0 %v825, 96
        %v828 = vpop.permute.xlu0 %827
        %s830 = scalar_lea.vmem %s346, 16 [#allocation9]
        %831 = vst.msk [vmem:[%s830] sm:$0xff] %vm372, %v828
        %s832 = scalar_lea.vmem %s299, 24 [#allocation3]
        %v833 = vld [vmem:[%s832] sm:$0xff]
        %v834 = vmul.f32 %v809, %v809
        %836 = vrot.lane.b32.xlu0 %v834, 96
        %v837 = vpop.permute.xlu0 %836
        %v839 = vsel %vm372, %v837, 0.0
        %840 = vadd.xlane.f32.xlu0 %v839
        %v841 = vpop.xlane.xlu0 %840
        %v842 = vrsqrt.pop %v841
        %v843 = vmul.f32 %v842, %v841
        %v844 = vmul.f32 %v843, %v842
        %v845 = vmul.f32 0.5, %v844
        %v846 = vsub.f32 1.5, %v845
        %v847 = vmul.f32 %v842, %v846
        %v848 = vmul.f32 %v841, %v847
        %vm849 = vcmp.eq.f32.partialorder %v841, inf
        %v850 = vsel %vm849, %v841, %v848
        %vm851 = vcmp.eq.f32.partialorder %v841, 0.0
        %v852 = vand.u32 %v841, 2147483648
        %v853 = vsel %vm851, %v852, %v850
        %v854 = vadd.f32 %v853, 1e-08
        %v855 = vrcp.pop %v854
        %v856 = vmul.f32 %v854, %v855
        %v857 = vsub.f32 1.0, %v856
        %v858 = vmul.f32 %v855, %v857
        %v859 = vadd.f32 %v855, %v858
        %vm860 = vweird.f32 %v854
        %vm861 = vweird.f32 %v855
        %vm862 = vmor %vm860, %vm861
        %v863 = vsel %vm862, %v855, %v859
        %v864 = vand.u32 2147483647, %v854
        %vm865 = vcmp.eq.f32.partialorder %v864, 8.507059e+37
        %v866 = vand.u32 %v854, 2147483648
        %v867 = vor.u32 1.1754944e-38, %v866
        %v868 = vsel %vm865, %v867, %v863
        %v869 = vmul.f32 %v809, %v868
        %v870 = vld [vmem:[#allocation6] sm:$0xff]
        %v871 = vld [vmem:[#allocation6 + $0x8] sm:$0xff]
        %v872 = vld [vmem:[#allocation6 + $0x10] sm:$0xff]
        %v873 = vld [vmem:[#allocation6 + $0x18] sm:$0xff]
        %875 = vrot.lane.b32.xlu0 %v869, 96
        %v876 = vpop.permute.xlu0 %875
        %v877 = vsel %vm372, %v876, 0
        %879 = vmatpush.msra.mxu0 0.0
        %880 = vmatpush.msra.mxu0 0.0
        %881 = vmatpush.msra.mxu0 0.0
        %882 = vmatpush.msra.mxu0 0.0
        %883 = vmatpush.msra.mxu0 0.0
        %884 = vmatpush.msra.mxu0 0.0
        %885 = vmatpush.msra.mxu0 0.0
        %886 = vmatpush.msra.mxu0 0.0
        %887 = vmatpush.msra.mxu0 0.0
        %888 = vmatpush.msra.mxu0 0.0
        %889 = vmatpush.msra.mxu0 0.0
        %890 = vmatpush.msra.mxu0 0.0
        %891 = vmatpush.msra.mxu0 %v873
        %892 = vmatpush.msra.mxu0 %v872
        %893 = vmatpush.msra.mxu0 %v871
        %894 = vmatpush.msra.mxu0 %v870
        %895 = vmatmul.f32.gmra.mxu0 %v877
        %v896 = vpop.f32.mrf.mxu0
        %v897 = vadd.f32 0.0, %v896
        %898 = vdwg.mxu0
        %v899 = vadd.f32 %v833, %v897
        %v900 = vxor.u32 %v899, 2147483648
        %v901 = vmul.f32 %v900, 1.442695
        %v902 = vpow.pop %v901
        %v903 = vadd.f32 %v902, 1.0
        %v904 = vrcp.pop %v903
        %v905 = vmul.f32 %v903, %v904
        %v906 = vsub.f32 1.0, %v905
        %v907 = vmul.f32 %v904, %v906
        %v908 = vadd.f32 %v904, %v907
        %vm909 = vweird.f32 %v903
        %vm910 = vweird.f32 %v904
        %vm911 = vmor %vm909, %vm910
        %v912 = vsel %vm911, %v904, %v908
        %v913 = vand.u32 2147483647, %v903
        %vm914 = vcmp.eq.f32.partialorder %v913, 8.507059e+37
        %v915 = vand.u32 %v903, 2147483648
        %v916 = vor.u32 1.1754944e-38, %v915
        %v917 = vsel %vm914, %v916, %v912
        %v918 = vmul.f32 1.0, %v917
        %v919 = vtanh.pop %v899
        %v920 = vmul.f32 %v918, %v869
        %922 = vrot.lane.b32.xlu0 %v919, 64
        %v923 = vpop.permute.xlu0 %922
        %v925 = vmul.f32 %v918, %v923
        %927 = vrot.lane.b32.xlu0 %v925, 32
        %v928 = vpop.permute.xlu0 %927
        %v930 = vadd.f32 %v920, %v928
        %932 = vrot.lane.b32.xlu0 %v930, 96
        %v933 = vpop.permute.xlu0 %932
        %v935 = vsel %vm372, %v933, 0.0
        %936 = vadd.xlane.f32.xlu0 %v935
        %v937 = vpop.xlane.xlu0 %936
        %v938 = vmul.f32 %v937, %v479
        %v939 = vsub.f32 %v930, %v938
        %v940 = vmul.f32 %v939, %v939
        %942 = vrot.lane.b32.xlu0 %v940, 96
        %v943 = vpop.permute.xlu0 %942
        %v945 = vsel %vm372, %v943, 0.0
        %946 = vadd.xlane.f32.xlu0 %v945
        %v947 = vpop.xlane.xlu0 %946
        %v948 = vmul.f32 %v947, %v479
        %v949 = vadd.f32 %v948, 1e-05
        %v950 = vrsqrt.pop %v949
        %v951 = vmul.f32 %v950, %v949
        %v952 = vmul.f32 %v951, %v950
        %v953 = vmul.f32 0.5, %v952
        %v954 = vsub.f32 1.5, %v953
        %v955 = vmul.f32 %v950, %v954
        %vm956 = vweird.f32 %v949
        %vm957 = vweird.f32 %v950
        %vm958 = vmor %vm956, %vm957
        %v959 = vsel %vm958, %v950, %v955
        %v960 = vmul.f32 %v939, %v959
        %v961 = vmul.f32 %v959, %v959
        %v962 = vmul.f32 %v948, %v961
        %v963 = vadd.f32 %v962, 1e-05
        %v964 = vrsqrt.pop %v963
        %v965 = vmul.f32 %v964, %v963
        %v966 = vmul.f32 %v965, %v964
        %v967 = vmul.f32 0.5, %v966
        %v968 = vsub.f32 1.5, %v967
        %v969 = vmul.f32 %v964, %v968
        %vm970 = vweird.f32 %v963
        %vm971 = vweird.f32 %v964
        %vm972 = vmor %vm970, %vm971
        %v973 = vsel %vm972, %v964, %v969
        %v974 = vmul.f32 %v960, %v973
        %v975 = vmul.f32 %v974, %v518
        %v976 = vadd.f32 %v975, %v522
        %978 = vrot.lane.b32.xlu0 %v976, 96
        %v979 = vpop.permute.xlu0 %978
        %s981 = scalar_lea.vmem %s346, 24 [#allocation9]
        %982 = vst.msk [vmem:[%s981] sm:$0xff] %vm372, %v979
        %s983 = scalar_lea.vmem %s299, 32 [#allocation3]
        %v984 = vld [vmem:[%s983] sm:$0xff]
        %v985 = vmul.f32 %v960, %v960
        %987 = vrot.lane.b32.xlu0 %v985, 96
        %v988 = vpop.permute.xlu0 %987
        %v990 = vsel %vm372, %v988, 0.0
        %991 = vadd.xlane.f32.xlu0 %v990
        %v992 = vpop.xlane.xlu0 %991
        %v993 = vrsqrt.pop %v992
        %v994 = vmul.f32 %v993, %v992
        %v995 = vmul.f32 %v994, %v993
        %v996 = vmul.f32 0.5, %v995
        %v997 = vsub.f32 1.5, %v996
        %v998 = vmul.f32 %v993, %v997
        %v999 = vmul.f32 %v992, %v998
        %vm1000 = vcmp.eq.f32.partialorder %v992, inf
        %v1001 = vsel %vm1000, %v992, %v999
        %vm1002 = vcmp.eq.f32.partialorder %v992, 0.0
        %v1003 = vand.u32 %v992, 2147483648
        %v1004 = vsel %vm1002, %v1003, %v1001
        %v1005 = vadd.f32 %v1004, 1e-08
        %v1006 = vrcp.pop %v1005
        %v1007 = vmul.f32 %v1005, %v1006
        %v1008 = vsub.f32 1.0, %v1007
        %v1009 = vmul.f32 %v1006, %v1008
        %v1010 = vadd.f32 %v1006, %v1009
        %vm1011 = vweird.f32 %v1005
        %vm1012 = vweird.f32 %v1006
        %vm1013 = vmor %vm1011, %vm1012
        %v1014 = vsel %vm1013, %v1006, %v1010
        %v1015 = vand.u32 2147483647, %v1005
        %vm1016 = vcmp.eq.f32.partialorder %v1015, 8.507059e+37
        %v1017 = vand.u32 %v1005, 2147483648
        %v1018 = vor.u32 1.1754944e-38, %v1017
        %v1019 = vsel %vm1016, %v1018, %v1014
        %v1020 = vmul.f32 %v960, %v1019
        %v1021 = vld [vmem:[#allocation6] sm:$0xff]
        %v1022 = vld [vmem:[#allocation6 + $0x8] sm:$0xff]
        %v1023 = vld [vmem:[#allocation6 + $0x10] sm:$0xff]
        %v1024 = vld [vmem:[#allocation6 + $0x18] sm:$0xff]
        %1026 = vrot.lane.b32.xlu0 %v1020, 96
        %v1027 = vpop.permute.xlu0 %1026
        %v1028 = vsel %vm372, %v1027, 0
        %1030 = vmatpush.msra.mxu0 0.0
        %1031 = vmatpush.msra.mxu0 0.0
        %1032 = vmatpush.msra.mxu0 0.0
        %1033 = vmatpush.msra.mxu0 0.0
        %1034 = vmatpush.msra.mxu0 0.0
        %1035 = vmatpush.msra.mxu0 0.0
        %1036 = vmatpush.msra.mxu0 0.0
        %1037 = vmatpush.msra.mxu0 0.0
        %1038 = vmatpush.msra.mxu0 0.0
        %1039 = vmatpush.msra.mxu0 0.0
        %1040 = vmatpush.msra.mxu0 0.0
        %1041 = vmatpush.msra.mxu0 0.0
        %1042 = vmatpush.msra.mxu0 %v1024
        %1043 = vmatpush.msra.mxu0 %v1023
        %1044 = vmatpush.msra.mxu0 %v1022
        %1045 = vmatpush.msra.mxu0 %v1021
        %1046 = vmatmul.f32.gmra.mxu0 %v1028
        %v1047 = vpop.f32.mrf.mxu0
        %v1048 = vadd.f32 0.0, %v1047
        %1049 = vdwg.mxu0
        %v1050 = vadd.f32 %v984, %v1048
        %v1051 = vxor.u32 %v1050, 2147483648
        %v1052 = vmul.f32 %v1051, 1.442695
        %v1053 = vpow.pop %v1052
        %v1054 = vadd.f32 %v1053, 1.0
        %v1055 = vrcp.pop %v1054
        %v1056 = vmul.f32 %v1054, %v1055
        %v1057 = vsub.f32 1.0, %v1056
        %v1058 = vmul.f32 %v1055, %v1057
        %v1059 = vadd.f32 %v1055, %v1058
        %vm1060 = vweird.f32 %v1054
        %vm1061 = vweird.f32 %v1055
        %vm1062 = vmor %vm1060, %vm1061
        %v1063 = vsel %vm1062, %v1055, %v1059
        %v1064 = vand.u32 2147483647, %v1054
        %vm1065 = vcmp.eq.f32.partialorder %v1064, 8.507059e+37
        %v1066 = vand.u32 %v1054, 2147483648
        %v1067 = vor.u32 1.1754944e-38, %v1066
        %v1068 = vsel %vm1065, %v1067, %v1063
        %v1069 = vmul.f32 1.0, %v1068
        %v1070 = vtanh.pop %v1050
        %v1071 = vmul.f32 %v1069, %v1020
        %1073 = vrot.lane.b32.xlu0 %v1070, 64
        %v1074 = vpop.permute.xlu0 %1073
        %v1076 = vmul.f32 %v1069, %v1074
        %1078 = vrot.lane.b32.xlu0 %v1076, 32
        %v1079 = vpop.permute.xlu0 %1078
        %v1081 = vadd.f32 %v1071, %v1079
        %1083 = vrot.lane.b32.xlu0 %v1081, 96
        %v1084 = vpop.permute.xlu0 %1083
        %v1086 = vsel %vm372, %v1084, 0.0
        %1087 = vadd.xlane.f32.xlu0 %v1086
        %v1088 = vpop.xlane.xlu0 %1087
        %v1089 = vmul.f32 %v1088, %v479
        %v1090 = vsub.f32 %v1081, %v1089
        %v1091 = vmul.f32 %v1090, %v1090
        %1093 = vrot.lane.b32.xlu0 %v1091, 96
        %v1094 = vpop.permute.xlu0 %1093
        %v1096 = vsel %vm372, %v1094, 0.0
        %1097 = vadd.xlane.f32.xlu0 %v1096
        %v1098 = vpop.xlane.xlu0 %1097
        %v1099 = vmul.f32 %v1098, %v479
        %v1100 = vadd.f32 %v1099, 1e-05
        %v1101 = vrsqrt.pop %v1100
        %v1102 = vmul.f32 %v1101, %v1100
        %v1103 = vmul.f32 %v1102, %v1101
        %v1104 = vmul.f32 0.5, %v1103
        %v1105 = vsub.f32 1.5, %v1104
        %v1106 = vmul.f32 %v1101, %v1105
        %vm1107 = vweird.f32 %v1100
        %vm1108 = vweird.f32 %v1101
        %vm1109 = vmor %vm1107, %vm1108
        %v1110 = vsel %vm1109, %v1101, %v1106
        %v1111 = vmul.f32 %v1090, %v1110
        %v1112 = vmul.f32 %v1110, %v1110
        %v1113 = vmul.f32 %v1099, %v1112
        %v1114 = vadd.f32 %v1113, 1e-05
        %v1115 = vrsqrt.pop %v1114
        %v1116 = vmul.f32 %v1115, %v1114
        %v1117 = vmul.f32 %v1116, %v1115
        %v1118 = vmul.f32 0.5, %v1117
        %v1119 = vsub.f32 1.5, %v1118
        %v1120 = vmul.f32 %v1115, %v1119
        %vm1121 = vweird.f32 %v1114
        %vm1122 = vweird.f32 %v1115
        %vm1123 = vmor %vm1121, %vm1122
        %v1124 = vsel %vm1123, %v1115, %v1120
        %v1125 = vmul.f32 %v1111, %v1124
        %v1126 = vmul.f32 %v1125, %v518
        %v1127 = vadd.f32 %v1126, %v522
        %1129 = vrot.lane.b32.xlu0 %v1127, 96
        %v1130 = vpop.permute.xlu0 %1129
        %s1132 = scalar_lea.vmem %s346, 32 [#allocation9]
        %1133 = vst.msk [vmem:[%s1132] sm:$0xff] %vm372, %v1130
        %s1134 = scalar_lea.vmem %s299, 40 [#allocation3]
        %v1135 = vld [vmem:[%s1134] sm:$0xff]
        %v1136 = vmul.f32 %v1111, %v1111
        %1138 = vrot.lane.b32.xlu0 %v1136, 96
        %v1139 = vpop.permute.xlu0 %1138
        %v1141 = vsel %vm372, %v1139, 0.0
        %1142 = vadd.xlane.f32.xlu0 %v1141
        %v1143 = vpop.xlane.xlu0 %1142
        %v1144 = vrsqrt.pop %v1143
        %v1145 = vmul.f32 %v1144, %v1143
        %v1146 = vmul.f32 %v1145, %v1144
        %v1147 = vmul.f32 0.5, %v1146
        %v1148 = vsub.f32 1.5, %v1147
        %v1149 = vmul.f32 %v1144, %v1148
        %v1150 = vmul.f32 %v1143, %v1149
        %vm1151 = vcmp.eq.f32.partialorder %v1143, inf
        %v1152 = vsel %vm1151, %v1143, %v1150
        %vm1153 = vcmp.eq.f32.partialorder %v1143, 0.0
        %v1154 = vand.u32 %v1143, 2147483648
        %v1155 = vsel %vm1153, %v1154, %v1152
        %v1156 = vadd.f32 %v1155, 1e-08
        %v1157 = vrcp.pop %v1156
        %v1158 = vmul.f32 %v1156, %v1157
        %v1159 = vsub.f32 1.0, %v1158
        %v1160 = vmul.f32 %v1157, %v1159
        %v1161 = vadd.f32 %v1157, %v1160
        %vm1162 = vweird.f32 %v1156
        %vm1163 = vweird.f32 %v1157
        %vm1164 = vmor %vm1162, %vm1163
        %v1165 = vsel %vm1164, %v1157, %v1161
        %v1166 = vand.u32 2147483647, %v1156
        %vm1167 = vcmp.eq.f32.partialorder %v1166, 8.507059e+37
        %v1168 = vand.u32 %v1156, 2147483648
        %v1169 = vor.u32 1.1754944e-38, %v1168
        %v1170 = vsel %vm1167, %v1169, %v1165
        %v1171 = vmul.f32 %v1111, %v1170
        %v1172 = vld [vmem:[#allocation6] sm:$0xff]
        %v1173 = vld [vmem:[#allocation6 + $0x8] sm:$0xff]
        %v1174 = vld [vmem:[#allocation6 + $0x10] sm:$0xff]
        %v1175 = vld [vmem:[#allocation6 + $0x18] sm:$0xff]
        %1177 = vrot.lane.b32.xlu0 %v1171, 96
        %v1178 = vpop.permute.xlu0 %1177
        %v1179 = vsel %vm372, %v1178, 0
        %1181 = vmatpush.msra.mxu0 0.0
        %1182 = vmatpush.msra.mxu0 0.0
        %1183 = vmatpush.msra.mxu0 0.0
        %1184 = vmatpush.msra.mxu0 0.0
        %1185 = vmatpush.msra.mxu0 0.0
        %1186 = vmatpush.msra.mxu0 0.0
        %1187 = vmatpush.msra.mxu0 0.0
        %1188 = vmatpush.msra.mxu0 0.0
        %1189 = vmatpush.msra.mxu0 0.0
        %1190 = vmatpush.msra.mxu0 0.0
        %1191 = vmatpush.msra.mxu0 0.0
        %1192 = vmatpush.msra.mxu0 0.0
        %1193 = vmatpush.msra.mxu0 %v1175
        %1194 = vmatpush.msra.mxu0 %v1174
        %1195 = vmatpush.msra.mxu0 %v1173
        %1196 = vmatpush.msra.mxu0 %v1172
        %1197 = vmatmul.f32.gmra.mxu0 %v1179
        %v1198 = vpop.f32.mrf.mxu0
        %v1199 = vadd.f32 0.0, %v1198
        %1200 = vdwg.mxu0
        %v1201 = vadd.f32 %v1135, %v1199
        %v1202 = vxor.u32 %v1201, 2147483648
        %v1203 = vmul.f32 %v1202, 1.442695
        %v1204 = vpow.pop %v1203
        %v1205 = vadd.f32 %v1204, 1.0
        %v1206 = vrcp.pop %v1205
        %v1207 = vmul.f32 %v1205, %v1206
        %v1208 = vsub.f32 1.0, %v1207
        %v1209 = vmul.f32 %v1206, %v1208
        %v1210 = vadd.f32 %v1206, %v1209
        %vm1211 = vweird.f32 %v1205
        %vm1212 = vweird.f32 %v1206
        %vm1213 = vmor %vm1211, %vm1212
        %v1214 = vsel %vm1213, %v1206, %v1210
        %v1215 = vand.u32 2147483647, %v1205
        %vm1216 = vcmp.eq.f32.partialorder %v1215, 8.507059e+37
        %v1217 = vand.u32 %v1205, 2147483648
        %v1218 = vor.u32 1.1754944e-38, %v1217
        %v1219 = vsel %vm1216, %v1218, %v1214
        %v1220 = vmul.f32 1.0, %v1219
        %v1221 = vtanh.pop %v1201
        %v1222 = vmul.f32 %v1220, %v1171
        %1224 = vrot.lane.b32.xlu0 %v1221, 64
        %v1225 = vpop.permute.xlu0 %1224
        %v1227 = vmul.f32 %v1220, %v1225
        %1229 = vrot.lane.b32.xlu0 %v1227, 32
        %v1230 = vpop.permute.xlu0 %1229
        %v1232 = vadd.f32 %v1222, %v1230
        %1234 = vrot.lane.b32.xlu0 %v1232, 96
        %v1235 = vpop.permute.xlu0 %1234
        %v1237 = vsel %vm372, %v1235, 0.0
        %1238 = vadd.xlane.f32.xlu0 %v1237
        %v1239 = vpop.xlane.xlu0 %1238
        %v1240 = vmul.f32 %v1239, %v479
        %v1241 = vsub.f32 %v1232, %v1240
        %v1242 = vmul.f32 %v1241, %v1241
        %1244 = vrot.lane.b32.xlu0 %v1242, 96
        %v1245 = vpop.permute.xlu0 %1244
        %v1247 = vsel %vm372, %v1245, 0.0
        %1248 = vadd.xlane.f32.xlu0 %v1247
        %v1249 = vpop.xlane.xlu0 %1248
        %v1250 = vmul.f32 %v1249, %v479
        %v1251 = vadd.f32 %v1250, 1e-05
        %v1252 = vrsqrt.pop %v1251
        %v1253 = vmul.f32 %v1252, %v1251
        %v1254 = vmul.f32 %v1253, %v1252
        %v1255 = vmul.f32 0.5, %v1254
        %v1256 = vsub.f32 1.5, %v1255
        %v1257 = vmul.f32 %v1252, %v1256
        %vm1258 = vweird.f32 %v1251
        %vm1259 = vweird.f32 %v1252
        %vm1260 = vmor %vm1258, %vm1259
        %v1261 = vsel %vm1260, %v1252, %v1257
        %v1262 = vmul.f32 %v1241, %v1261
        %v1263 = vmul.f32 %v1261, %v1261
        %v1264 = vmul.f32 %v1250, %v1263
        %v1265 = vadd.f32 %v1264, 1e-05
        %v1266 = vrsqrt.pop %v1265
        %v1267 = vmul.f32 %v1266, %v1265
        %v1268 = vmul.f32 %v1267, %v1266
        %v1269 = vmul.f32 0.5, %v1268
        %v1270 = vsub.f32 1.5, %v1269
        %v1271 = vmul.f32 %v1266, %v1270
        %vm1272 = vweird.f32 %v1265
        %vm1273 = vweird.f32 %v1266
        %vm1274 = vmor %vm1272, %vm1273
        %v1275 = vsel %vm1274, %v1266, %v1271
        %v1276 = vmul.f32 %v1262, %v1275
        %v1277 = vmul.f32 %v1276, %v518
        %v1278 = vadd.f32 %v1277, %v522
        %1280 = vrot.lane.b32.xlu0 %v1278, 96
        %v1281 = vpop.permute.xlu0 %1280
        %s1283 = scalar_lea.vmem %s346, 40 [#allocation9]
        %1284 = vst.msk [vmem:[%s1283] sm:$0xff] %vm372, %v1281
        %s1285 = scalar_lea.vmem %s299, 48 [#allocation3]
        %v1286 = vld [vmem:[%s1285] sm:$0xff]
        %v1287 = vmul.f32 %v1262, %v1262
        %1289 = vrot.lane.b32.xlu0 %v1287, 96
        %v1290 = vpop.permute.xlu0 %1289
        %v1292 = vsel %vm372, %v1290, 0.0
        %1293 = vadd.xlane.f32.xlu0 %v1292
        %v1294 = vpop.xlane.xlu0 %1293
        %v1295 = vrsqrt.pop %v1294
        %v1296 = vmul.f32 %v1295, %v1294
        %v1297 = vmul.f32 %v1296, %v1295
        %v1298 = vmul.f32 0.5, %v1297
        %v1299 = vsub.f32 1.5, %v1298
        %v1300 = vmul.f32 %v1295, %v1299
        %v1301 = vmul.f32 %v1294, %v1300
        %vm1302 = vcmp.eq.f32.partialorder %v1294, inf
        %v1303 = vsel %vm1302, %v1294, %v1301
        %vm1304 = vcmp.eq.f32.partialorder %v1294, 0.0
        %v1305 = vand.u32 %v1294, 2147483648
        %v1306 = vsel %vm1304, %v1305, %v1303
        %v1307 = vadd.f32 %v1306, 1e-08
        %v1308 = vrcp.pop %v1307
        %v1309 = vmul.f32 %v1307, %v1308
        %v1310 = vsub.f32 1.0, %v1309
        %v1311 = vmul.f32 %v1308, %v1310
        %v1312 = vadd.f32 %v1308, %v1311
        %vm1313 = vweird.f32 %v1307
        %vm1314 = vweird.f32 %v1308
        %vm1315 = vmor %vm1313, %vm1314
        %v1316 = vsel %vm1315, %v1308, %v1312
        %v1317 = vand.u32 2147483647, %v1307
        %vm1318 = vcmp.eq.f32.partialorder %v1317, 8.507059e+37
        %v1319 = vand.u32 %v1307, 2147483648
        %v1320 = vor.u32 1.1754944e-38, %v1319
        %v1321 = vsel %vm1318, %v1320, %v1316
        %v1322 = vmul.f32 %v1262, %v1321
        %v1323 = vld [vmem:[#allocation6] sm:$0xff]
        %v1324 = vld [vmem:[#allocation6 + $0x8] sm:$0xff]
        %v1325 = vld [vmem:[#allocation6 + $0x10] sm:$0xff]
        %v1326 = vld [vmem:[#allocation6 + $0x18] sm:$0xff]
        %1328 = vrot.lane.b32.xlu0 %v1322, 96
        %v1329 = vpop.permute.xlu0 %1328
        %v1330 = vsel %vm372, %v1329, 0
        %1332 = vmatpush.msra.mxu0 0.0
        %1333 = vmatpush.msra.mxu0 0.0
        %1334 = vmatpush.msra.mxu0 0.0
        %1335 = vmatpush.msra.mxu0 0.0
        %1336 = vmatpush.msra.mxu0 0.0
        %1337 = vmatpush.msra.mxu0 0.0
        %1338 = vmatpush.msra.mxu0 0.0
        %1339 = vmatpush.msra.mxu0 0.0
        %1340 = vmatpush.msra.mxu0 0.0
        %1341 = vmatpush.msra.mxu0 0.0
        %1342 = vmatpush.msra.mxu0 0.0
        %1343 = vmatpush.msra.mxu0 0.0
        %1344 = vmatpush.msra.mxu0 %v1326
        %1345 = vmatpush.msra.mxu0 %v1325
        %1346 = vmatpush.msra.mxu0 %v1324
        %1347 = vmatpush.msra.mxu0 %v1323
        %1348 = vmatmul.f32.gmra.mxu0 %v1330
        %v1349 = vpop.f32.mrf.mxu0
        %v1350 = vadd.f32 0.0, %v1349
        %1351 = vdwg.mxu0
        %v1352 = vadd.f32 %v1286, %v1350
        %v1353 = vxor.u32 %v1352, 2147483648
        %v1354 = vmul.f32 %v1353, 1.442695
        %v1355 = vpow.pop %v1354
        %v1356 = vadd.f32 %v1355, 1.0
        %v1357 = vrcp.pop %v1356
        %v1358 = vmul.f32 %v1356, %v1357
        %v1359 = vsub.f32 1.0, %v1358
        %v1360 = vmul.f32 %v1357, %v1359
        %v1361 = vadd.f32 %v1357, %v1360
        %vm1362 = vweird.f32 %v1356
        %vm1363 = vweird.f32 %v1357
        %vm1364 = vmor %vm1362, %vm1363
        %v1365 = vsel %vm1364, %v1357, %v1361
        %v1366 = vand.u32 2147483647, %v1356
        %vm1367 = vcmp.eq.f32.partialorder %v1366, 8.507059e+37
        %v1368 = vand.u32 %v1356, 2147483648
        %v1369 = vor.u32 1.1754944e-38, %v1368
        %v1370 = vsel %vm1367, %v1369, %v1365
        %v1371 = vmul.f32 1.0, %v1370
        %v1372 = vtanh.pop %v1352
        %v1373 = vmul.f32 %v1371, %v1322
        %1375 = vrot.lane.b32.xlu0 %v1372, 64
        %v1376 = vpop.permute.xlu0 %1375
        %v1378 = vmul.f32 %v1371, %v1376
        %1380 = vrot.lane.b32.xlu0 %v1378, 32
        %v1381 = vpop.permute.xlu0 %1380
        %v1383 = vadd.f32 %v1373, %v1381
        %1385 = vrot.lane.b32.xlu0 %v1383, 96
        %v1386 = vpop.permute.xlu0 %1385
        %v1388 = vsel %vm372, %v1386, 0.0
        %1389 = vadd.xlane.f32.xlu0 %v1388
        %v1390 = vpop.xlane.xlu0 %1389
        %v1391 = vmul.f32 %v1390, %v479
        %v1392 = vsub.f32 %v1383, %v1391
        %v1393 = vmul.f32 %v1392, %v1392
        %1395 = vrot.lane.b32.xlu0 %v1393, 96
        %v1396 = vpop.permute.xlu0 %1395
        %v1398 = vsel %vm372, %v1396, 0.0
        %1399 = vadd.xlane.f32.xlu0 %v1398
        %v1400 = vpop.xlane.xlu0 %1399
        %v1401 = vmul.f32 %v1400, %v479
        %v1402 = vadd.f32 %v1401, 1e-05
        %v1403 = vrsqrt.pop %v1402
        %v1404 = vmul.f32 %v1403, %v1402
        %v1405 = vmul.f32 %v1404, %v1403
        %v1406 = vmul.f32 0.5, %v1405
        %v1407 = vsub.f32 1.5, %v1406
        %v1408 = vmul.f32 %v1403, %v1407
        %vm1409 = vweird.f32 %v1402
        %vm1410 = vweird.f32 %v1403
        %vm1411 = vmor %vm1409, %vm1410
        %v1412 = vsel %vm1411, %v1403, %v1408
        %v1413 = vmul.f32 %v1392, %v1412
        %v1414 = vmul.f32 %v1412, %v1412
        %v1415 = vmul.f32 %v1401, %v1414
        %v1416 = vadd.f32 %v1415, 1e-05
        %v1417 = vrsqrt.pop %v1416
        %v1418 = vmul.f32 %v1417, %v1416
        %v1419 = vmul.f32 %v1418, %v1417
        %v1420 = vmul.f32 0.5, %v1419
        %v1421 = vsub.f32 1.5, %v1420
        %v1422 = vmul.f32 %v1417, %v1421
        %vm1423 = vweird.f32 %v1416
        %vm1424 = vweird.f32 %v1417
        %vm1425 = vmor %vm1423, %vm1424
        %v1426 = vsel %vm1425, %v1417, %v1422
        %v1427 = vmul.f32 %v1413, %v1426
        %v1428 = vmul.f32 %v1427, %v518
        %v1429 = vadd.f32 %v1428, %v522
        %1431 = vrot.lane.b32.xlu0 %v1429, 96
        %v1432 = vpop.permute.xlu0 %1431
        %s1434 = scalar_lea.vmem %s346, 48 [#allocation9]
        %1435 = vst.msk [vmem:[%s1434] sm:$0xff] %vm372, %v1432
        %s1436 = scalar_lea.vmem %s299, 56 [#allocation3]
        %v1437 = vld [vmem:[%s1436] sm:$0xff]
        %v1438 = vmul.f32 %v1413, %v1413
        %1440 = vrot.lane.b32.xlu0 %v1438, 96
        %v1441 = vpop.permute.xlu0 %1440
        %v1443 = vsel %vm372, %v1441, 0.0
        %1444 = vadd.xlane.f32.xlu0 %v1443
        %v1445 = vpop.xlane.xlu0 %1444
        %v1446 = vrsqrt.pop %v1445
        %v1447 = vmul.f32 %v1446, %v1445
        %v1448 = vmul.f32 %v1447, %v1446
        %v1449 = vmul.f32 0.5, %v1448
        %v1450 = vsub.f32 1.5, %v1449
        %v1451 = vmul.f32 %v1446, %v1450
        %v1452 = vmul.f32 %v1445, %v1451
        %vm1453 = vcmp.eq.f32.partialorder %v1445, inf
        %v1454 = vsel %vm1453, %v1445, %v1452
        %vm1455 = vcmp.eq.f32.partialorder %v1445, 0.0
        %v1456 = vand.u32 %v1445, 2147483648
        %v1457 = vsel %vm1455, %v1456, %v1454
        %v1458 = vadd.f32 %v1457, 1e-08
        %v1459 = vrcp.pop %v1458
        %v1460 = vmul.f32 %v1458, %v1459
        %v1461 = vsub.f32 1.0, %v1460
        %v1462 = vmul.f32 %v1459, %v1461
        %v1463 = vadd.f32 %v1459, %v1462
        %vm1464 = vweird.f32 %v1458
        %vm1465 = vweird.f32 %v1459
        %vm1466 = vmor %vm1464, %vm1465
        %v1467 = vsel %vm1466, %v1459, %v1463
        %v1468 = vand.u32 2147483647, %v1458
        %vm1469 = vcmp.eq.f32.partialorder %v1468, 8.507059e+37
        %v1470 = vand.u32 %v1458, 2147483648
        %v1471 = vor.u32 1.1754944e-38, %v1470
        %v1472 = vsel %vm1469, %v1471, %v1467
        %v1473 = vmul.f32 %v1413, %v1472
        %v1474 = vld [vmem:[#allocation6] sm:$0xff]
        %v1475 = vld [vmem:[#allocation6 + $0x8] sm:$0xff]
        %v1476 = vld [vmem:[#allocation6 + $0x10] sm:$0xff]
        %v1477 = vld [vmem:[#allocation6 + $0x18] sm:$0xff]
        %1479 = vrot.lane.b32.xlu0 %v1473, 96
        %v1480 = vpop.permute.xlu0 %1479
        %v1481 = vsel %vm372, %v1480, 0
        %1483 = vmatpush.msra.mxu0 0.0
        %1484 = vmatpush.msra.mxu0 0.0
        %1485 = vmatpush.msra.mxu0 0.0
        %1486 = vmatpush.msra.mxu0 0.0
        %1487 = vmatpush.msra.mxu0 0.0
        %1488 = vmatpush.msra.mxu0 0.0
        %1489 = vmatpush.msra.mxu0 0.0
        %1490 = vmatpush.msra.mxu0 0.0
        %1491 = vmatpush.msra.mxu0 0.0
        %1492 = vmatpush.msra.mxu0 0.0
        %1493 = vmatpush.msra.mxu0 0.0
        %1494 = vmatpush.msra.mxu0 0.0
        %1495 = vmatpush.msra.mxu0 %v1477
        %1496 = vmatpush.msra.mxu0 %v1476
        %1497 = vmatpush.msra.mxu0 %v1475
        %1498 = vmatpush.msra.mxu0 %v1474
        %1499 = vmatmul.f32.gmra.mxu0 %v1481
        %v1500 = vpop.f32.mrf.mxu0
        %v1501 = vadd.f32 0.0, %v1500
        %1502 = vdwg.mxu0
        %v1503 = vadd.f32 %v1437, %v1501
        %v1504 = vxor.u32 %v1503, 2147483648
        %v1505 = vmul.f32 %v1504, 1.442695
        %v1506 = vpow.pop %v1505
        %v1507 = vadd.f32 %v1506, 1.0
        %v1508 = vrcp.pop %v1507
        %v1509 = vmul.f32 %v1507, %v1508
        %v1510 = vsub.f32 1.0, %v1509
        %v1511 = vmul.f32 %v1508, %v1510
        %v1512 = vadd.f32 %v1508, %v1511
        %vm1513 = vweird.f32 %v1507
        %vm1514 = vweird.f32 %v1508
        %vm1515 = vmor %vm1513, %vm1514
        %v1516 = vsel %vm1515, %v1508, %v1512
        %v1517 = vand.u32 2147483647, %v1507
        %vm1518 = vcmp.eq.f32.partialorder %v1517, 8.507059e+37
        %v1519 = vand.u32 %v1507, 2147483648
        %v1520 = vor.u32 1.1754944e-38, %v1519
        %v1521 = vsel %vm1518, %v1520, %v1516
        %v1522 = vmul.f32 1.0, %v1521
        %v1523 = vtanh.pop %v1503
        %v1524 = vmul.f32 %v1522, %v1473
        %1526 = vrot.lane.b32.xlu0 %v1523, 64
        %v1527 = vpop.permute.xlu0 %1526
        %v1529 = vmul.f32 %v1522, %v1527
        %1531 = vrot.lane.b32.xlu0 %v1529, 32
        %v1532 = vpop.permute.xlu0 %1531
        %v1534 = vadd.f32 %v1524, %v1532
        %1536 = vrot.lane.b32.xlu0 %v1534, 96
        %v1537 = vpop.permute.xlu0 %1536
        %v1539 = vsel %vm372, %v1537, 0.0
        %1540 = vadd.xlane.f32.xlu0 %v1539
        %v1541 = vpop.xlane.xlu0 %1540
        %v1542 = vmul.f32 %v1541, %v479
        %v1543 = vsub.f32 %v1534, %v1542
        %v1544 = vmul.f32 %v1543, %v1543
        %1546 = vrot.lane.b32.xlu0 %v1544, 96
        %v1547 = vpop.permute.xlu0 %1546
        %v1549 = vsel %vm372, %v1547, 0.0
        %1550 = vadd.xlane.f32.xlu0 %v1549
        %v1551 = vpop.xlane.xlu0 %1550
        %v1552 = vmul.f32 %v1551, %v479
        %v1553 = vadd.f32 %v1552, 1e-05
        %v1554 = vrsqrt.pop %v1553
        %v1555 = vmul.f32 %v1554, %v1553
        %v1556 = vmul.f32 %v1555, %v1554
        %v1557 = vmul.f32 0.5, %v1556
        %v1558 = vsub.f32 1.5, %v1557
        %v1559 = vmul.f32 %v1554, %v1558
        %vm1560 = vweird.f32 %v1553
        %vm1561 = vweird.f32 %v1554
        %vm1562 = vmor %vm1560, %vm1561
        %v1563 = vsel %vm1562, %v1554, %v1559
        %v1564 = vmul.f32 %v1543, %v1563
        %v1565 = vmul.f32 %v1563, %v1563
        %v1566 = vmul.f32 %v1552, %v1565
        %v1567 = vadd.f32 %v1566, 1e-05
        %v1568 = vrsqrt.pop %v1567
        %v1569 = vmul.f32 %v1568, %v1567
        %v1570 = vmul.f32 %v1569, %v1568
        %v1571 = vmul.f32 0.5, %v1570
        %v1572 = vsub.f32 1.5, %v1571
        %v1573 = vmul.f32 %v1568, %v1572
        %vm1574 = vweird.f32 %v1567
        %vm1575 = vweird.f32 %v1568
        %vm1576 = vmor %vm1574, %vm1575
        %v1577 = vsel %vm1576, %v1568, %v1573
        %v1578 = vmul.f32 %v1564, %v1577
        %v1579 = vmul.f32 %v1578, %v518
        %v1580 = vadd.f32 %v1579, %v522
        %1582 = vrot.lane.b32.xlu0 %v1580, 96
        %v1583 = vpop.permute.xlu0 %1582
        %s1585 = scalar_lea.vmem %s346, 56 [#allocation9]
        %1586 = vst.msk [vmem:[%s1585] sm:$0xff] %vm372, %v1583
        %1588 = vrot.lane.b32.xlu0 %v1564, 96
        %v1589 = vpop.permute.xlu0 %1588
        %1591 = vst.msk [vmem:[#allocation2] sm:$0xff] %vm372, %v1589
        %p1592 = scmp.eq.s32.totalorder %s33, 1
        // Predicated region
        $region57: #{tpu_custom_call.1} parent=39 // pred_check
          %p1593 = pneg %p1592
        $region58: #{tpu_custom_call.1} parent=39 // pred_check_branch
          %1595 = sbr.rel (%p1593) target = $region60
        $region59: #{tpu_custom_call.1} parent=39 // pred_region
          %1596 = vst.msk [vmem:[%s353] sm:$0xff] %vm372, %v1589
        $region60: #{tpu_custom_call.1} parent=39 // pred_fallthru
          _
        %s1597 = sand.u32 %s167, 1
        %s1598 = scalar_lea.sflag [#allocation5], %s1597
        %s1599 = sand.u32 %s167, 1
        %s1600 = smul.addr %s1599, 64
        %s1601 = scalar_lea.vmem [#allocation9], %s1600
        %s1602 = sand.u32 %s193, 1
        %s1603 = scalar_lea.sflag [#allocation11], %s1602
        %s1604 = sand.u32 %s193, 1
        %s1605 = smul.addr %s1604, 8
        %s1606 = scalar_lea.vmem [#allocation10], %s1605
        // Predicated region
        $region61: #{tpu_custom_call.1} parent=39 // pred_check
          %p1607 = pneg %p177
        $region62: #{tpu_custom_call.1} parent=39 // pred_check_branch
          %1609 = sbr.rel (%p1607) target = $region64
        $region63: #{tpu_custom_call.1} parent=39 // pred_region
          %s1610 = smul.u32 8, %s33
          %1612 = vsyncadd %s1598, 0
          %s1613 = smul.addr %s1610, 2
          %s1614 = sadd.s32 %s32, %s1613
          %s1615 = smul.addr %s1614, 8
          %s1616 = scalar_lea.hbm %s5, %s1615
          %s1617 = sshll.u32 %s1601, 4
          %s1618 = int_to_ptr.vmem [resolvable:$true] %s1617
          %s1619 = sshll.u32 %s1616, 4
          %s1620 = int_to_ptr.hbm [resolvable:$true] %s1619
          %1625 = dma.vmem_to_hbm [thread:$0]  %s1618, 1024, %s1620, %s1598, 128, 256, 8
        $region64: #{tpu_custom_call.1} parent=39 // pred_fallthru
          _
        // Predicated region
        $region65: #{tpu_custom_call.1} parent=39 // pred_check
          %p1626 = pneg %p203
        $region66: #{tpu_custom_call.1} parent=39 // pred_check_branch
          %1628 = sbr.rel (%p1626) target = $region68
        $region67: #{tpu_custom_call.1} parent=39 // pred_region
          %1630 = vsyncadd %s1603, 0
          %s1631 = smul.addr %s32, 8
          %s1632 = scalar_lea.hbm %s6, %s1631
          %s1634 = sshll.u32 %s1606, 4
          %s1635 = int_to_ptr.vmem [resolvable:$true] %s1634
          %s1636 = sshll.u32 %s1632, 4
          %s1637 = int_to_ptr.hbm [resolvable:$true] %s1636
          %1639 = dma.vmem_to_hbm [thread:$0]  %s1635, 128, %s1637, %s1603
        $region68: #{tpu_custom_call.1} parent=39 // pred_fallthru
          _
      $region40: #{tpu_custom_call.1} parent=5 // pred_fallthru
        _
      %p1640 = scmp.le.s32.totalorder 2, %s23
      // Predicated region
      $region69: #{tpu_custom_call.1} parent=5 // pred_check
        %p1641 = pneg %p1640
      $region70: #{tpu_custom_call.1} parent=5 // pred_check_branch
        %1643 = sbr.rel (%p1641) target = $region72
      $region71: #{tpu_custom_call.1} parent=5 // pred_region
        %s1644 = ssub.s32 %s23, 2
        // Predicated region
        $region73: #{tpu_custom_call.1} parent=71 // pred_check
          %p1645 = pneg %p183
        $region74: #{tpu_custom_call.1} parent=71 // pred_check_branch
          %1647 = sbr.rel (%p1645) target = $region76
        $region75: #{tpu_custom_call.1} parent=71 // pred_region
          %s1648 = sand.u32 %s168, 1
          %s1649 = scalar_lea.sflag [#allocation5], %s1648
          %s1650 = sand.u32 %s168, 1
          %s1651 = smul.addr %s1650, 64
          %s1652 = scalar_lea.vmem [#allocation9], %s1651
          %1654 = dma.done %s1649, 1024
        $region76: #{tpu_custom_call.1} parent=71 // pred_fallthru
          _
        // Predicated region
        $region77: #{tpu_custom_call.1} parent=71 // pred_check
          %p1655 = pneg %p209
        $region78: #{tpu_custom_call.1} parent=71 // pred_check_branch
          %1657 = sbr.rel (%p1655) target = $region80
        $region79: #{tpu_custom_call.1} parent=71 // pred_region
          %s1658 = sand.u32 %s194, 1
          %s1659 = scalar_lea.sflag [#allocation11], %s1658
          %s1660 = sand.u32 %s194, 1
          %s1661 = smul.addr %s1660, 8
          %s1662 = scalar_lea.vmem [#allocation10], %s1661
          %1664 = dma.done %s1659, 128
        $region80: #{tpu_custom_call.1} parent=71 // pred_fallthru
          _
      $region72: #{tpu_custom_call.1} parent=5 // pred_fallthru
        _
    $region6: #{tpu_custom_call.1} parent=1 // loop_footer
      %s27 = sadd.s32 1, %s23
    $region7: #{tpu_custom_call.1} parent=1 // loop_footer_branch
      %22 = sbr.rel target = $region3
    $region8: #{tpu_custom_call.1} parent=1 // loop_exit
      _
    %1665 = vsyncpa [#allocation4], 1
    %s1666 = scalar_lea.sflag [#allocation4], 1
    %1667 = vsyncpa %s1666, 1
    %1668 = vsyncpa [#allocation7], 1
    %1669 = vsyncpa [#allocation5], 1
    %s1670 = scalar_lea.sflag [#allocation5], 1
    %1671 = vsyncpa %s1670, 1
    %1672 = vsyncpa [#allocation11], 1
    %s1673 = scalar_lea.sflag [#allocation11], 1
    %1674 = vsyncpa %s1673, 1

</llo_original>
